<compile_context>
chip_gen: v7x
topology: tpu7x:2x2x1
jax: 0.10.0
libtpu: 0.0.40
codegen_flags: <defaults>
</compile_context>

<pallas_src>
import functools
import math

import jax
import jax.numpy as jnp
from jax import lax
from jax.experimental import pallas as pl
from jax.experimental.pallas import tpu as pltpu


def _layer_norm(h, g, b, eps=1e-5):
    # One-pass variance (E[x^2] - mu^2): halves the cross-lane reductions.
    mu = jnp.mean(h, axis=-1, keepdims=True)
    ms = jnp.mean(h * h, axis=-1, keepdims=True)
    var = jnp.maximum(ms - mu * mu, 0.0)
    return (h - mu) * lax.rsqrt(var + eps) * g + b


def decoder_layer_kernel(
    # data
    x_ref, enc_ref, mask_ref,
    # conv block params
    cw_in_ref, cb_in_ref, cconv_ref, cw_out_ref, cb_out_ref,
    # self-conv LayerNorm
    g1_ref, b1_ref,
    # encoder-decoder attention params
    wq_ref, bq_ref, wk_ref, bk_ref, wv_ref, bv_ref, wo_ref, bo_ref,
    # enc-attn LayerNorm
    g2_ref, b2_ref,
    # FFN params
    w1_ref, bf1_ref, w2_ref, bf2_ref,
    # FFN LayerNorm
    g3_ref, b3_ref,
    # outputs
    out_ref, attnw_ref,
    *, n_heads, kernel_size, batch_block,
):
    bb = batch_block
    _, T, D = x_ref.shape
    S = enc_ref.shape[1]
    H = n_heads
    dk = D // H
    K = kernel_size
    M = bb * T
    bf16 = jnp.bfloat16
    f32 = jnp.float32

    # Fold the batch block into the M dimension for all row-wise work.
    x = x_ref[...].reshape(M, D)

    # ---------------- self conv block (causal) + residual + LN -------------
    h = jnp.dot(x.astype(bf16), cw_in_ref[...], preferred_element_type=f32) + cb_in_ref[...]
    h = h[:, :D] * jax.nn.sigmoid(h[:, D:])                     # GLU
    conv_w = cconv_ref[...]                                     # [K, D]
    # Causal depthwise conv: out[t] = sum_j w[K-1-j] * h[t-j].
    # Shift via XLU roll + iota mask (no zero-concat copies); masking on the
    # in-batch row index also kills any cross-batch bleed from the fold.
    row_t = lax.broadcasted_iota(jnp.int32, (M, 1), 0) % T
    acc = h * conv_w[K - 1:K, :]
    for j in range(1, K):
        rolled = pltpu.roll(h, shift=j, axis=0)
        rolled = jnp.where(row_t >= j, rolled, 0.0)
        acc = acc + rolled * conv_w[K - 1 - j:K - j, :]
    h = jnp.dot(acc.astype(bf16), cw_out_ref[...], preferred_element_type=f32) + cb_out_ref[...]
    x1 = _layer_norm(x + h, g1_ref[...], b1_ref[...])

    # ---------------- encoder-decoder multi-head attention -----------------
    enc = enc_ref[...].reshape(bb * S, D)
    q = jnp.dot(x1.astype(bf16), wq_ref[...], preferred_element_type=f32) + bq_ref[...]
    k = jnp.dot(enc.astype(bf16), wk_ref[...], preferred_element_type=f32) + bk_ref[...]
    v = jnp.dot(enc.astype(bf16), wv_ref[...], preferred_element_type=f32) + bv_ref[...]
    scale = 1.0 / math.sqrt(dk)
    neg = jnp.where(mask_ref[...] > 0.0, 0.0, -1e9)             # [bb, 1, S]

    ctx_parts = []
    for b in range(bb):                                         # static, small
        qh = pltpu.einshape("mhd->hmd", q[b * T:(b + 1) * T, :].reshape(T, H, dk))
        kh = pltpu.einshape("mhd->hmd", k[b * S:(b + 1) * S, :].reshape(S, H, dk))
        vh = pltpu.einshape("mhd->hmd", v[b * S:(b + 1) * S, :].reshape(S, H, dk))
        # One head-batched matmul for scores, one for context.
        s = jnp.einsum("hqd,hkd->hqk", qh.astype(bf16), kh.astype(bf16),
                       preferred_element_type=f32)              # [H, T, S]
        s = s * scale + neg[b:b + 1]
        s = s - jnp.max(s, axis=-1, keepdims=True)
        p = jnp.exp(s)
        p = p * pl.reciprocal(jnp.sum(p, axis=-1, keepdims=True), approx=True)
        attnw_ref[b] = p                                        # direct write, no stack
        ctx = jnp.einsum("hqk,hkd->hqd", p.astype(bf16), vh.astype(bf16),
                         preferred_element_type=f32)            # [H, T, dk]
        ctx_parts.append(pltpu.einshape("hmd->mhd", ctx).reshape(T, D))
    attn = ctx_parts[0] if bb == 1 else jnp.concatenate(ctx_parts, axis=0)
    attn = jnp.dot(attn.astype(bf16), wo_ref[...], preferred_element_type=f32) + bo_ref[...]
    x2 = _layer_norm(x1 + attn, g2_ref[...], b2_ref[...])

    # ---------------- position-wise FFN + residual + LN --------------------
    hf = jnp.dot(x2.astype(bf16), w1_ref[...], preferred_element_type=f32) + bf1_ref[...]
    hf = jnp.maximum(hf, 0.0)
    hf = jnp.dot(hf.astype(bf16), w2_ref[...], preferred_element_type=f32) + bf2_ref[...]
    x3 = _layer_norm(x2 + hf, g3_ref[...], b3_ref[...])

    out_ref[...] = x3.reshape(bb, T, D)


def decoder_layer(enc_out, x, enc_mask, params, *, n_heads, kernel_size,
                  batch_block=None):
    B, T, D = x.shape
    S = enc_out.shape[1]
    H = n_heads
    if batch_block is None:
        batch_block = B
    assert B % batch_block == 0
    bb = batch_block
    grid = (B // bb,)
    mask3 = enc_mask.reshape(B, 1, S).astype(jnp.float32)

    def const_spec(arr):
        nd = arr.ndim
        return pl.BlockSpec(arr.shape, lambda g, nd=nd: (0,) * nd)

    in_specs = [
        pl.BlockSpec((bb, T, D), lambda g: (g, 0, 0)),   # x
        pl.BlockSpec((bb, S, D), lambda g: (g, 0, 0)),   # enc_out
        pl.BlockSpec((bb, 1, S), lambda g: (g, 0, 0)),   # mask
    ] + [const_spec(p) for p in params]

    out_specs = [
        pl.BlockSpec((bb, T, D), lambda g: (g, 0, 0)),
        pl.BlockSpec((bb, H, T, S), lambda g: (g, 0, 0, 0)),
    ]
    out_shape = [
        jax.ShapeDtypeStruct((B, T, D), jnp.float32),
        jax.ShapeDtypeStruct((B, H, T, S), jnp.float32),
    ]

    kernel = functools.partial(
        decoder_layer_kernel, n_heads=n_heads, kernel_size=kernel_size,
        batch_block=bb)

    return pl.pallas_call(
        kernel,
        grid=grid,
        in_specs=in_specs,
        out_specs=out_specs,
        out_shape=out_shape,
        compiler_params=pltpu.CompilerParams(
            dimension_semantics=("parallel",),          # v7x: 2 TCs over batch blocks
            vmem_limit_bytes=64 * 1024 * 1024),
    )(x, enc_out, mask3, *params)


def init_params(key, d_model, d_ff, n_heads, kernel_size):
    D, F, H, K = d_model, d_ff, n_heads, kernel_size
    ks = jax.random.split(key, 16)

    def dense(k, fi, fo):
        w = jax.random.normal(k, (fi, fo), jnp.float32) * (1.0 / math.sqrt(fi))
        return w.astype(jnp.bfloat16)   # MXU-native operand dtype (f32 accumulate)

    def bias(dim):
        return jnp.zeros((1, dim), jnp.float32)

    # conv block: GLU in-proj, lightweight conv weight [H, K] (softmax over K,
    # shared across D//H channels per head), out-proj.
    cw_in = dense(ks[0], D, 2 * D)
    cb_in = bias(2 * D)
    conv_raw = jax.random.normal(ks[1], (H, K), jnp.float32)
    conv_sm = jax.nn.softmax(conv_raw, axis=-1)           # [H, K]
    cconv = jnp.repeat(conv_sm.T, D // H, axis=1)         # [K, D]  (f32)
    cw_out = dense(ks[2], D, D)
    cb_out = bias(D)

    g1 = jnp.ones((1, D), jnp.float32); b1 = bias(D)

    wq = dense(ks[3], D, D); bq = bias(D)
    wk = dense(ks[4], D, D); bk = bias(D)
    wv = dense(ks[5], D, D); bv = bias(D)
    wo = dense(ks[6], D, D); bo = bias(D)

    g2 = jnp.ones((1, D), jnp.float32); b2 = bias(D)

    w1 = dense(ks[7], D, F); bf1 = bias(F)
    w2 = dense(ks[8], F, D); bf2 = bias(D)

    g3 = jnp.ones((1, D), jnp.float32); b3 = bias(D)

    return [cw_in, cb_in, cconv, cw_out, cb_out,
            g1, b1,
            wq, bq, wk, bk, wv, bv, wo, bo,
            g2, b2,
            w1, bf1, w2, bf2,
            g3, b3]


if __name__ == "__main__":
    B, T, S = 2, 8, 16
    d_model, d_ff, n_heads, kernel_size = 32, 64, 4, 3

    key = jax.random.PRNGKey(0)
    k_x, k_enc, k_par = jax.random.split(key, 3)

    x = jax.random.normal(k_x, (B, T, d_model), jnp.float32)
    enc_out = jax.random.normal(k_enc, (B, S, d_model), jnp.float32)
    src_lens = jnp.array([S, S - 4], jnp.int32)
    enc_mask = (jnp.arange(S)[None, :] < src_lens[:, None]).astype(jnp.float32)  # [B, S]

    params = init_params(k_par, d_model, d_ff, n_heads, kernel_size)

    out, attn_w = decoder_layer(
        enc_out, x, enc_mask, params,
        n_heads=n_heads, kernel_size=kernel_size, batch_block=B)
    jax.block_until_ready((out, attn_w))

    assert out.shape == (B, T, d_model)
    assert attn_w.shape == (B, n_heads, T, S)
    assert bool(jnp.isfinite(out).all()) and bool(jnp.isfinite(attn_w).all())
    print("KERNEL_OK")
</pallas_src>

<mosaic_0001>
module attributes {stable_mosaic.version = 11 : i64} {
  func.func @decoder_layer_kernel(%arg0: i32, %arg1: memref<2x8x32xf32, #tpu.memory_space<vmem>>, %arg2: memref<2x16x32xf32, #tpu.memory_space<vmem>>, %arg3: memref<2x1x16xf32, #tpu.memory_space<vmem>>, %arg4: memref<32x64xbf16, #tpu.memory_space<vmem>>, %arg5: memref<1x64xf32, #tpu.memory_space<vmem>>, %arg6: memref<3x32xf32, #tpu.memory_space<vmem>>, %arg7: memref<32x32xbf16, #tpu.memory_space<vmem>>, %arg8: memref<1x32xf32, #tpu.memory_space<vmem>>, %arg9: memref<1x32xf32, #tpu.memory_space<vmem>>, %arg10: memref<1x32xf32, #tpu.memory_space<vmem>>, %arg11: memref<32x32xbf16, #tpu.memory_space<vmem>>, %arg12: memref<1x32xf32, #tpu.memory_space<vmem>>, %arg13: memref<32x32xbf16, #tpu.memory_space<vmem>>, %arg14: memref<1x32xf32, #tpu.memory_space<vmem>>, %arg15: memref<32x32xbf16, #tpu.memory_space<vmem>>, %arg16: memref<1x32xf32, #tpu.memory_space<vmem>>, %arg17: memref<32x32xbf16, #tpu.memory_space<vmem>>, %arg18: memref<1x32xf32, #tpu.memory_space<vmem>>, %arg19: memref<1x32xf32, #tpu.memory_space<vmem>>, %arg20: memref<1x32xf32, #tpu.memory_space<vmem>>, %arg21: memref<32x64xbf16, #tpu.memory_space<vmem>>, %arg22: memref<1x64xf32, #tpu.memory_space<vmem>>, %arg23: memref<64x32xbf16, #tpu.memory_space<vmem>>, %arg24: memref<1x32xf32, #tpu.memory_space<vmem>>, %arg25: memref<1x32xf32, #tpu.memory_space<vmem>>, %arg26: memref<1x32xf32, #tpu.memory_space<vmem>>, %arg27: memref<2x8x32xf32, #tpu.memory_space<vmem>>, %arg28: memref<2x4x8x16xf32, #tpu.memory_space<vmem>>) attributes {dimension_semantics = [#tpu.dimension_semantics<parallel>], iteration_bounds = array<i64: 1>, scalar_prefetch = 0 : i64, scratch_operands = 0 : i64, tpu.core_type = #tpu.core_type<tc>, window_params = [{transform_indices = @transform_0, window_bounds = array<i64: 2, 8, 32>}, {transform_indices = @transform_1, window_bounds = array<i64: 2, 16, 32>}, {transform_indices = @transform_2, window_bounds = array<i64: 2, 1, 16>}, {pipeline_mode = #tpu.pipeline_mode<synchronous>, transform_indices = @transform_3, window_bounds = array<i64: 32, 64>}, {pipeline_mode = #tpu.pipeline_mode<synchronous>, transform_indices = @transform_4, window_bounds = array<i64: 1, 64>}, {pipeline_mode = #tpu.pipeline_mode<synchronous>, transform_indices = @transform_5, window_bounds = array<i64: 3, 32>}, {pipeline_mode = #tpu.pipeline_mode<synchronous>, transform_indices = @transform_6, window_bounds = array<i64: 32, 32>}, {pipeline_mode = #tpu.pipeline_mode<synchronous>, transform_indices = @transform_7, window_bounds = array<i64: 1, 32>}, {pipeline_mode = #tpu.pipeline_mode<synchronous>, transform_indices = @transform_8, window_bounds = array<i64: 1, 32>}, {pipeline_mode = #tpu.pipeline_mode<synchronous>, transform_indices = @transform_9, window_bounds = array<i64: 1, 32>}, {pipeline_mode = #tpu.pipeline_mode<synchronous>, transform_indices = @transform_10, window_bounds = array<i64: 32, 32>}, {pipeline_mode = #tpu.pipeline_mode<synchronous>, transform_indices = @transform_11, window_bounds = array<i64: 1, 32>}, {pipeline_mode = #tpu.pipeline_mode<synchronous>, transform_indices = @transform_12, window_bounds = array<i64: 32, 32>}, {pipeline_mode = #tpu.pipeline_mode<synchronous>, transform_indices = @transform_13, window_bounds = array<i64: 1, 32>}, {pipeline_mode = #tpu.pipeline_mode<synchronous>, transform_indices = @transform_14, window_bounds = array<i64: 32, 32>}, {pipeline_mode = #tpu.pipeline_mode<synchronous>, transform_indices = @transform_15, window_bounds = array<i64: 1, 32>}, {pipeline_mode = #tpu.pipeline_mode<synchronous>, transform_indices = @transform_16, window_bounds = array<i64: 32, 32>}, {pipeline_mode = #tpu.pipeline_mode<synchronous>, transform_indices = @transform_17, window_bounds = array<i64: 1, 32>}, {pipeline_mode = #tpu.pipeline_mode<synchronous>, transform_indices = @transform_18, window_bounds = array<i64: 1, 32>}, {pipeline_mode = #tpu.pipeline_mode<synchronous>, transform_indices = @transform_19, window_bounds = array<i64: 1, 32>}, {pipeline_mode = #tpu.pipeline_mode<synchronous>, transform_indices = @transform_20, window_bounds = array<i64: 32, 64>}, {pipeline_mode = #tpu.pipeline_mode<synchronous>, transform_indices = @transform_21, window_bounds = array<i64: 1, 64>}, {pipeline_mode = #tpu.pipeline_mode<synchronous>, transform_indices = @transform_22, window_bounds = array<i64: 64, 32>}, {pipeline_mode = #tpu.pipeline_mode<synchronous>, transform_indices = @transform_23, window_bounds = array<i64: 1, 32>}, {pipeline_mode = #tpu.pipeline_mode<synchronous>, transform_indices = @transform_24, window_bounds = array<i64: 1, 32>}, {pipeline_mode = #tpu.pipeline_mode<synchronous>, transform_indices = @transform_25, window_bounds = array<i64: 1, 32>}, {transform_indices = @transform_26, window_bounds = array<i64: 2, 8, 32>}, {transform_indices = @transform_27, window_bounds = array<i64: 2, 4, 8, 16>}]} {
    %c0 = arith.constant 0 : index
    %c0_0 = arith.constant 0 : index
    %c0_1 = arith.constant 0 : index
    %0 = vector.load %arg1[%c0, %c0_0, %c0_1] : memref<2x8x32xf32, #tpu.memory_space<vmem>>, vector<2x8x32xf32>
    %1 = vector.shape_cast %0 : vector<2x8x32xf32> to vector<16x32xf32>
    %2 = arith.truncf %1 : vector<16x32xf32> to vector<16x32xbf16>
    %c0_2 = arith.constant 0 : index
    %c0_3 = arith.constant 0 : index
    %3 = vector.load %arg4[%c0_2, %c0_3] : memref<32x64xbf16, #tpu.memory_space<vmem>>, vector<32x64xbf16>
    %cst = arith.constant dense<0.000000e+00> : vector<16x64xf32>
    %4 = tpu.matmul %2, %3, %cst {dimension_numbers = #tpu.dot_dimension_numbers<[1], [0], [0], [1], [0, 0, 1, 1], [], []>} : vector<16x32xbf16>, vector<32x64xbf16>, vector<16x64xf32> -> vector<16x64xf32>
    %c0_4 = arith.constant 0 : index
    %c0_5 = arith.constant 0 : index
    %5 = vector.load %arg5[%c0_4, %c0_5] : memref<1x64xf32, #tpu.memory_space<vmem>>, vector<1x64xf32>
    %6 = vector.broadcast %5 : vector<1x64xf32> to vector<16x64xf32>
    %7 = arith.addf %4, %6 : vector<16x64xf32>
    %8 = vector.extract_strided_slice %7 {offsets = [0, 0], sizes = [16, 32], strides = [1, 1]} : vector<16x64xf32> to vector<16x32xf32>
    %9 = vector.extract_strided_slice %7 {offsets = [0, 32], sizes = [16, 32], strides = [1, 1]} : vector<16x64xf32> to vector<16x32xf32>
    %10 = arith.negf %9 : vector<16x32xf32>
    %11 = math.exp %10 : vector<16x32xf32>
    %cst_6 = arith.constant 1.000000e+00 : f32
    %12 = vector.broadcast %cst_6 : f32 to vector<16x32xf32>
    %13 = arith.addf %12, %11 : vector<16x32xf32>
    %14 = arith.divf %12, %13 : vector<16x32xf32>
    %15 = arith.mulf %8, %14 : vector<16x32xf32>
    %c0_7 = arith.constant 0 : index
    %c0_8 = arith.constant 0 : index
    %16 = vector.load %arg6[%c0_7, %c0_8] : memref<3x32xf32, #tpu.memory_space<vmem>>, vector<3x32xf32>
    %17 = tpu.iota {dimensions = array<i32: 0>} : vector<16x1xi32>
    %c8_i32 = arith.constant 8 : i32
    %c0_i32 = arith.constant 0 : i32
    %18 = arith.cmpi eq, %c8_i32, %c0_i32 : i32
    %c1_i32 = arith.constant 1 : i32
    %19 = arith.select %18, %c1_i32, %c8_i32 : i32
    %20 = vector.broadcast %19 : i32 to vector<16x1xi32>
    %21 = arith.remsi %17, %20 : vector<16x1xi32>
    %c0_i32_9 = arith.constant 0 : i32
    %22 = vector.broadcast %c0_i32_9 : i32 to vector<16x1xi32>
    %23 = arith.cmpi ne, %21, %22 : vector<16x1xi32>
    %c0_i32_10 = arith.constant 0 : i32
    %24 = vector.broadcast %c0_i32_10 : i32 to vector<16x1xi32>
    %25 = arith.cmpi slt, %21, %24 : vector<16x1xi32>
    %c0_i32_11 = arith.constant 0 : i32
    %26 = arith.cmpi slt, %19, %c0_i32_11 : i32
    %27 = vector.broadcast %26 : i1 to vector<16x1xi1>
    %28 = vector.broadcast %27 : vector<16x1xi1> to vector<16x1xi1>
    %29 = arith.xori %25, %28 : vector<16x1xi1>
    %30 = arith.andi %29, %23 : vector<16x1xi1>
    %31 = vector.broadcast %19 : i32 to vector<16x1xi32>
    %32 = arith.addi %21, %31 : vector<16x1xi32>
    %33 = arith.select %30, %32, %21 : vector<16x1xi1>, vector<16x1xi32>
    %34 = vector.extract_strided_slice %16 {offsets = [2, 0], sizes = [1, 32], strides = [1, 1]} : vector<3x32xf32> to vector<1x32xf32>
    %35 = vector.broadcast %34 : vector<1x32xf32> to vector<16x32xf32>
    %36 = arith.mulf %15, %35 : vector<16x32xf32>
    %c1_i32_12 = arith.constant 1 : i32
    %37 = tpu.dynamic_rotate %15 by %c1_i32_12 dim 0 : vector<16x32xf32>, i32 -> vector<16x32xf32>
    %c1_i32_13 = arith.constant 1 : i32
    %38 = vector.broadcast %c1_i32_13 : i32 to vector<16x1xi32>
    %39 = arith.cmpi sge, %33, %38 : vector<16x1xi32>
    %cst_14 = arith.constant 0.000000e+00 : f32
    %40 = vector.shape_cast %39 : vector<16x1xi1> to vector<16x1xi1>
    %41 = vector.broadcast %40 : vector<16x1xi1> to vector<16x32xi1>
    %42 = vector.broadcast %cst_14 : f32 to vector<16x32xf32>
    %43 = arith.select %41, %37, %42 : vector<16x32xi1>, vector<16x32xf32>
    %44 = vector.extract_strided_slice %16 {offsets = [1, 0], sizes = [1, 32], strides = [1, 1]} : vector<3x32xf32> to vector<1x32xf32>
    %45 = vector.broadcast %44 : vector<1x32xf32> to vector<16x32xf32>
    %46 = arith.mulf %43, %45 : vector<16x32xf32>
    %47 = arith.addf %36, %46 : vector<16x32xf32>
    %c2_i32 = arith.constant 2 : i32
    %48 = tpu.dynamic_rotate %15 by %c2_i32 dim 0 : vector<16x32xf32>, i32 -> vector<16x32xf32>
    %c2_i32_15 = arith.constant 2 : i32
    %49 = vector.broadcast %c2_i32_15 : i32 to vector<16x1xi32>
    %50 = arith.cmpi sge, %33, %49 : vector<16x1xi32>
    %cst_16 = arith.constant 0.000000e+00 : f32
    %51 = vector.shape_cast %50 : vector<16x1xi1> to vector<16x1xi1>
    %52 = vector.broadcast %51 : vector<16x1xi1> to vector<16x32xi1>
    %53 = vector.broadcast %cst_16 : f32 to vector<16x32xf32>
    %54 = arith.select %52, %48, %53 : vector<16x32xi1>, vector<16x32xf32>
    %55 = vector.extract_strided_slice %16 {offsets = [0, 0], sizes = [1, 32], strides = [1, 1]} : vector<3x32xf32> to vector<1x32xf32>
    %56 = vector.broadcast %55 : vector<1x32xf32> to vector<16x32xf32>
    %57 = arith.mulf %54, %56 : vector<16x32xf32>
    %58 = arith.addf %47, %57 : vector<16x32xf32>
    %59 = arith.truncf %58 : vector<16x32xf32> to vector<16x32xbf16>
    %c0_17 = arith.constant 0 : index
    %c0_18 = arith.constant 0 : index
    %60 = vector.load %arg7[%c0_17, %c0_18] : memref<32x32xbf16, #tpu.memory_space<vmem>>, vector<32x32xbf16>
    %cst_19 = arith.constant dense<0.000000e+00> : vector<16x32xf32>
    %61 = tpu.matmul %59, %60, %cst_19 {dimension_numbers = #tpu.dot_dimension_numbers<[1], [0], [0], [1], [0, 0, 1, 1], [], []>} : vector<16x32xbf16>, vector<32x32xbf16>, vector<16x32xf32> -> vector<16x32xf32>
    %c0_20 = arith.constant 0 : index
    %c0_21 = arith.constant 0 : index
    %62 = vector.load %arg8[%c0_20, %c0_21] : memref<1x32xf32, #tpu.memory_space<vmem>>, vector<1x32xf32>
    %63 = vector.broadcast %62 : vector<1x32xf32> to vector<16x32xf32>
    %64 = arith.addf %61, %63 : vector<16x32xf32>
    %65 = arith.addf %1, %64 : vector<16x32xf32>
    %c0_22 = arith.constant 0 : index
    %c0_23 = arith.constant 0 : index
    %66 = vector.load %arg9[%c0_22, %c0_23] : memref<1x32xf32, #tpu.memory_space<vmem>>, vector<1x32xf32>
    %c0_24 = arith.constant 0 : index
    %c0_25 = arith.constant 0 : index
    %67 = vector.load %arg10[%c0_24, %c0_25] : memref<1x32xf32, #tpu.memory_space<vmem>>, vector<1x32xf32>
    %cst_26 = arith.constant dense<0.000000e+00> : vector<16xf32>
    %68 = vector.multi_reduction <add>, %65, %cst_26 [1] : vector<16x32xf32> to vector<16xf32>
    %69 = vector.shape_cast %68 : vector<16xf32> to vector<16x1xf32>
    %cst_27 = arith.constant 3.200000e+01 : f32
    %70 = vector.broadcast %cst_27 : f32 to vector<16x1xf32>
    %71 = arith.divf %69, %70 : vector<16x1xf32>
    %72 = arith.mulf %65, %65 : vector<16x32xf32>
    %cst_28 = arith.constant dense<0.000000e+00> : vector<16xf32>
    %73 = vector.multi_reduction <add>, %72, %cst_28 [1] : vector<16x32xf32> to vector<16xf32>
    %74 = vector.shape_cast %73 : vector<16xf32> to vector<16x1xf32>
    %cst_29 = arith.constant 3.200000e+01 : f32
    %75 = vector.broadcast %cst_29 : f32 to vector<16x1xf32>
    %76 = arith.divf %74, %75 : vector<16x1xf32>
    %77 = arith.mulf %71, %71 : vector<16x1xf32>
    %78 = arith.subf %76, %77 : vector<16x1xf32>
    %cst_30 = arith.constant 0.000000e+00 : f32
    %79 = vector.broadcast %cst_30 : f32 to vector<16x1xf32>
    %80 = arith.maximumf %78, %79 : vector<16x1xf32>
    %81 = vector.broadcast %71 : vector<16x1xf32> to vector<16x32xf32>
    %82 = arith.subf %65, %81 : vector<16x32xf32>
    %cst_31 = arith.constant 9.99999974E-6 : f32
    %83 = vector.broadcast %cst_31 : f32 to vector<16x1xf32>
    %84 = arith.addf %80, %83 : vector<16x1xf32>
    %85 = math.rsqrt %84 : vector<16x1xf32>
    %86 = vector.broadcast %85 : vector<16x1xf32> to vector<16x32xf32>
    %87 = arith.mulf %82, %86 : vector<16x32xf32>
    %88 = vector.broadcast %66 : vector<1x32xf32> to vector<16x32xf32>
    %89 = arith.mulf %87, %88 : vector<16x32xf32>
    %90 = vector.broadcast %67 : vector<1x32xf32> to vector<16x32xf32>
    %91 = arith.addf %89, %90 : vector<16x32xf32>
    %c0_32 = arith.constant 0 : index
    %c0_33 = arith.constant 0 : index
    %c0_34 = arith.constant 0 : index
    %92 = vector.load %arg2[%c0_32, %c0_33, %c0_34] : memref<2x16x32xf32, #tpu.memory_space<vmem>>, vector<2x16x32xf32>
    %93 = vector.shape_cast %92 : vector<2x16x32xf32> to vector<32x32xf32>
    %94 = arith.truncf %91 : vector<16x32xf32> to vector<16x32xbf16>
    %c0_35 = arith.constant 0 : index
    %c0_36 = arith.constant 0 : index
    %95 = vector.load %arg11[%c0_35, %c0_36] : memref<32x32xbf16, #tpu.memory_space<vmem>>, vector<32x32xbf16>
    %cst_37 = arith.constant dense<0.000000e+00> : vector<16x32xf32>
    %96 = tpu.matmul %94, %95, %cst_37 {dimension_numbers = #tpu.dot_dimension_numbers<[1], [0], [0], [1], [0, 0, 1, 1], [], []>} : vector<16x32xbf16>, vector<32x32xbf16>, vector<16x32xf32> -> vector<16x32xf32>
    %c0_38 = arith.constant 0 : index
    %c0_39 = arith.constant 0 : index
    %97 = vector.load %arg12[%c0_38, %c0_39] : memref<1x32xf32, #tpu.memory_space<vmem>>, vector<1x32xf32>
    %98 = vector.broadcast %97 : vector<1x32xf32> to vector<16x32xf32>
    %99 = arith.addf %96, %98 : vector<16x32xf32>
    %100 = arith.truncf %93 : vector<32x32xf32> to vector<32x32xbf16>
    %c0_40 = arith.constant 0 : index
    %c0_41 = arith.constant 0 : index
    %101 = vector.load %arg13[%c0_40, %c0_41] : memref<32x32xbf16, #tpu.memory_space<vmem>>, vector<32x32xbf16>
    %cst_42 = arith.constant dense<0.000000e+00> : vector<32x32xf32>
    %102 = tpu.matmul %100, %101, %cst_42 {dimension_numbers = #tpu.dot_dimension_numbers<[1], [0], [0], [1], [0, 0, 1, 1], [], []>} : vector<32x32xbf16>, vector<32x32xbf16>, vector<32x32xf32> -> vector<32x32xf32>
    %c0_43 = arith.constant 0 : index
    %c0_44 = arith.constant 0 : index
    %103 = vector.load %arg14[%c0_43, %c0_44] : memref<1x32xf32, #tpu.memory_space<vmem>>, vector<1x32xf32>
    %104 = vector.broadcast %103 : vector<1x32xf32> to vector<32x32xf32>
    %105 = arith.addf %102, %104 : vector<32x32xf32>
    %106 = arith.truncf %93 : vector<32x32xf32> to vector<32x32xbf16>
    %c0_45 = arith.constant 0 : index
    %c0_46 = arith.constant 0 : index
    %107 = vector.load %arg15[%c0_45, %c0_46] : memref<32x32xbf16, #tpu.memory_space<vmem>>, vector<32x32xbf16>
    %cst_47 = arith.constant dense<0.000000e+00> : vector<32x32xf32>
    %108 = tpu.matmul %106, %107, %cst_47 {dimension_numbers = #tpu.dot_dimension_numbers<[1], [0], [0], [1], [0, 0, 1, 1], [], []>} : vector<32x32xbf16>, vector<32x32xbf16>, vector<32x32xf32> -> vector<32x32xf32>
    %c0_48 = arith.constant 0 : index
    %c0_49 = arith.constant 0 : index
    %109 = vector.load %arg16[%c0_48, %c0_49] : memref<1x32xf32, #tpu.memory_space<vmem>>, vector<1x32xf32>
    %110 = vector.broadcast %109 : vector<1x32xf32> to vector<32x32xf32>
    %111 = arith.addf %108, %110 : vector<32x32xf32>
    %c0_50 = arith.constant 0 : index
    %c0_51 = arith.constant 0 : index
    %c0_52 = arith.constant 0 : index
    %112 = vector.load %arg3[%c0_50, %c0_51, %c0_52] : memref<2x1x16xf32, #tpu.memory_space<vmem>>, vector<2x1x16xf32>
    %cst_53 = arith.constant 0.000000e+00 : f32
    %113 = vector.broadcast %cst_53 : f32 to vector<2x1x16xf32>
    %114 = arith.cmpf ogt, %112, %113 : vector<2x1x16xf32>
    %cst_54 = arith.constant 0.000000e+00 : f32
    %cst_55 = arith.constant -1.000000e+09 : f32
    %115 = vector.broadcast %cst_54 : f32 to vector<2x1x16xf32>
    %116 = vector.broadcast %cst_55 : f32 to vector<2x1x16xf32>
    %117 = arith.select %114, %115, %116 : vector<2x1x16xi1>, vector<2x1x16xf32>
    %118 = vector.extract_strided_slice %99 {offsets = [0, 0], sizes = [8, 32], strides = [1, 1]} : vector<16x32xf32> to vector<8x32xf32>
    %119 = vector.shape_cast %118 : vector<8x32xf32> to vector<8x4x8xf32>
    %120 = tpu.transpose %119, [1, 0, 2] : vector<8x4x8xf32> -> vector<4x8x8xf32>
    %121 = vector.extract_strided_slice %105 {offsets = [0, 0], sizes = [16, 32], strides = [1, 1]} : vector<32x32xf32> to vector<16x32xf32>
    %122 = vector.shape_cast %121 : vector<16x32xf32> to vector<16x4x8xf32>
    %123 = tpu.transpose %122, [1, 0, 2] : vector<16x4x8xf32> -> vector<4x16x8xf32>
    %124 = vector.extract_strided_slice %111 {offsets = [0, 0], sizes = [16, 32], strides = [1, 1]} : vector<32x32xf32> to vector<16x32xf32>
    %125 = vector.shape_cast %124 : vector<16x32xf32> to vector<16x4x8xf32>
    %126 = tpu.transpose %125, [1, 0, 2] : vector<16x4x8xf32> -> vector<4x16x8xf32>
    %127 = arith.truncf %120 : vector<4x8x8xf32> to vector<4x8x8xbf16>
    %128 = arith.truncf %123 : vector<4x16x8xf32> to vector<4x16x8xbf16>
    "tpu.trace_start"() <{level = 10 : i32, message = "hqd,hkd->hqk"}> : () -> ()
    %cst_56 = arith.constant dense<0.000000e+00> : vector<4x8x16xf32>
    %129 = tpu.matmul %127, %128, %cst_56 {dimension_numbers = #tpu.dot_dimension_numbers<[2], [2], [1], [1], [0, 0, 0, 1, 1, 1], [0], [0]>} : vector<4x8x8xbf16>, vector<4x16x8xbf16>, vector<4x8x16xf32> -> vector<4x8x16xf32>
    "tpu.trace_stop"() : () -> ()
    %cst_57 = arith.constant 0.353553385 : f32
    %130 = vector.broadcast %cst_57 : f32 to vector<4x8x16xf32>
    %131 = arith.mulf %129, %130 : vector<4x8x16xf32>
    %132 = vector.extract_strided_slice %117 {offsets = [0, 0, 0], sizes = [1, 1, 16], strides = [1, 1, 1]} : vector<2x1x16xf32> to vector<1x1x16xf32>
    %133 = vector.broadcast %132 : vector<1x1x16xf32> to vector<4x8x16xf32>
    %134 = arith.addf %131, %133 : vector<4x8x16xf32>
    %cst_58 = arith.constant dense<0xFF800000> : vector<4x8xf32>
    %135 = vector.multi_reduction <maximumf>, %134, %cst_58 [2] : vector<4x8x16xf32> to vector<4x8xf32>
    %136 = vector.shape_cast %135 : vector<4x8xf32> to vector<4x8x1xf32>
    %137 = vector.broadcast %136 : vector<4x8x1xf32> to vector<4x8x16xf32>
    %138 = arith.subf %134, %137 : vector<4x8x16xf32>
    %139 = math.exp %138 : vector<4x8x16xf32>
    %cst_59 = arith.constant dense<0.000000e+00> : vector<4x8xf32>
    %140 = vector.multi_reduction <add>, %139, %cst_59 [2] : vector<4x8x16xf32> to vector<4x8xf32>
    %141 = vector.shape_cast %140 : vector<4x8xf32> to vector<4x8x1xf32>
    %142 = tpu.reciprocal %141 {approx = true} : vector<4x8x1xf32> -> vector<4x8x1xf32>
    %143 = vector.broadcast %142 : vector<4x8x1xf32> to vector<4x8x16xf32>
    %144 = arith.mulf %139, %143 : vector<4x8x16xf32>
    %c0_60 = arith.constant 0 : index
    %c0_61 = arith.constant 0 : index
    %c0_62 = arith.constant 0 : index
    %c0_63 = arith.constant 0 : index
    %145 = vector.load %arg28[%c0_60, %c0_61, %c0_62, %c0_63] : memref<2x4x8x16xf32, #tpu.memory_space<vmem>>, vector<1x4x8x16xf32>
    %146 = vector.shape_cast %145 : vector<1x4x8x16xf32> to vector<4x8x16xf32>
    %147 = vector.shape_cast %144 : vector<4x8x16xf32> to vector<1x4x8x16xf32>
    tpu.vector_store %arg28[%c0_60, %c0_61, %c0_62, %c0_63], %147 {strides = array<i32>} : memref<2x4x8x16xf32, #tpu.memory_space<vmem>>, vector<1x4x8x16xf32>,
    %148 = arith.truncf %144 : vector<4x8x16xf32> to vector<4x8x16xbf16>
    %149 = arith.truncf %126 : vector<4x16x8xf32> to vector<4x16x8xbf16>
    "tpu.trace_start"() <{level = 10 : i32, message = "hqk,hkd->hqd"}> : () -> ()
    %cst_64 = arith.constant dense<0.000000e+00> : vector<4x8x8xf32>
    %150 = tpu.matmul %148, %149, %cst_64 {dimension_numbers = #tpu.dot_dimension_numbers<[2], [1], [1], [2], [0, 0, 0, 1, 1, 2], [0], [0]>} : vector<4x8x16xbf16>, vector<4x16x8xbf16>, vector<4x8x8xf32> -> vector<4x8x8xf32>
    "tpu.trace_stop"() : () -> ()
    %151 = tpu.transpose %150, [1, 0, 2] : vector<4x8x8xf32> -> vector<8x4x8xf32>
    %152 = vector.shape_cast %151 : vector<8x4x8xf32> to vector<8x32xf32>
    %153 = vector.extract_strided_slice %99 {offsets = [8, 0], sizes = [8, 32], strides = [1, 1]} : vector<16x32xf32> to vector<8x32xf32>
    %154 = vector.shape_cast %153 : vector<8x32xf32> to vector<8x4x8xf32>
    %155 = tpu.transpose %154, [1, 0, 2] : vector<8x4x8xf32> -> vector<4x8x8xf32>
    %156 = vector.extract_strided_slice %105 {offsets = [16, 0], sizes = [16, 32], strides = [1, 1]} : vector<32x32xf32> to vector<16x32xf32>
    %157 = vector.shape_cast %156 : vector<16x32xf32> to vector<16x4x8xf32>
    %158 = tpu.transpose %157, [1, 0, 2] : vector<16x4x8xf32> -> vector<4x16x8xf32>
    %159 = vector.extract_strided_slice %111 {offsets = [16, 0], sizes = [16, 32], strides = [1, 1]} : vector<32x32xf32> to vector<16x32xf32>
    %160 = vector.shape_cast %159 : vector<16x32xf32> to vector<16x4x8xf32>
    %161 = tpu.transpose %160, [1, 0, 2] : vector<16x4x8xf32> -> vector<4x16x8xf32>
    %162 = arith.truncf %155 : vector<4x8x8xf32> to vector<4x8x8xbf16>
    %163 = arith.truncf %158 : vector<4x16x8xf32> to vector<4x16x8xbf16>
    "tpu.trace_start"() <{level = 10 : i32, message = "hqd,hkd->hqk"}> : () -> ()
    %cst_65 = arith.constant dense<0.000000e+00> : vector<4x8x16xf32>
    %164 = tpu.matmul %162, %163, %cst_65 {dimension_numbers = #tpu.dot_dimension_numbers<[2], [2], [1], [1], [0, 0, 0, 1, 1, 1], [0], [0]>} : vector<4x8x8xbf16>, vector<4x16x8xbf16>, vector<4x8x16xf32> -> vector<4x8x16xf32>
    "tpu.trace_stop"() : () -> ()
    %cst_66 = arith.constant 0.353553385 : f32
    %165 = vector.broadcast %cst_66 : f32 to vector<4x8x16xf32>
    %166 = arith.mulf %164, %165 : vector<4x8x16xf32>
    %167 = vector.extract_strided_slice %117 {offsets = [1, 0, 0], sizes = [1, 1, 16], strides = [1, 1, 1]} : vector<2x1x16xf32> to vector<1x1x16xf32>
    %168 = vector.broadcast %167 : vector<1x1x16xf32> to vector<4x8x16xf32>
    %169 = arith.addf %166, %168 : vector<4x8x16xf32>
    %cst_67 = arith.constant dense<0xFF800000> : vector<4x8xf32>
    %170 = vector.multi_reduction <maximumf>, %169, %cst_67 [2] : vector<4x8x16xf32> to vector<4x8xf32>
    %171 = vector.shape_cast %170 : vector<4x8xf32> to vector<4x8x1xf32>
    %172 = vector.broadcast %171 : vector<4x8x1xf32> to vector<4x8x16xf32>
    %173 = arith.subf %169, %172 : vector<4x8x16xf32>
    %174 = math.exp %173 : vector<4x8x16xf32>
    %cst_68 = arith.constant dense<0.000000e+00> : vector<4x8xf32>
    %175 = vector.multi_reduction <add>, %174, %cst_68 [2] : vector<4x8x16xf32> to vector<4x8xf32>
    %176 = vector.shape_cast %175 : vector<4x8xf32> to vector<4x8x1xf32>
    %177 = tpu.reciprocal %176 {approx = true} : vector<4x8x1xf32> -> vector<4x8x1xf32>
    %178 = vector.broadcast %177 : vector<4x8x1xf32> to vector<4x8x16xf32>
    %179 = arith.mulf %174, %178 : vector<4x8x16xf32>
    %c1 = arith.constant 1 : index
    %c0_69 = arith.constant 0 : index
    %c0_70 = arith.constant 0 : index
    %c0_71 = arith.constant 0 : index
    %180 = vector.load %arg28[%c1, %c0_69, %c0_70, %c0_71] : memref<2x4x8x16xf32, #tpu.memory_space<vmem>>, vector<1x4x8x16xf32>
    %181 = vector.shape_cast %180 : vector<1x4x8x16xf32> to vector<4x8x16xf32>
    %182 = vector.shape_cast %179 : vector<4x8x16xf32> to vector<1x4x8x16xf32>
    tpu.vector_store %arg28[%c1, %c0_69, %c0_70, %c0_71], %182 {strides = array<i32>} : memref<2x4x8x16xf32, #tpu.memory_space<vmem>>, vector<1x4x8x16xf32>,
    %183 = arith.truncf %179 : vector<4x8x16xf32> to vector<4x8x16xbf16>
    %184 = arith.truncf %161 : vector<4x16x8xf32> to vector<4x16x8xbf16>
    "tpu.trace_start"() <{level = 10 : i32, message = "hqk,hkd->hqd"}> : () -> ()
    %cst_72 = arith.constant dense<0.000000e+00> : vector<4x8x8xf32>
    %185 = tpu.matmul %183, %184, %cst_72 {dimension_numbers = #tpu.dot_dimension_numbers<[2], [1], [1], [2], [0, 0, 0, 1, 1, 2], [0], [0]>} : vector<4x8x16xbf16>, vector<4x16x8xbf16>, vector<4x8x8xf32> -> vector<4x8x8xf32>
    "tpu.trace_stop"() : () -> ()
    %186 = tpu.transpose %185, [1, 0, 2] : vector<4x8x8xf32> -> vector<8x4x8xf32>
    %187 = vector.shape_cast %186 : vector<8x4x8xf32> to vector<8x32xf32>
    %188 = tpu.concatenate %152, %187 in 0 : vector<8x32xf32>, vector<8x32xf32> -> vector<16x32xf32>
    %189 = arith.truncf %188 : vector<16x32xf32> to vector<16x32xbf16>
    %c0_73 = arith.constant 0 : index
    %c0_74 = arith.constant 0 : index
    %190 = vector.load %arg17[%c0_73, %c0_74] : memref<32x32xbf16, #tpu.memory_space<vmem>>, vector<32x32xbf16>
    %cst_75 = arith.constant dense<0.000000e+00> : vector<16x32xf32>
    %191 = tpu.matmul %189, %190, %cst_75 {dimension_numbers = #tpu.dot_dimension_numbers<[1], [0], [0], [1], [0, 0, 1, 1], [], []>} : vector<16x32xbf16>, vector<32x32xbf16>, vector<16x32xf32> -> vector<16x32xf32>
    %c0_76 = arith.constant 0 : index
    %c0_77 = arith.constant 0 : index
    %192 = vector.load %arg18[%c0_76, %c0_77] : memref<1x32xf32, #tpu.memory_space<vmem>>, vector<1x32xf32>
    %193 = vector.broadcast %192 : vector<1x32xf32> to vector<16x32xf32>
    %194 = arith.addf %191, %193 : vector<16x32xf32>
    %195 = arith.addf %91, %194 : vector<16x32xf32>
    %c0_78 = arith.constant 0 : index
    %c0_79 = arith.constant 0 : index
    %196 = vector.load %arg19[%c0_78, %c0_79] : memref<1x32xf32, #tpu.memory_space<vmem>>, vector<1x32xf32>
    %c0_80 = arith.constant 0 : index
    %c0_81 = arith.constant 0 : index
    %197 = vector.load %arg20[%c0_80, %c0_81] : memref<1x32xf32, #tpu.memory_space<vmem>>, vector<1x32xf32>
    %cst_82 = arith.constant dense<0.000000e+00> : vector<16xf32>
    %198 = vector.multi_reduction <add>, %195, %cst_82 [1] : vector<16x32xf32> to vector<16xf32>
    %199 = vector.shape_cast %198 : vector<16xf32> to vector<16x1xf32>
    %cst_83 = arith.constant 3.200000e+01 : f32
    %200 = vector.broadcast %cst_83 : f32 to vector<16x1xf32>
    %201 = arith.divf %199, %200 : vector<16x1xf32>
    %202 = arith.mulf %195, %195 : vector<16x32xf32>
    %cst_84 = arith.constant dense<0.000000e+00> : vector<16xf32>
    %203 = vector.multi_reduction <add>, %202, %cst_84 [1] : vector<16x32xf32> to vector<16xf32>
    %204 = vector.shape_cast %203 : vector<16xf32> to vector<16x1xf32>
    %cst_85 = arith.constant 3.200000e+01 : f32
    %205 = vector.broadcast %cst_85 : f32 to vector<16x1xf32>
    %206 = arith.divf %204, %205 : vector<16x1xf32>
    %207 = arith.mulf %201, %201 : vector<16x1xf32>
    %208 = arith.subf %206, %207 : vector<16x1xf32>
    %cst_86 = arith.constant 0.000000e+00 : f32
    %209 = vector.broadcast %cst_86 : f32 to vector<16x1xf32>
    %210 = arith.maximumf %208, %209 : vector<16x1xf32>
    %211 = vector.broadcast %201 : vector<16x1xf32> to vector<16x32xf32>
    %212 = arith.subf %195, %211 : vector<16x32xf32>
    %cst_87 = arith.constant 9.99999974E-6 : f32
    %213 = vector.broadcast %cst_87 : f32 to vector<16x1xf32>
    %214 = arith.addf %210, %213 : vector<16x1xf32>
    %215 = math.rsqrt %214 : vector<16x1xf32>
    %216 = vector.broadcast %215 : vector<16x1xf32> to vector<16x32xf32>
    %217 = arith.mulf %212, %216 : vector<16x32xf32>
    %218 = vector.broadcast %196 : vector<1x32xf32> to vector<16x32xf32>
    %219 = arith.mulf %217, %218 : vector<16x32xf32>
    %220 = vector.broadcast %197 : vector<1x32xf32> to vector<16x32xf32>
    %221 = arith.addf %219, %220 : vector<16x32xf32>
    %222 = arith.truncf %221 : vector<16x32xf32> to vector<16x32xbf16>
    %c0_88 = arith.constant 0 : index
    %c0_89 = arith.constant 0 : index
    %223 = vector.load %arg21[%c0_88, %c0_89] : memref<32x64xbf16, #tpu.memory_space<vmem>>, vector<32x64xbf16>
    %cst_90 = arith.constant dense<0.000000e+00> : vector<16x64xf32>
    %224 = tpu.matmul %222, %223, %cst_90 {dimension_numbers = #tpu.dot_dimension_numbers<[1], [0], [0], [1], [0, 0, 1, 1], [], []>} : vector<16x32xbf16>, vector<32x64xbf16>, vector<16x64xf32> -> vector<16x64xf32>
    %c0_91 = arith.constant 0 : index
    %c0_92 = arith.constant 0 : index
    %225 = vector.load %arg22[%c0_91, %c0_92] : memref<1x64xf32, #tpu.memory_space<vmem>>, vector<1x64xf32>
    %226 = vector.broadcast %225 : vector<1x64xf32> to vector<16x64xf32>
    %227 = arith.addf %224, %226 : vector<16x64xf32>
    %cst_93 = arith.constant 0.000000e+00 : f32
    %228 = vector.broadcast %cst_93 : f32 to vector<16x64xf32>
    %229 = arith.maximumf %227, %228 : vector<16x64xf32>
    %230 = arith.truncf %229 : vector<16x64xf32> to vector<16x64xbf16>
    %c0_94 = arith.constant 0 : index
    %c0_95 = arith.constant 0 : index
    %231 = vector.load %arg23[%c0_94, %c0_95] : memref<64x32xbf16, #tpu.memory_space<vmem>>, vector<64x32xbf16>
    %cst_96 = arith.constant dense<0.000000e+00> : vector<16x32xf32>
    %232 = tpu.matmul %230, %231, %cst_96 {dimension_numbers = #tpu.dot_dimension_numbers<[1], [0], [0], [1], [0, 0, 1, 1], [], []>} : vector<16x64xbf16>, vector<64x32xbf16>, vector<16x32xf32> -> vector<16x32xf32>
    %c0_97 = arith.constant 0 : index
    %c0_98 = arith.constant 0 : index
    %233 = vector.load %arg24[%c0_97, %c0_98] : memref<1x32xf32, #tpu.memory_space<vmem>>, vector<1x32xf32>
    %234 = vector.broadcast %233 : vector<1x32xf32> to vector<16x32xf32>
    %235 = arith.addf %232, %234 : vector<16x32xf32>
    %236 = arith.addf %221, %235 : vector<16x32xf32>
    %c0_99 = arith.constant 0 : index
    %c0_100 = arith.constant 0 : index
    %237 = vector.load %arg25[%c0_99, %c0_100] : memref<1x32xf32, #tpu.memory_space<vmem>>, vector<1x32xf32>
    %c0_101 = arith.constant 0 : index
    %c0_102 = arith.constant 0 : index
    %238 = vector.load %arg26[%c0_101, %c0_102] : memref<1x32xf32, #tpu.memory_space<vmem>>, vector<1x32xf32>
    %cst_103 = arith.constant dense<0.000000e+00> : vector<16xf32>
    %239 = vector.multi_reduction <add>, %236, %cst_103 [1] : vector<16x32xf32> to vector<16xf32>
    %240 = vector.shape_cast %239 : vector<16xf32> to vector<16x1xf32>
    %cst_104 = arith.constant 3.200000e+01 : f32
    %241 = vector.broadcast %cst_104 : f32 to vector<16x1xf32>
    %242 = arith.divf %240, %241 : vector<16x1xf32>
    %243 = arith.mulf %236, %236 : vector<16x32xf32>
    %cst_105 = arith.constant dense<0.000000e+00> : vector<16xf32>
    %244 = vector.multi_reduction <add>, %243, %cst_105 [1] : vector<16x32xf32> to vector<16xf32>
    %245 = vector.shape_cast %244 : vector<16xf32> to vector<16x1xf32>
    %cst_106 = arith.constant 3.200000e+01 : f32
    %246 = vector.broadcast %cst_106 : f32 to vector<16x1xf32>
    %247 = arith.divf %245, %246 : vector<16x1xf32>
    %248 = arith.mulf %242, %242 : vector<16x1xf32>
    %249 = arith.subf %247, %248 : vector<16x1xf32>
    %cst_107 = arith.constant 0.000000e+00 : f32
    %250 = vector.broadcast %cst_107 : f32 to vector<16x1xf32>
    %251 = arith.maximumf %249, %250 : vector<16x1xf32>
    %252 = vector.broadcast %242 : vector<16x1xf32> to vector<16x32xf32>
    %253 = arith.subf %236, %252 : vector<16x32xf32>
    %cst_108 = arith.constant 9.99999974E-6 : f32
    %254 = vector.broadcast %cst_108 : f32 to vector<16x1xf32>
    %255 = arith.addf %251, %254 : vector<16x1xf32>
    %256 = math.rsqrt %255 : vector<16x1xf32>
    %257 = vector.broadcast %256 : vector<16x1xf32> to vector<16x32xf32>
    %258 = arith.mulf %253, %257 : vector<16x32xf32>
    %259 = vector.broadcast %237 : vector<1x32xf32> to vector<16x32xf32>
    %260 = arith.mulf %258, %259 : vector<16x32xf32>
    %261 = vector.broadcast %238 : vector<1x32xf32> to vector<16x32xf32>
    %262 = arith.addf %260, %261 : vector<16x32xf32>
    %263 = vector.shape_cast %262 : vector<16x32xf32> to vector<2x8x32xf32>
    %c0_109 = arith.constant 0 : index
    %c0_110 = arith.constant 0 : index
    %c0_111 = arith.constant 0 : index
    %264 = vector.load %arg27[%c0_109, %c0_110, %c0_111] : memref<2x8x32xf32, #tpu.memory_space<vmem>>, vector<2x8x32xf32>
    tpu.vector_store %arg27[%c0_109, %c0_110, %c0_111], %263 {strides = array<i32>} : memref<2x8x32xf32, #tpu.memory_space<vmem>>, vector<2x8x32xf32>,
    return
  }
  func.func @transform_0(%arg0: i32) -> (i32, i32, i32) {
    %c0_i32 = arith.constant 0 : i32
    %c0_i32_0 = arith.constant 0 : i32
    %c0_i32_1 = arith.constant 0 : i32
    return %arg0, %c0_i32, %c0_i32_0 : i32, i32, i32
  }
  func.func @transform_1(%arg0: i32) -> (i32, i32, i32) {
    %c0_i32 = arith.constant 0 : i32
    %c0_i32_0 = arith.constant 0 : i32
    %c0_i32_1 = arith.constant 0 : i32
    return %arg0, %c0_i32, %c0_i32_0 : i32, i32, i32
  }
  func.func @transform_2(%arg0: i32) -> (i32, i32, i32) {
    %c0_i32 = arith.constant 0 : i32
    %c0_i32_0 = arith.constant 0 : i32
    %c0_i32_1 = arith.constant 0 : i32
    return %arg0, %c0_i32, %c0_i32_0 : i32, i32, i32
  }
  func.func @transform_3(%arg0: i32) -> (i32, i32) {
    %c0_i32 = arith.constant 0 : i32
    %c0_i32_0 = arith.constant 0 : i32
    %c0_i32_1 = arith.constant 0 : i32
    return %c0_i32, %c0_i32_0 : i32, i32
  }
  func.func @transform_4(%arg0: i32) -> (i32, i32) {
    %c0_i32 = arith.constant 0 : i32
    %c0_i32_0 = arith.constant 0 : i32
    %c0_i32_1 = arith.constant 0 : i32
    return %c0_i32, %c0_i32_0 : i32, i32
  }
  func.func @transform_5(%arg0: i32) -> (i32, i32) {
    %c0_i32 = arith.constant 0 : i32
    %c0_i32_0 = arith.constant 0 : i32
    %c0_i32_1 = arith.constant 0 : i32
    return %c0_i32, %c0_i32_0 : i32, i32
  }
  func.func @transform_6(%arg0: i32) -> (i32, i32) {
    %c0_i32 = arith.constant 0 : i32
    %c0_i32_0 = arith.constant 0 : i32
    %c0_i32_1 = arith.constant 0 : i32
    return %c0_i32, %c0_i32_0 : i32, i32
  }
  func.func @transform_7(%arg0: i32) -> (i32, i32) {
    %c0_i32 = arith.constant 0 : i32
    %c0_i32_0 = arith.constant 0 : i32
    %c0_i32_1 = arith.constant 0 : i32
    return %c0_i32, %c0_i32_0 : i32, i32
  }
  func.func @transform_8(%arg0: i32) -> (i32, i32) {
    %c0_i32 = arith.constant 0 : i32
    %c0_i32_0 = arith.constant 0 : i32
    %c0_i32_1 = arith.constant 0 : i32
    return %c0_i32, %c0_i32_0 : i32, i32
  }
  func.func @transform_9(%arg0: i32) -> (i32, i32) {
    %c0_i32 = arith.constant 0 : i32
    %c0_i32_0 = arith.constant 0 : i32
    %c0_i32_1 = arith.constant 0 : i32
    return %c0_i32, %c0_i32_0 : i32, i32
  }
  func.func @transform_10(%arg0: i32) -> (i32, i32) {
    %c0_i32 = arith.constant 0 : i32
    %c0_i32_0 = arith.constant 0 : i32
    %c0_i32_1 = arith.constant 0 : i32
    return %c0_i32, %c0_i32_0 : i32, i32
  }
  func.func @transform_11(%arg0: i32) -> (i32, i32) {
    %c0_i32 = arith.constant 0 : i32
    %c0_i32_0 = arith.constant 0 : i32
    %c0_i32_1 = arith.constant 0 : i32
    return %c0_i32, %c0_i32_0 : i32, i32
  }
  func.func @transform_12(%arg0: i32) -> (i32, i32) {
    %c0_i32 = arith.constant 0 : i32
    %c0_i32_0 = arith.constant 0 : i32
    %c0_i32_1 = arith.constant 0 : i32
    return %c0_i32, %c0_i32_0 : i32, i32
  }
  func.func @transform_13(%arg0: i32) -> (i32, i32) {
    %c0_i32 = arith.constant 0 : i32
    %c0_i32_0 = arith.constant 0 : i32
    %c0_i32_1 = arith.constant 0 : i32
    return %c0_i32, %c0_i32_0 : i32, i32
  }
  func.func @transform_14(%arg0: i32) -> (i32, i32) {
    %c0_i32 = arith.constant 0 : i32
    %c0_i32_0 = arith.constant 0 : i32
    %c0_i32_1 = arith.constant 0 : i32
    return %c0_i32, %c0_i32_0 : i32, i32
  }
  func.func @transform_15(%arg0: i32) -> (i32, i32) {
    %c0_i32 = arith.constant 0 : i32
    %c0_i32_0 = arith.constant 0 : i32
    %c0_i32_1 = arith.constant 0 : i32
    return %c0_i32, %c0_i32_0 : i32, i32
  }
  func.func @transform_16(%arg0: i32) -> (i32, i32) {
    %c0_i32 = arith.constant 0 : i32
    %c0_i32_0 = arith.constant 0 : i32
    %c0_i32_1 = arith.constant 0 : i32
    return %c0_i32, %c0_i32_0 : i32, i32
  }
  func.func @transform_17(%arg0: i32) -> (i32, i32) {
    %c0_i32 = arith.constant 0 : i32
    %c0_i32_0 = arith.constant 0 : i32
    %c0_i32_1 = arith.constant 0 : i32
    return %c0_i32, %c0_i32_0 : i32, i32
  }
  func.func @transform_18(%arg0: i32) -> (i32, i32) {
    %c0_i32 = arith.constant 0 : i32
    %c0_i32_0 = arith.constant 0 : i32
    %c0_i32_1 = arith.constant 0 : i32
    return %c0_i32, %c0_i32_0 : i32, i32
  }
  func.func @transform_19(%arg0: i32) -> (i32, i32) {
    %c0_i32 = arith.constant 0 : i32
    %c0_i32_0 = arith.constant 0 : i32
    %c0_i32_1 = arith.constant 0 : i32
    return %c0_i32, %c0_i32_0 : i32, i32
  }
  func.func @transform_20(%arg0: i32) -> (i32, i32) {
    %c0_i32 = arith.constant 0 : i32
    %c0_i32_0 = arith.constant 0 : i32
    %c0_i32_1 = arith.constant 0 : i32
    return %c0_i32, %c0_i32_0 : i32, i32
  }
  func.func @transform_21(%arg0: i32) -> (i32, i32) {
    %c0_i32 = arith.constant 0 : i32
    %c0_i32_0 = arith.constant 0 : i32
    %c0_i32_1 = arith.constant 0 : i32
    return %c0_i32, %c0_i32_0 : i32, i32
  }
  func.func @transform_22(%arg0: i32) -> (i32, i32) {
    %c0_i32 = arith.constant 0 : i32
    %c0_i32_0 = arith.constant 0 : i32
    %c0_i32_1 = arith.constant 0 : i32
    return %c0_i32, %c0_i32_0 : i32, i32
  }
  func.func @transform_23(%arg0: i32) -> (i32, i32) {
    %c0_i32 = arith.constant 0 : i32
    %c0_i32_0 = arith.constant 0 : i32
    %c0_i32_1 = arith.constant 0 : i32
    return %c0_i32, %c0_i32_0 : i32, i32
  }
  func.func @transform_24(%arg0: i32) -> (i32, i32) {
    %c0_i32 = arith.constant 0 : i32
    %c0_i32_0 = arith.constant 0 : i32
    %c0_i32_1 = arith.constant 0 : i32
    return %c0_i32, %c0_i32_0 : i32, i32
  }
  func.func @transform_25(%arg0: i32) -> (i32, i32) {
    %c0_i32 = arith.constant 0 : i32
    %c0_i32_0 = arith.constant 0 : i32
    %c0_i32_1 = arith.constant 0 : i32
    return %c0_i32, %c0_i32_0 : i32, i32
  }
  func.func @transform_26(%arg0: i32) -> (i32, i32, i32) {
    %c0_i32 = arith.constant 0 : i32
    %c0_i32_0 = arith.constant 0 : i32
    %c0_i32_1 = arith.constant 0 : i32
    return %arg0, %c0_i32, %c0_i32_0 : i32, i32, i32
  }
  func.func @transform_27(%arg0: i32) -> (i32, i32, i32, i32) {
    %c0_i32 = arith.constant 0 : i32
    %c0_i32_0 = arith.constant 0 : i32
    %c0_i32_1 = arith.constant 0 : i32
    %c0_i32_2 = arith.constant 0 : i32
    return %arg0, %c0_i32, %c0_i32_0, %c0_i32_1 : i32, i32, i32, i32
  }
}

</mosaic_0001>

<llo_original>
// kernel: tpu_custom_call.1
$region0: #{tpu_custom_call.1}
  #allocation0 [shape = 'u32[]', space=smem, size = 0x4, offset = 0x4, fixed_abs, tag = 'smem constant byte address 0x4 - core index']
  #allocation1 [shape = 'u32[144,128]{1,0:T(1,128)}', space=vmem, size = 0x12000, scoped, tag = 'internal scratch']
  %s0 = inlined_call_operand.hbm [shape: f32[2,8,32], index: 0, kind: input, shape index: {}]
  %s1 = inlined_call_operand.hbm [shape: f32[2,16,32], index: 1, kind: input, shape index: {}]
  %s2 = inlined_call_operand.hbm [shape: f32[2,1,16], index: 2, kind: input, shape index: {}]
  %s3 = inlined_call_operand.hbm [shape: bf16[32,64], index: 3, kind: input, shape index: {}]
  %s4 = inlined_call_operand.hbm [shape: f32[1,64], index: 4, kind: input, shape index: {}]
  %s5 = inlined_call_operand.hbm [shape: f32[3,32], index: 5, kind: input, shape index: {}]
  %s6 = inlined_call_operand.hbm [shape: bf16[32,32], index: 6, kind: input, shape index: {}]
  %s7 = inlined_call_operand.hbm [shape: f32[1,32], index: 7, kind: input, shape index: {}]
  %s8 = inlined_call_operand.hbm [shape: f32[1,32], index: 8, kind: input, shape index: {}]
  %s9 = inlined_call_operand.hbm [shape: f32[1,32], index: 9, kind: input, shape index: {}]
  %s10 = inlined_call_operand.hbm [shape: bf16[32,32], index: 10, kind: input, shape index: {}]
  %s11 = inlined_call_operand.hbm [shape: f32[1,32], index: 11, kind: input, shape index: {}]
  %s12 = inlined_call_operand.hbm [shape: bf16[32,32], index: 12, kind: input, shape index: {}]
  %s13 = inlined_call_operand.hbm [shape: f32[1,32], index: 13, kind: input, shape index: {}]
  %s14 = inlined_call_operand.hbm [shape: bf16[32,32], index: 14, kind: input, shape index: {}]
  %s15 = inlined_call_operand.hbm [shape: f32[1,32], index: 15, kind: input, shape index: {}]
  %s16 = inlined_call_operand.hbm [shape: bf16[32,32], index: 16, kind: input, shape index: {}]
  %s17 = inlined_call_operand.hbm [shape: f32[1,32], index: 17, kind: input, shape index: {}]
  %s18 = inlined_call_operand.hbm [shape: f32[1,32], index: 18, kind: input, shape index: {}]
  %s19 = inlined_call_operand.hbm [shape: f32[1,32], index: 19, kind: input, shape index: {}]
  %s20 = inlined_call_operand.hbm [shape: bf16[32,64], index: 20, kind: input, shape index: {}]
  %s21 = inlined_call_operand.hbm [shape: f32[1,64], index: 21, kind: input, shape index: {}]
  %s22 = inlined_call_operand.hbm [shape: bf16[64,32], index: 22, kind: input, shape index: {}]
  %s23 = inlined_call_operand.hbm [shape: f32[1,32], index: 23, kind: input, shape index: {}]
  %s24 = inlined_call_operand.hbm [shape: f32[1,32], index: 24, kind: input, shape index: {}]
  %s25 = inlined_call_operand.hbm [shape: f32[1,32], index: 25, kind: input, shape index: {}]
  %s26 = inlined_call_operand.hbm [shape: f32[2,8,32], index: 26, kind: output, shape index: {0}]
  %s27 = inlined_call_operand.hbm [shape: f32[2,4,8,16], index: 27, kind: output, shape index: {1}]
  %28 = xla_tuple %s26, %s27
  %s29 = sld [smem:[#allocation0]]
  $region226: #{tpu_custom_call.1} parent=0
    _
  %s31 = ssub.s32 1, %s29
  %s32 = scalar_select 0, %s31, %s29
  $region1: #{tpu_custom_call.1} parent=0
    #allocation2 [shape = 'u8[8192]{0}', space=vmem, size = 0x2000, scoped, tag = 'input window, operand 0, single buffered']
    #allocation3 [shape = 's32[1]{0}', space=sflag, size = 0x4, scoped, tag = 'scoped memory for tpu_custom_call.1']
    #allocation4 [shape = 's32[1]{0}', space=sflag, size = 0x4, scoped, tag = 'scoped memory for tpu_custom_call.1']
    #allocation5 [shape = 'u8[16384]{0}', space=vmem, size = 0x4000, scoped, tag = 'input window, operand 1, single buffered']
    #allocation6 [shape = 's32[1]{0}', space=sflag, size = 0x4, scoped, tag = 'scoped memory for tpu_custom_call.1']
    #allocation7 [shape = 'u8[1024]{0}', space=vmem, size = 0x400, scoped, tag = 'input window, operand 2, single buffered']
    #allocation8 [shape = 'u8[8192]{0}', space=vmem, size = 0x2000, scoped, tag = 'input window, operand 3, single buffered']
    #allocation9 [shape = 's32[1]{0}', space=sflag, size = 0x4, scoped, tag = 'scoped memory for tpu_custom_call.1']
    #allocation10 [shape = 'u8[512]{0}', space=vmem, size = 0x400, scoped, tag = 'input window, operand 4, single buffered']
    #allocation11 [shape = 'u8[2048]{0}', space=vmem, size = 0x800, scoped, tag = 'input window, operand 5, single buffered']
    #allocation12 [shape = 's32[1]{0}', space=sflag, size = 0x4, scoped, tag = 'scoped memory for tpu_custom_call.1']
    #allocation13 [shape = 'u8[8192]{0}', space=vmem, size = 0x2000, scoped, tag = 'input window, operand 6, single buffered']
    #allocation14 [shape = 'u8[512]{0}', space=vmem, size = 0x400, scoped, tag = 'input window, operand 7, single buffered']
    #allocation15 [shape = 's32[1]{0}', space=sflag, size = 0x4, scoped, tag = 'scoped memory for tpu_custom_call.1']
    #allocation16 [shape = 'u8[512]{0}', space=vmem, size = 0x400, scoped, tag = 'input window, operand 8, single buffered']
    #allocation17 [shape = 'u8[512]{0}', space=vmem, size = 0x400, scoped, tag = 'input window, operand 9, single buffered']
    #allocation18 [shape = 's32[1]{0}', space=sflag, size = 0x4, scoped, tag = 'scoped memory for tpu_custom_call.1']
    #allocation19 [shape = 'u8[8192]{0}', space=vmem, size = 0x2000, scoped, tag = 'input window, operand 10, single buffered']
    #allocation20 [shape = 'u8[512]{0}', space=vmem, size = 0x400, scoped, tag = 'input window, operand 11, single buffered']
    #allocation21 [shape = 's32[1]{0}', space=sflag, size = 0x4, scoped, tag = 'scoped memory for tpu_custom_call.1']
    #allocation22 [shape = 'u8[8192]{0}', space=vmem, size = 0x2000, scoped, tag = 'input window, operand 12, single buffered']
    #allocation23 [shape = 'u8[512]{0}', space=vmem, size = 0x400, scoped, tag = 'input window, operand 13, single buffered']
    #allocation24 [shape = 's32[1]{0}', space=sflag, size = 0x4, scoped, tag = 'scoped memory for tpu_custom_call.1']
    #allocation25 [shape = 'u8[8192]{0}', space=vmem, size = 0x2000, scoped, tag = 'input window, operand 14, single buffered']
    #allocation26 [shape = 'u8[512]{0}', space=vmem, size = 0x400, scoped, tag = 'input window, operand 15, single buffered']
    #allocation27 [shape = 's32[1]{0}', space=sflag, size = 0x4, scoped, tag = 'scoped memory for tpu_custom_call.1']
    #allocation28 [shape = 'u8[8192]{0}', space=vmem, size = 0x2000, scoped, tag = 'input window, operand 16, single buffered']
    #allocation29 [shape = 'u8[512]{0}', space=vmem, size = 0x400, scoped, tag = 'input window, operand 17, single buffered']
    #allocation30 [shape = 's32[1]{0}', space=sflag, size = 0x4, scoped, tag = 'scoped memory for tpu_custom_call.1']
    #allocation31 [shape = 'u8[512]{0}', space=vmem, size = 0x400, scoped, tag = 'input window, operand 18, single buffered']
    #allocation32 [shape = 'u8[512]{0}', space=vmem, size = 0x400, scoped, tag = 'input window, operand 19, single buffered']
    #allocation33 [shape = 's32[1]{0}', space=sflag, size = 0x4, scoped, tag = 'scoped memory for tpu_custom_call.1']
    #allocation34 [shape = 'u8[8192]{0}', space=vmem, size = 0x2000, scoped, tag = 'input window, operand 20, single buffered']
    #allocation35 [shape = 'u8[512]{0}', space=vmem, size = 0x400, scoped, tag = 'input window, operand 21, single buffered']
    #allocation36 [shape = 's32[1]{0}', space=sflag, size = 0x4, scoped, tag = 'scoped memory for tpu_custom_call.1']
    #allocation37 [shape = 'u8[16384]{0}', space=vmem, size = 0x4000, scoped, tag = 'input window, operand 22, single buffered']
    #allocation38 [shape = 'u8[512]{0}', space=vmem, size = 0x400, scoped, tag = 'input window, operand 23, single buffered']
    #allocation39 [shape = 's32[1]{0}', space=sflag, size = 0x4, scoped, tag = 'scoped memory for tpu_custom_call.1']
    #allocation40 [shape = 'u8[512]{0}', space=vmem, size = 0x400, scoped, tag = 'input window, operand 24, single buffered']
    #allocation41 [shape = 'u8[512]{0}', space=vmem, size = 0x400, scoped, tag = 'input window, operand 25, single buffered']
    #allocation42 [shape = 's32[1]{0}', space=sflag, size = 0x4, scoped, tag = 'scoped memory for tpu_custom_call.1']
    #allocation43 [shape = 'u8[8192]{0}', space=vmem, size = 0x2000, scoped, tag = 'output window, operand 0, single buffered']
    #allocation44 [shape = 'u8[32768]{0}', space=vmem, size = 0x8000, scoped, tag = 'output window, operand 1, single buffered']
    #allocation45 [shape = 's32[1]{0}', space=sflag, size = 0x4, scoped, tag = 'scoped memory for tpu_custom_call.1']
    %33 = vsyncpa [#allocation3], 0
    %34 = vsyncpa [#allocation6], 0
    %35 = vsyncpa [#allocation9], 0
    %36 = vsyncpa [#allocation12], 0
    %37 = vsyncpa [#allocation15], 0
    %38 = vsyncpa [#allocation18], 0
    %39 = vsyncpa [#allocation21], 0
    %40 = vsyncpa [#allocation24], 0
    %41 = vsyncpa [#allocation27], 0
    %42 = vsyncpa [#allocation30], 0
    %43 = vsyncpa [#allocation33], 0
    %44 = vsyncpa [#allocation36], 0
    %45 = vsyncpa [#allocation39], 0
    %46 = vsyncpa [#allocation42], 0
    %47 = vsyncpa [#allocation4], 0
    %48 = vsyncpa [#allocation45], 0
    // Predicated region
    $region2: #{tpu_custom_call.1} parent=1 // pred_check
      _
    $region3: #{tpu_custom_call.1} parent=1 // pred_check_branch
      %50 = sbr.rel (0) target = $region5
    $region4: #{tpu_custom_call.1} parent=1 // pred_region
      %s52 = ssub.s32 256, 256
      %53 = vsyncadd [#allocation3], %s52
      %s54 = sshll.u32 [#allocation2], 4
      %s55 = int_to_ptr.vmem [resolvable:$true] %s54
      %60 = dma.hbm_to_vmem [thread:$0]  %s0, 256, %s55, [#allocation3], 128, 128, 8
    $region5: #{tpu_custom_call.1} parent=1 // pred_fallthru
      _
    // Predicated region
    $region6: #{tpu_custom_call.1} parent=1 // pred_check
      _
    $region7: #{tpu_custom_call.1} parent=1 // pred_check_branch
      %62 = sbr.rel (0) target = $region9
    $region8: #{tpu_custom_call.1} parent=1 // pred_region
      %s64 = ssub.s32 512, 512
      %65 = vsyncadd [#allocation6], %s64
      %s66 = sshll.u32 [#allocation5], 4
      %s67 = int_to_ptr.vmem [resolvable:$true] %s66
      %72 = dma.hbm_to_vmem [thread:$0]  %s1, 512, %s67, [#allocation6], 128, 128, 8
    $region9: #{tpu_custom_call.1} parent=1 // pred_fallthru
      _
    // Predicated region
    $region10: #{tpu_custom_call.1} parent=1 // pred_check
      _
    $region11: #{tpu_custom_call.1} parent=1 // pred_check_branch
      %74 = sbr.rel (0) target = $region13
    $region12: #{tpu_custom_call.1} parent=1 // pred_region
      %s76 = ssub.s32 32, 32
      %77 = vsyncadd [#allocation6], %s76
      %s78 = sshll.u32 [#allocation7], 4
      %s79 = int_to_ptr.vmem [resolvable:$true] %s78
      %84 = dma.hbm_to_vmem [thread:$0]  %s2, 32, %s79, [#allocation6], 16, 16, 1
    $region13: #{tpu_custom_call.1} parent=1 // pred_fallthru
      _
    // Predicated region
    $region14: #{tpu_custom_call.1} parent=1 // pred_check
      _
    $region15: #{tpu_custom_call.1} parent=1 // pred_check_branch
      %86 = sbr.rel (0) target = $region17
    $region16: #{tpu_custom_call.1} parent=1 // pred_region
      %s88 = ssub.s32 256, 256
      %89 = vsyncadd [#allocation9], %s88
      %s90 = sshll.u32 [#allocation8], 4
      %s91 = int_to_ptr.vmem [resolvable:$true] %s90
      %96 = dma.hbm_to_vmem [thread:$0]  %s3, 256, %s91, [#allocation9], 64, 64, 4
    $region17: #{tpu_custom_call.1} parent=1 // pred_fallthru
      _
    // Predicated region
    $region18: #{tpu_custom_call.1} parent=1 // pred_check
      _
    $region19: #{tpu_custom_call.1} parent=1 // pred_check_branch
      %98 = sbr.rel (0) target = $region21
    $region20: #{tpu_custom_call.1} parent=1 // pred_region
      %s100 = ssub.s32 16, 16
      %101 = vsyncadd [#allocation9], %s100
      %s103 = sshll.u32 [#allocation10], 4
      %s104 = int_to_ptr.vmem [resolvable:$true] %s103
      %106 = dma.hbm_to_vmem [thread:$0]  %s4, 16, %s104, [#allocation9]
    $region21: #{tpu_custom_call.1} parent=1 // pred_fallthru
      _
    // Predicated region
    $region22: #{tpu_custom_call.1} parent=1 // pred_check
      _
    $region23: #{tpu_custom_call.1} parent=1 // pred_check_branch
      %108 = sbr.rel (0) target = $region25
    $region24: #{tpu_custom_call.1} parent=1 // pred_region
      %s110 = ssub.s32 64, 64
      %111 = vsyncadd [#allocation12], %s110
      %s113 = sshll.u32 [#allocation11], 4
      %s114 = int_to_ptr.vmem [resolvable:$true] %s113
      %116 = dma.hbm_to_vmem [thread:$0]  %s5, 64, %s114, [#allocation12]
    $region25: #{tpu_custom_call.1} parent=1 // pred_fallthru
      _
    // Predicated region
    $region26: #{tpu_custom_call.1} parent=1 // pred_check
      _
    $region27: #{tpu_custom_call.1} parent=1 // pred_check_branch
      %118 = sbr.rel (0) target = $region29
    $region28: #{tpu_custom_call.1} parent=1 // pred_region
      %s120 = ssub.s32 256, 256
      %121 = vsyncadd [#allocation12], %s120
      %s122 = sshll.u32 [#allocation13], 4
      %s123 = int_to_ptr.vmem [resolvable:$true] %s122
      %128 = dma.hbm_to_vmem [thread:$0]  %s6, 256, %s123, [#allocation12], 64, 64, 4
    $region29: #{tpu_custom_call.1} parent=1 // pred_fallthru
      _
    // Predicated region
    $region30: #{tpu_custom_call.1} parent=1 // pred_check
      _
    $region31: #{tpu_custom_call.1} parent=1 // pred_check_branch
      %130 = sbr.rel (0) target = $region33
    $region32: #{tpu_custom_call.1} parent=1 // pred_region
      %s132 = ssub.s32 16, 16
      %133 = vsyncadd [#allocation15], %s132
      %s135 = sshll.u32 [#allocation14], 4
      %s136 = int_to_ptr.vmem [resolvable:$true] %s135
      %138 = dma.hbm_to_vmem [thread:$0]  %s7, 16, %s136, [#allocation15]
    $region33: #{tpu_custom_call.1} parent=1 // pred_fallthru
      _
    // Predicated region
    $region34: #{tpu_custom_call.1} parent=1 // pred_check
      _
    $region35: #{tpu_custom_call.1} parent=1 // pred_check_branch
      %140 = sbr.rel (0) target = $region37
    $region36: #{tpu_custom_call.1} parent=1 // pred_region
      %s142 = ssub.s32 16, 16
      %143 = vsyncadd [#allocation15], %s142
      %s145 = sshll.u32 [#allocation16], 4
      %s146 = int_to_ptr.vmem [resolvable:$true] %s145
      %148 = dma.hbm_to_vmem [thread:$0]  %s8, 16, %s146, [#allocation15]
    $region37: #{tpu_custom_call.1} parent=1 // pred_fallthru
      _
    // Predicated region
    $region38: #{tpu_custom_call.1} parent=1 // pred_check
      _
    $region39: #{tpu_custom_call.1} parent=1 // pred_check_branch
      %150 = sbr.rel (0) target = $region41
    $region40: #{tpu_custom_call.1} parent=1 // pred_region
      %s152 = ssub.s32 16, 16
      %153 = vsyncadd [#allocation18], %s152
      %s155 = sshll.u32 [#allocation17], 4
      %s156 = int_to_ptr.vmem [resolvable:$true] %s155
      %158 = dma.hbm_to_vmem [thread:$0]  %s9, 16, %s156, [#allocation18]
    $region41: #{tpu_custom_call.1} parent=1 // pred_fallthru
      _
    // Predicated region
    $region42: #{tpu_custom_call.1} parent=1 // pred_check
      _
    $region43: #{tpu_custom_call.1} parent=1 // pred_check_branch
      %160 = sbr.rel (0) target = $region45
    $region44: #{tpu_custom_call.1} parent=1 // pred_region
      %s162 = ssub.s32 256, 256
      %163 = vsyncadd [#allocation18], %s162
      %s164 = sshll.u32 [#allocation19], 4
      %s165 = int_to_ptr.vmem [resolvable:$true] %s164
      %170 = dma.hbm_to_vmem [thread:$0]  %s10, 256, %s165, [#allocation18], 64, 64, 4
    $region45: #{tpu_custom_call.1} parent=1 // pred_fallthru
      _
    // Predicated region
    $region46: #{tpu_custom_call.1} parent=1 // pred_check
      _
    $region47: #{tpu_custom_call.1} parent=1 // pred_check_branch
      %172 = sbr.rel (0) target = $region49
    $region48: #{tpu_custom_call.1} parent=1 // pred_region
      %s174 = ssub.s32 16, 16
      %175 = vsyncadd [#allocation21], %s174
      %s177 = sshll.u32 [#allocation20], 4
      %s178 = int_to_ptr.vmem [resolvable:$true] %s177
      %180 = dma.hbm_to_vmem [thread:$0]  %s11, 16, %s178, [#allocation21]
    $region49: #{tpu_custom_call.1} parent=1 // pred_fallthru
      _
    // Predicated region
    $region50: #{tpu_custom_call.1} parent=1 // pred_check
      _
    $region51: #{tpu_custom_call.1} parent=1 // pred_check_branch
      %182 = sbr.rel (0) target = $region53
    $region52: #{tpu_custom_call.1} parent=1 // pred_region
      %s184 = ssub.s32 256, 256
      %185 = vsyncadd [#allocation21], %s184
      %s186 = sshll.u32 [#allocation22], 4
      %s187 = int_to_ptr.vmem [resolvable:$true] %s186
      %192 = dma.hbm_to_vmem [thread:$0]  %s12, 256, %s187, [#allocation21], 64, 64, 4
    $region53: #{tpu_custom_call.1} parent=1 // pred_fallthru
      _
    // Predicated region
    $region54: #{tpu_custom_call.1} parent=1 // pred_check
      _
    $region55: #{tpu_custom_call.1} parent=1 // pred_check_branch
      %194 = sbr.rel (0) target = $region57
    $region56: #{tpu_custom_call.1} parent=1 // pred_region
      %s196 = ssub.s32 16, 16
      %197 = vsyncadd [#allocation24], %s196
      %s199 = sshll.u32 [#allocation23], 4
      %s200 = int_to_ptr.vmem [resolvable:$true] %s199
      %202 = dma.hbm_to_vmem [thread:$0]  %s13, 16, %s200, [#allocation24]
    $region57: #{tpu_custom_call.1} parent=1 // pred_fallthru
      _
    // Predicated region
    $region58: #{tpu_custom_call.1} parent=1 // pred_check
      _
    $region59: #{tpu_custom_call.1} parent=1 // pred_check_branch
      %204 = sbr.rel (0) target = $region61
    $region60: #{tpu_custom_call.1} parent=1 // pred_region
      %s206 = ssub.s32 256, 256
      %207 = vsyncadd [#allocation24], %s206
      %s208 = sshll.u32 [#allocation25], 4
      %s209 = int_to_ptr.vmem [resolvable:$true] %s208
      %214 = dma.hbm_to_vmem [thread:$0]  %s14, 256, %s209, [#allocation24], 64, 64, 4
    $region61: #{tpu_custom_call.1} parent=1 // pred_fallthru
      _
    // Predicated region
    $region62: #{tpu_custom_call.1} parent=1 // pred_check
      _
    $region63: #{tpu_custom_call.1} parent=1 // pred_check_branch
      %216 = sbr.rel (0) target = $region65
    $region64: #{tpu_custom_call.1} parent=1 // pred_region
      %s218 = ssub.s32 16, 16
      %219 = vsyncadd [#allocation27], %s218
      %s221 = sshll.u32 [#allocation26], 4
      %s222 = int_to_ptr.vmem [resolvable:$true] %s221
      %224 = dma.hbm_to_vmem [thread:$0]  %s15, 16, %s222, [#allocation27]
    $region65: #{tpu_custom_call.1} parent=1 // pred_fallthru
      _
    // Predicated region
    $region66: #{tpu_custom_call.1} parent=1 // pred_check
      _
    $region67: #{tpu_custom_call.1} parent=1 // pred_check_branch
      %226 = sbr.rel (0) target = $region69
    $region68: #{tpu_custom_call.1} parent=1 // pred_region
      %s228 = ssub.s32 256, 256
      %229 = vsyncadd [#allocation27], %s228
      %s230 = sshll.u32 [#allocation28], 4
      %s231 = int_to_ptr.vmem [resolvable:$true] %s230
      %236 = dma.hbm_to_vmem [thread:$0]  %s16, 256, %s231, [#allocation27], 64, 64, 4
    $region69: #{tpu_custom_call.1} parent=1 // pred_fallthru
      _
    // Predicated region
    $region70: #{tpu_custom_call.1} parent=1 // pred_check
      _
    $region71: #{tpu_custom_call.1} parent=1 // pred_check_branch
      %238 = sbr.rel (0) target = $region73
    $region72: #{tpu_custom_call.1} parent=1 // pred_region
      %s240 = ssub.s32 16, 16
      %241 = vsyncadd [#allocation30], %s240
      %s243 = sshll.u32 [#allocation29], 4
      %s244 = int_to_ptr.vmem [resolvable:$true] %s243
      %246 = dma.hbm_to_vmem [thread:$0]  %s17, 16, %s244, [#allocation30]
    $region73: #{tpu_custom_call.1} parent=1 // pred_fallthru
      _
    // Predicated region
    $region74: #{tpu_custom_call.1} parent=1 // pred_check
      _
    $region75: #{tpu_custom_call.1} parent=1 // pred_check_branch
      %248 = sbr.rel (0) target = $region77
    $region76: #{tpu_custom_call.1} parent=1 // pred_region
      %s250 = ssub.s32 16, 16
      %251 = vsyncadd [#allocation30], %s250
      %s253 = sshll.u32 [#allocation31], 4
      %s254 = int_to_ptr.vmem [resolvable:$true] %s253
      %256 = dma.hbm_to_vmem [thread:$0]  %s18, 16, %s254, [#allocation30]
    $region77: #{tpu_custom_call.1} parent=1 // pred_fallthru
      _
    // Predicated region
    $region78: #{tpu_custom_call.1} parent=1 // pred_check
      _
    $region79: #{tpu_custom_call.1} parent=1 // pred_check_branch
      %258 = sbr.rel (0) target = $region81
    $region80: #{tpu_custom_call.1} parent=1 // pred_region
      %s260 = ssub.s32 16, 16
      %261 = vsyncadd [#allocation33], %s260
      %s263 = sshll.u32 [#allocation32], 4
      %s264 = int_to_ptr.vmem [resolvable:$true] %s263
      %266 = dma.hbm_to_vmem [thread:$0]  %s19, 16, %s264, [#allocation33]
    $region81: #{tpu_custom_call.1} parent=1 // pred_fallthru
      _
    // Predicated region
    $region82: #{tpu_custom_call.1} parent=1 // pred_check
      _
    $region83: #{tpu_custom_call.1} parent=1 // pred_check_branch
      %268 = sbr.rel (0) target = $region85
    $region84: #{tpu_custom_call.1} parent=1 // pred_region
      %s270 = ssub.s32 256, 256
      %271 = vsyncadd [#allocation33], %s270
      %s272 = sshll.u32 [#allocation34], 4
      %s273 = int_to_ptr.vmem [resolvable:$true] %s272
      %278 = dma.hbm_to_vmem [thread:$0]  %s20, 256, %s273, [#allocation33], 64, 64, 4
    $region85: #{tpu_custom_call.1} parent=1 // pred_fallthru
      _
    // Predicated region
    $region86: #{tpu_custom_call.1} parent=1 // pred_check
      _
    $region87: #{tpu_custom_call.1} parent=1 // pred_check_branch
      %280 = sbr.rel (0) target = $region89
    $region88: #{tpu_custom_call.1} parent=1 // pred_region
      %s282 = ssub.s32 16, 16
      %283 = vsyncadd [#allocation36], %s282
      %s285 = sshll.u32 [#allocation35], 4
      %s286 = int_to_ptr.vmem [resolvable:$true] %s285
      %288 = dma.hbm_to_vmem [thread:$0]  %s21, 16, %s286, [#allocation36]
    $region89: #{tpu_custom_call.1} parent=1 // pred_fallthru
      _
    // Predicated region
    $region90: #{tpu_custom_call.1} parent=1 // pred_check
      _
    $region91: #{tpu_custom_call.1} parent=1 // pred_check_branch
      %290 = sbr.rel (0) target = $region93
    $region92: #{tpu_custom_call.1} parent=1 // pred_region
      %s292 = ssub.s32 512, 512
      %293 = vsyncadd [#allocation36], %s292
      %s294 = sshll.u32 [#allocation37], 4
      %s295 = int_to_ptr.vmem [resolvable:$true] %s294
      %300 = dma.hbm_to_vmem [thread:$0]  %s22, 512, %s295, [#allocation36], 64, 64, 4
    $region93: #{tpu_custom_call.1} parent=1 // pred_fallthru
      _
    // Predicated region
    $region94: #{tpu_custom_call.1} parent=1 // pred_check
      _
    $region95: #{tpu_custom_call.1} parent=1 // pred_check_branch
      %302 = sbr.rel (0) target = $region97
    $region96: #{tpu_custom_call.1} parent=1 // pred_region
      %s304 = ssub.s32 16, 16
      %305 = vsyncadd [#allocation39], %s304
      %s307 = sshll.u32 [#allocation38], 4
      %s308 = int_to_ptr.vmem [resolvable:$true] %s307
      %310 = dma.hbm_to_vmem [thread:$0]  %s23, 16, %s308, [#allocation39]
    $region97: #{tpu_custom_call.1} parent=1 // pred_fallthru
      _
    // Predicated region
    $region98: #{tpu_custom_call.1} parent=1 // pred_check
      _
    $region99: #{tpu_custom_call.1} parent=1 // pred_check_branch
      %312 = sbr.rel (0) target = $region101
    $region100: #{tpu_custom_call.1} parent=1 // pred_region
      %s314 = ssub.s32 16, 16
      %315 = vsyncadd [#allocation39], %s314
      %s317 = sshll.u32 [#allocation40], 4
      %s318 = int_to_ptr.vmem [resolvable:$true] %s317
      %320 = dma.hbm_to_vmem [thread:$0]  %s24, 16, %s318, [#allocation39]
    $region101: #{tpu_custom_call.1} parent=1 // pred_fallthru
      _
    // Predicated region
    $region102: #{tpu_custom_call.1} parent=1 // pred_check
      _
    $region103: #{tpu_custom_call.1} parent=1 // pred_check_branch
      %322 = sbr.rel (0) target = $region105
    $region104: #{tpu_custom_call.1} parent=1 // pred_region
      %s324 = ssub.s32 16, 16
      %325 = vsyncadd [#allocation42], %s324
      %s327 = sshll.u32 [#allocation41], 4
      %s328 = int_to_ptr.vmem [resolvable:$true] %s327
      %330 = dma.hbm_to_vmem [thread:$0]  %s25, 16, %s328, [#allocation42]
    $region105: #{tpu_custom_call.1} parent=1 // pred_fallthru
      _
    // Predicated region
    $region106: #{tpu_custom_call.1} parent=1 // pred_check
      _
    $region107: #{tpu_custom_call.1} parent=1 // pred_check_branch
      %332 = sbr.rel (0) target = $region109
    $region108: #{tpu_custom_call.1} parent=1 // pred_region
      %333 = dma.done [#allocation3], 256
    $region109: #{tpu_custom_call.1} parent=1 // pred_fallthru
      _
    // Predicated region
    $region110: #{tpu_custom_call.1} parent=1 // pred_check
      _
    $region111: #{tpu_custom_call.1} parent=1 // pred_check_branch
      %335 = sbr.rel (0) target = $region113
    $region112: #{tpu_custom_call.1} parent=1 // pred_region
      %336 = dma.done [#allocation6], 512
    $region113: #{tpu_custom_call.1} parent=1 // pred_fallthru
      _
    // Predicated region
    $region114: #{tpu_custom_call.1} parent=1 // pred_check
      _
    $region115: #{tpu_custom_call.1} parent=1 // pred_check_branch
      %338 = sbr.rel (0) target = $region117
    $region116: #{tpu_custom_call.1} parent=1 // pred_region
      %339 = dma.done [#allocation6], 32
    $region117: #{tpu_custom_call.1} parent=1 // pred_fallthru
      _
    // Predicated region
    $region118: #{tpu_custom_call.1} parent=1 // pred_check
      _
    $region119: #{tpu_custom_call.1} parent=1 // pred_check_branch
      %341 = sbr.rel (0) target = $region121
    $region120: #{tpu_custom_call.1} parent=1 // pred_region
      %342 = dma.done [#allocation9], 256
    $region121: #{tpu_custom_call.1} parent=1 // pred_fallthru
      _
    // Predicated region
    $region122: #{tpu_custom_call.1} parent=1 // pred_check
      _
    $region123: #{tpu_custom_call.1} parent=1 // pred_check_branch
      %344 = sbr.rel (0) target = $region125
    $region124: #{tpu_custom_call.1} parent=1 // pred_region
      %345 = dma.done [#allocation9], 16
    $region125: #{tpu_custom_call.1} parent=1 // pred_fallthru
      _
    // Predicated region
    $region126: #{tpu_custom_call.1} parent=1 // pred_check
      _
    $region127: #{tpu_custom_call.1} parent=1 // pred_check_branch
      %347 = sbr.rel (0) target = $region129
    $region128: #{tpu_custom_call.1} parent=1 // pred_region
      %348 = dma.done [#allocation12], 64
    $region129: #{tpu_custom_call.1} parent=1 // pred_fallthru
      _
    // Predicated region
    $region130: #{tpu_custom_call.1} parent=1 // pred_check
      _
    $region131: #{tpu_custom_call.1} parent=1 // pred_check_branch
      %350 = sbr.rel (0) target = $region133
    $region132: #{tpu_custom_call.1} parent=1 // pred_region
      %351 = dma.done [#allocation12], 256
    $region133: #{tpu_custom_call.1} parent=1 // pred_fallthru
      _
    // Predicated region
    $region134: #{tpu_custom_call.1} parent=1 // pred_check
      _
    $region135: #{tpu_custom_call.1} parent=1 // pred_check_branch
      %353 = sbr.rel (0) target = $region137
    $region136: #{tpu_custom_call.1} parent=1 // pred_region
      %354 = dma.done [#allocation15], 16
    $region137: #{tpu_custom_call.1} parent=1 // pred_fallthru
      _
    // Predicated region
    $region138: #{tpu_custom_call.1} parent=1 // pred_check
      _
    $region139: #{tpu_custom_call.1} parent=1 // pred_check_branch
      %356 = sbr.rel (0) target = $region141
    $region140: #{tpu_custom_call.1} parent=1 // pred_region
      %357 = dma.done [#allocation15], 16
    $region141: #{tpu_custom_call.1} parent=1 // pred_fallthru
      _
    // Predicated region
    $region142: #{tpu_custom_call.1} parent=1 // pred_check
      _
    $region143: #{tpu_custom_call.1} parent=1 // pred_check_branch
      %359 = sbr.rel (0) target = $region145
    $region144: #{tpu_custom_call.1} parent=1 // pred_region
      %360 = dma.done [#allocation18], 16
    $region145: #{tpu_custom_call.1} parent=1 // pred_fallthru
      _
    // Predicated region
    $region146: #{tpu_custom_call.1} parent=1 // pred_check
      _
    $region147: #{tpu_custom_call.1} parent=1 // pred_check_branch
      %362 = sbr.rel (0) target = $region149
    $region148: #{tpu_custom_call.1} parent=1 // pred_region
      %363 = dma.done [#allocation18], 256
    $region149: #{tpu_custom_call.1} parent=1 // pred_fallthru
      _
    // Predicated region
    $region150: #{tpu_custom_call.1} parent=1 // pred_check
      _
    $region151: #{tpu_custom_call.1} parent=1 // pred_check_branch
      %365 = sbr.rel (0) target = $region153
    $region152: #{tpu_custom_call.1} parent=1 // pred_region
      %366 = dma.done [#allocation21], 16
    $region153: #{tpu_custom_call.1} parent=1 // pred_fallthru
      _
    // Predicated region
    $region154: #{tpu_custom_call.1} parent=1 // pred_check
      _
    $region155: #{tpu_custom_call.1} parent=1 // pred_check_branch
      %368 = sbr.rel (0) target = $region157
    $region156: #{tpu_custom_call.1} parent=1 // pred_region
      %369 = dma.done [#allocation21], 256
    $region157: #{tpu_custom_call.1} parent=1 // pred_fallthru
      _
    // Predicated region
    $region158: #{tpu_custom_call.1} parent=1 // pred_check
      _
    $region159: #{tpu_custom_call.1} parent=1 // pred_check_branch
      %371 = sbr.rel (0) target = $region161
    $region160: #{tpu_custom_call.1} parent=1 // pred_region
      %372 = dma.done [#allocation24], 16
    $region161: #{tpu_custom_call.1} parent=1 // pred_fallthru
      _
    // Predicated region
    $region162: #{tpu_custom_call.1} parent=1 // pred_check
      _
    $region163: #{tpu_custom_call.1} parent=1 // pred_check_branch
      %374 = sbr.rel (0) target = $region165
    $region164: #{tpu_custom_call.1} parent=1 // pred_region
      %375 = dma.done [#allocation24], 256
    $region165: #{tpu_custom_call.1} parent=1 // pred_fallthru
      _
    // Predicated region
    $region166: #{tpu_custom_call.1} parent=1 // pred_check
      _
    $region167: #{tpu_custom_call.1} parent=1 // pred_check_branch
      %377 = sbr.rel (0) target = $region169
    $region168: #{tpu_custom_call.1} parent=1 // pred_region
      %378 = dma.done [#allocation27], 16
    $region169: #{tpu_custom_call.1} parent=1 // pred_fallthru
      _
    // Predicated region
    $region170: #{tpu_custom_call.1} parent=1 // pred_check
      _
    $region171: #{tpu_custom_call.1} parent=1 // pred_check_branch
      %380 = sbr.rel (0) target = $region173
    $region172: #{tpu_custom_call.1} parent=1 // pred_region
      %381 = dma.done [#allocation27], 256
    $region173: #{tpu_custom_call.1} parent=1 // pred_fallthru
      _
    // Predicated region
    $region174: #{tpu_custom_call.1} parent=1 // pred_check
      _
    $region175: #{tpu_custom_call.1} parent=1 // pred_check_branch
      %383 = sbr.rel (0) target = $region177
    $region176: #{tpu_custom_call.1} parent=1 // pred_region
      %384 = dma.done [#allocation30], 16
    $region177: #{tpu_custom_call.1} parent=1 // pred_fallthru
      _
    // Predicated region
    $region178: #{tpu_custom_call.1} parent=1 // pred_check
      _
    $region179: #{tpu_custom_call.1} parent=1 // pred_check_branch
      %386 = sbr.rel (0) target = $region181
    $region180: #{tpu_custom_call.1} parent=1 // pred_region
      %387 = dma.done [#allocation30], 16
    $region181: #{tpu_custom_call.1} parent=1 // pred_fallthru
      _
    // Predicated region
    $region182: #{tpu_custom_call.1} parent=1 // pred_check
      _
    $region183: #{tpu_custom_call.1} parent=1 // pred_check_branch
      %389 = sbr.rel (0) target = $region185
    $region184: #{tpu_custom_call.1} parent=1 // pred_region
      %390 = dma.done [#allocation33], 16
    $region185: #{tpu_custom_call.1} parent=1 // pred_fallthru
      _
    // Predicated region
    $region186: #{tpu_custom_call.1} parent=1 // pred_check
      _
    $region187: #{tpu_custom_call.1} parent=1 // pred_check_branch
      %392 = sbr.rel (0) target = $region189
    $region188: #{tpu_custom_call.1} parent=1 // pred_region
      %393 = dma.done [#allocation33], 256
    $region189: #{tpu_custom_call.1} parent=1 // pred_fallthru
      _
    // Predicated region
    $region190: #{tpu_custom_call.1} parent=1 // pred_check
      _
    $region191: #{tpu_custom_call.1} parent=1 // pred_check_branch
      %395 = sbr.rel (0) target = $region193
    $region192: #{tpu_custom_call.1} parent=1 // pred_region
      %396 = dma.done [#allocation36], 16
    $region193: #{tpu_custom_call.1} parent=1 // pred_fallthru
      _
    // Predicated region
    $region194: #{tpu_custom_call.1} parent=1 // pred_check
      _
    $region195: #{tpu_custom_call.1} parent=1 // pred_check_branch
      %398 = sbr.rel (0) target = $region197
    $region196: #{tpu_custom_call.1} parent=1 // pred_region
      %399 = dma.done [#allocation36], 512
    $region197: #{tpu_custom_call.1} parent=1 // pred_fallthru
      _
    // Predicated region
    $region198: #{tpu_custom_call.1} parent=1 // pred_check
      _
    $region199: #{tpu_custom_call.1} parent=1 // pred_check_branch
      %401 = sbr.rel (0) target = $region201
    $region200: #{tpu_custom_call.1} parent=1 // pred_region
      %402 = dma.done [#allocation39], 16
    $region201: #{tpu_custom_call.1} parent=1 // pred_fallthru
      _
    // Predicated region
    $region202: #{tpu_custom_call.1} parent=1 // pred_check
      _
    $region203: #{tpu_custom_call.1} parent=1 // pred_check_branch
      %404 = sbr.rel (0) target = $region205
    $region204: #{tpu_custom_call.1} parent=1 // pred_region
      %405 = dma.done [#allocation39], 16
    $region205: #{tpu_custom_call.1} parent=1 // pred_fallthru
      _
    // Predicated region
    $region206: #{tpu_custom_call.1} parent=1 // pred_check
      _
    $region207: #{tpu_custom_call.1} parent=1 // pred_check_branch
      %407 = sbr.rel (0) target = $region209
    $region208: #{tpu_custom_call.1} parent=1 // pred_region
      %408 = dma.done [#allocation42], 16
    $region209: #{tpu_custom_call.1} parent=1 // pred_fallthru
      _
    %v410 = vld [vmem:[#allocation2] sm:$0xff]
    %v411 = vld [vmem:[#allocation2 + $0x8] sm:$0xff]
    %v412 = vpack.c.bf16 %v411, %v410
    %v413 = vld [vmem:[#allocation8] sm:$0xf]
    %v414 = vld [vmem:[#allocation8 + $0x4] sm:$0xf]
    %v415 = vld [vmem:[#allocation8 + $0x8] sm:$0xf]
    %v416 = vld [vmem:[#allocation8 + $0xc] sm:$0xf]
    %v417 = vld [vmem:[#allocation10] sm:$0x1]
    %v419 = vlaneseq
    %v420 = vshrl.u32 %v419, 7
    %v421 = vsub.s32 0, %v420
    %v422 = vrot.slane %v417, %v421
    %v428 = vunpack.c.l.b16 %v413
    %v429 = vunpack.c.l.b16 %v414
    %v430 = vunpack.c.l.b16 %v415
    %v431 = vunpack.c.l.b16 %v416
    %v432 = vpack.c.b16 %v429, %v428
    %v433 = vpack.c.b16 %v431, %v430
    %vm436 = vcmask 261120
    %v438 = vsel %vm436, %v412, 0
    %440 = vmatprep.subr.bf16.mxu0 0
    %441 = vmatpush1.bf16.msra.mxu0 %v432
    %442 = vmatprep.subr.bf16.mxu0 0
    %443 = vmatpush1.bf16.msra.mxu0 %v433
    %444 = vmatprep.subr.bf16.mxu0 0
    %445 = vmatpush1.bf16.msra.mxu0 0
    %446 = vmatprep.subr.bf16.mxu0 0
    %447 = vmatpush1.bf16.msra.mxu0 0
    %448 = vmatprep.subr.bf16.mxu0 0
    %449 = vmatpush1.bf16.msra.mxu0 0
    %450 = vmatprep.subr.bf16.mxu0 0
    %451 = vmatpush1.bf16.msra.mxu0 0
    %452 = vmatprep.subr.bf16.mxu0 0
    %453 = vmatpush1.bf16.msra.mxu0 0
    %454 = vmatprep.subr.bf16.mxu0 0
    %455 = vmatpush1.bf16.msra.mxu0 0
    %456 = vmatprep.subr.bf16.mxu0 0
    %457 = vmatpush1.bf16.msra.mxu0 0
    %458 = vmatprep.subr.bf16.mxu0 0
    %459 = vmatpush1.bf16.msra.mxu0 0
    %460 = vmatprep.subr.bf16.mxu0 0
    %461 = vmatpush1.bf16.msra.mxu0 0
    %462 = vmatprep.subr.bf16.mxu0 0
    %463 = vmatpush1.bf16.msra.mxu0 0
    %464 = vmatprep.subr.bf16.mxu0 0
    %465 = vmatpush1.bf16.msra.mxu0 0
    %466 = vmatprep.subr.bf16.mxu0 0
    %467 = vmatpush1.bf16.msra.mxu0 0
    %468 = vmatprep.subr.bf16.mxu0 0
    %469 = vmatpush1.bf16.msra.mxu0 0
    %470 = vmatprep.subr.bf16.mxu0 0
    %471 = vmatpush1.bf16.msra.mxu0 0
    %472 = vmatprep.mubr.bf16.mxu0 0
    %473 = vmatmul.mubr.bf16.gmra.mrb[0].mxu0 %v438
    %v474 = vpop.f32.mrb[0].mxu0
    %v475 = vadd.f32 %v422, %v474
    %v476 = vpop.f32.mrb[0].mxu0
    %v477 = vpop.f32.mrb[0].mxu0
    %v478 = vadd.f32 %v422, %v477
    %v479 = vpop.f32.mrb[0].mxu0
    %480 = vdwg.mxu0
    %v481 = vxor.u32 %v475, 2147483648
    %v482 = vxor.u32 %v478, 2147483648
    %v483 = vmul.f32 %v481, 1.442695
    %v484 = vpow.pop %v483
    %v485 = vmul.f32 %v482, 1.442695
    %v486 = vpow.pop %v485
    %v487 = vadd.f32 %v484, 1.0
    %v488 = vadd.f32 %v486, 1.0
    %v489 = vrcp.pop %v487
    %v490 = vmul.f32 1.0, %v489
    %v491 = vrcp.pop %v488
    %v492 = vmul.f32 1.0, %v491
    %495 = vrot.lane.b32.xlu0 %v490, 96
    %v496 = vpop.permute.xlu0 %495
    %497 = vrot.lane.b32.xlu0 %v492, 96
    %v498 = vpop.permute.xlu0 %497
    %v501 = vmul.f32 %v475, %v496
    %v502 = vmul.f32 %v478, %v498
    %v503 = vld [vmem:[#allocation11] sm:$0x7]
    %v504 = vlaneseq
    %v505 = vshrl.u32 %v504, 7
    %v506 = vadd.s32 %v505, 8
    %vm507 = vcmp.lt.s32.totalorder %v505, 0
    %v508 = vsub.s32 0, %v505
    %v509 = vsel %vm507, %v508, %v505
    %v510 = vshrl.u32 %v509, 3
    %v511 = vand.u32 %v509, 7
    %v512 = vsub.s32 0, %v511
    %v513 = vsel %vm507, %v512, %v511
    %vm514 = vcmp.lt.s32.totalorder %v506, 0
    %v515 = vsub.s32 0, %v506
    %v516 = vsel %vm514, %v515, %v506
    %v517 = vshrl.u32 %v516, 3
    %v518 = vand.u32 %v516, 7
    %v519 = vsub.s32 0, %v518
    %v520 = vsel %vm514, %v519, %v518
    %vm521 = vcmp.ne.s32.totalorder %v513, 0
    %vm522 = vcmp.ne.s32.totalorder %v520, 0
    %vm523 = vcmp.lt.s32.totalorder %v513, 0
    %vm524 = vcmp.lt.s32.totalorder %v520, 0
    %vm525 = vmand %vm523, %vm521
    %vm526 = vmand %vm524, %vm522
    %v527 = vadd.s32 %v513, 8
    %v528 = vadd.s32 %v520, 8
    %v529 = vsel %vm525, %v527, %v513
    %v530 = vsel %vm526, %v528, %v520
    %v531 = vlaneseq
    %v532 = vshrl.u32 %v531, 7
    %v533 = vsub.s32 2, %v532
    %v534 = vrot.slane %v503, %v533
    %v535 = vmul.f32 %v501, %v534
    %v536 = vmul.f32 %v502, %v534
    %v537 = vrot.slane %v501, 7
    %v538 = vrot.slane %v502, 7
    %vm539 = vcmp.lt.s32.totalorder %v505, 1
    %v540 = vsel %vm539, %v537, %v538
    %v541 = vsel %vm539, %v538, %v537
    %vm542 = vcmp.ge.s32.totalorder %v529, 1
    %vm543 = vcmp.ge.s32.totalorder %v530, 1
    %v544 = vsel %vm542, 1, 0
    %v545 = vsel %vm543, 1, 0
    %vm546 = vcmp.eq.s32.totalorder %v544, 1
    %vm547 = vcmp.eq.s32.totalorder %v545, 1
    %v548 = vsel %vm546, %v541, 0.0
    %v549 = vsel %vm547, %v540, 0.0
    %v550 = vlaneseq
    %v551 = vshrl.u32 %v550, 7
    %v552 = vsub.s32 1, %v551
    %v553 = vrot.slane %v503, %v552
    %v554 = vmul.f32 %v548, %v553
    %v555 = vmul.f32 %v549, %v553
    %v556 = vadd.f32 %v535, %v554
    %v557 = vadd.f32 %v536, %v555
    %v558 = vrot.slane %v501, 6
    %v559 = vrot.slane %v502, 6
    %vm560 = vcmp.lt.s32.totalorder %v505, 2
    %v561 = vsel %vm560, %v558, %v559
    %v562 = vsel %vm560, %v559, %v558
    %vm563 = vcmp.ge.s32.totalorder %v529, 2
    %vm564 = vcmp.ge.s32.totalorder %v530, 2
    %v565 = vsel %vm563, 1, 0
    %v566 = vsel %vm564, 1, 0
    %vm567 = vcmp.eq.s32.totalorder %v565, 1
    %vm568 = vcmp.eq.s32.totalorder %v566, 1
    %v569 = vsel %vm567, %v562, 0.0
    %v570 = vsel %vm568, %v561, 0.0
    %v571 = vlaneseq
    %v572 = vshrl.u32 %v571, 7
    %v573 = vsub.s32 0, %v572
    %v574 = vrot.slane %v503, %v573
    %v575 = vmul.f32 %v569, %v574
    %v576 = vmul.f32 %v570, %v574
    %v577 = vadd.f32 %v556, %v575
    %v578 = vadd.f32 %v557, %v576
    %v579 = vpack.c.bf16 %v578, %v577
    %v580 = vld [vmem:[#allocation13] sm:$0xf]
    %v581 = vld [vmem:[#allocation13 + $0x4] sm:$0xf]
    %v582 = vld [vmem:[#allocation13 + $0x8] sm:$0xf]
    %v583 = vld [vmem:[#allocation13 + $0xc] sm:$0xf]
    %v584 = vld [vmem:[#allocation14] sm:$0x1]
    %v586 = vlaneseq
    %v587 = vshrl.u32 %v586, 7
    %v588 = vsub.s32 0, %v587
    %v589 = vrot.slane %v584, %v588
    %v595 = vunpack.c.l.b16 %v580
    %v596 = vunpack.c.l.b16 %v581
    %v597 = vunpack.c.l.b16 %v582
    %v598 = vunpack.c.l.b16 %v583
    %v599 = vpack.c.b16 %v596, %v595
    %v600 = vpack.c.b16 %v598, %v597
    %v604 = vsel %vm436, %v579, 0
    %606 = vmatprep.subr.bf16.mxu0 0
    %607 = vmatpush1.bf16.msra.mxu0 %v599
    %608 = vmatprep.subr.bf16.mxu0 0
    %609 = vmatpush1.bf16.msra.mxu0 %v600
    %610 = vmatprep.subr.bf16.mxu0 0
    %611 = vmatpush1.bf16.msra.mxu0 0
    %612 = vmatprep.subr.bf16.mxu0 0
    %613 = vmatpush1.bf16.msra.mxu0 0
    %614 = vmatprep.subr.bf16.mxu0 0
    %615 = vmatpush1.bf16.msra.mxu0 0
    %616 = vmatprep.subr.bf16.mxu0 0
    %617 = vmatpush1.bf16.msra.mxu0 0
    %618 = vmatprep.subr.bf16.mxu0 0
    %619 = vmatpush1.bf16.msra.mxu0 0
    %620 = vmatprep.subr.bf16.mxu0 0
    %621 = vmatpush1.bf16.msra.mxu0 0
    %622 = vmatprep.subr.bf16.mxu0 0
    %623 = vmatpush1.bf16.msra.mxu0 0
    %624 = vmatprep.subr.bf16.mxu0 0
    %625 = vmatpush1.bf16.msra.mxu0 0
    %626 = vmatprep.subr.bf16.mxu0 0
    %627 = vmatpush1.bf16.msra.mxu0 0
    %628 = vmatprep.subr.bf16.mxu0 0
    %629 = vmatpush1.bf16.msra.mxu0 0
    %630 = vmatprep.subr.bf16.mxu0 0
    %631 = vmatpush1.bf16.msra.mxu0 0
    %632 = vmatprep.subr.bf16.mxu0 0
    %633 = vmatpush1.bf16.msra.mxu0 0
    %634 = vmatprep.subr.bf16.mxu0 0
    %635 = vmatpush1.bf16.msra.mxu0 0
    %636 = vmatprep.subr.bf16.mxu0 0
    %637 = vmatpush1.bf16.msra.mxu0 0
    %638 = vmatprep.mubr.bf16.mxu0 0
    %639 = vmatmul.mubr.bf16.gmra.mrb[0].mxu0 %v604
    %v640 = vpop.f32.mrb[0].mxu0
    %v641 = vadd.f32 %v589, %v640
    %v642 = vpop.f32.mrb[0].mxu0
    %v643 = vpop.f32.mrb[0].mxu0
    %v644 = vadd.f32 %v589, %v643
    %v645 = vpop.f32.mrb[0].mxu0
    %646 = vdwg.mxu0
    %v647 = vadd.f32 %v410, %v641
    %v648 = vadd.f32 %v411, %v644
    %v649 = vld [vmem:[#allocation16] sm:$0x1]
    %v650 = vld [vmem:[#allocation17] sm:$0x1]
    %v651 = vsel %vm436, %v647, 0.0
    %652 = vadd.xlane.f32.xlu0 %v651
    %v653 = vpop.xlane.xlu0 %652
    %v654 = vsel %vm436, %v648, 0.0
    %655 = vadd.xlane.f32.xlu0 %v654
    %v656 = vpop.xlane.xlu0 %655
    %v657 = vrcp.pop 32.0
    %v658 = vmul.f32 %v653, %v657
    %v659 = vmul.f32 %v656, %v657
    %v660 = vmul.f32 %v647, %v647
    %v661 = vmul.f32 %v648, %v648
    %v662 = vsel %vm436, %v660, 0.0
    %663 = vadd.xlane.f32.xlu0 %v662
    %v664 = vpop.xlane.xlu0 %663
    %v665 = vsel %vm436, %v661, 0.0
    %666 = vadd.xlane.f32.xlu0 %v665
    %v667 = vpop.xlane.xlu0 %666
    %v668 = vmul.f32 %v664, %v657
    %v669 = vmul.f32 %v667, %v657
    %v670 = vmul.f32 %v658, %v658
    %v671 = vmul.f32 %v659, %v659
    %v672 = vsub.f32 %v668, %v670
    %v673 = vsub.f32 %v669, %v671
    %v674 = vmax.f32 %v672, 0.0
    %v675 = vmax.f32 %v673, 0.0
    %v676 = vsub.f32 %v647, %v658
    %v677 = vsub.f32 %v648, %v659
    %v678 = vadd.f32 %v674, 1e-05
    %v679 = vadd.f32 %v675, 1e-05
    %v680 = vrsqrt.pop %v678
    %v681 = vrsqrt.pop %v679
    %v682 = vmul.f32 %v676, %v680
    %v683 = vmul.f32 %v677, %v681
    %v685 = vlaneseq
    %v686 = vshrl.u32 %v685, 7
    %v687 = vsub.s32 0, %v686
    %v688 = vrot.slane %v649, %v687
    %v690 = vmul.f32 %v682, %v688
    %v691 = vmul.f32 %v683, %v688
    %v693 = vlaneseq
    %v694 = vshrl.u32 %v693, 7
    %v695 = vsub.s32 0, %v694
    %v696 = vrot.slane %v650, %v695
    %v698 = vadd.f32 %v690, %v696
    %v699 = vadd.f32 %v691, %v696
    %v700 = vld [vmem:[#allocation5] sm:$0xff]
    %v701 = vld [vmem:[#allocation5 + $0x8] sm:$0xff]
    %v702 = vld [vmem:[#allocation5 + $0x10] sm:$0xff]
    %v703 = vld [vmem:[#allocation5 + $0x18] sm:$0xff]
    %v704 = vpack.c.bf16 %v699, %v698
    %v705 = vld [vmem:[#allocation19] sm:$0xf]
    %v706 = vld [vmem:[#allocation19 + $0x4] sm:$0xf]
    %v707 = vld [vmem:[#allocation19 + $0x8] sm:$0xf]
    %v708 = vld [vmem:[#allocation19 + $0xc] sm:$0xf]
    %v709 = vld [vmem:[#allocation20] sm:$0x1]
    %v711 = vlaneseq
    %v712 = vshrl.u32 %v711, 7
    %v713 = vsub.s32 0, %v712
    %v714 = vrot.slane %v709, %v713
    %v720 = vunpack.c.l.b16 %v705
    %v721 = vunpack.c.l.b16 %v706
    %v722 = vunpack.c.l.b16 %v707
    %v723 = vunpack.c.l.b16 %v708
    %v724 = vpack.c.b16 %v721, %v720
    %v725 = vpack.c.b16 %v723, %v722
    %v729 = vsel %vm436, %v704, 0
    %731 = vmatprep.subr.bf16.mxu0 0
    %732 = vmatpush1.bf16.msra.mxu0 %v724
    %733 = vmatprep.subr.bf16.mxu0 0
    %734 = vmatpush1.bf16.msra.mxu0 %v725
    %735 = vmatprep.subr.bf16.mxu0 0
    %736 = vmatpush1.bf16.msra.mxu0 0
    %737 = vmatprep.subr.bf16.mxu0 0
    %738 = vmatpush1.bf16.msra.mxu0 0
    %739 = vmatprep.subr.bf16.mxu0 0
    %740 = vmatpush1.bf16.msra.mxu0 0
    %741 = vmatprep.subr.bf16.mxu0 0
    %742 = vmatpush1.bf16.msra.mxu0 0
    %743 = vmatprep.subr.bf16.mxu0 0
    %744 = vmatpush1.bf16.msra.mxu0 0
    %745 = vmatprep.subr.bf16.mxu0 0
    %746 = vmatpush1.bf16.msra.mxu0 0
    %747 = vmatprep.subr.bf16.mxu0 0
    %748 = vmatpush1.bf16.msra.mxu0 0
    %749 = vmatprep.subr.bf16.mxu0 0
    %750 = vmatpush1.bf16.msra.mxu0 0
    %751 = vmatprep.subr.bf16.mxu0 0
    %752 = vmatpush1.bf16.msra.mxu0 0
    %753 = vmatprep.subr.bf16.mxu0 0
    %754 = vmatpush1.bf16.msra.mxu0 0
    %755 = vmatprep.subr.bf16.mxu0 0
    %756 = vmatpush1.bf16.msra.mxu0 0
    %757 = vmatprep.subr.bf16.mxu0 0
    %758 = vmatpush1.bf16.msra.mxu0 0
    %759 = vmatprep.subr.bf16.mxu0 0
    %760 = vmatpush1.bf16.msra.mxu0 0
    %761 = vmatprep.subr.bf16.mxu0 0
    %762 = vmatpush1.bf16.msra.mxu0 0
    %763 = vmatprep.mubr.bf16.mxu0 0
    %764 = vmatmul.mubr.bf16.gmra.mrb[0].mxu0 %v729
    %v765 = vpop.f32.mrb[0].mxu0
    %v766 = vadd.f32 %v714, %v765
    %v767 = vpop.f32.mrb[0].mxu0
    %v768 = vpop.f32.mrb[0].mxu0
    %v769 = vadd.f32 %v714, %v768
    %v770 = vpop.f32.mrb[0].mxu0
    %771 = vdwg.mxu0
    %v772 = vpack.c.bf16 %v701, %v700
    %v773 = vpack.c.bf16 %v703, %v702
    %v774 = vld [vmem:[#allocation22] sm:$0xf]
    %v775 = vld [vmem:[#allocation22 + $0x4] sm:$0xf]
    %v776 = vld [vmem:[#allocation22 + $0x8] sm:$0xf]
    %v777 = vld [vmem:[#allocation22 + $0xc] sm:$0xf]
    %v778 = vld [vmem:[#allocation23] sm:$0x1]
    %v780 = vlaneseq
    %v781 = vshrl.u32 %v780, 7
    %v782 = vsub.s32 0, %v781
    %v783 = vrot.slane %v778, %v782
    %v789 = vunpack.c.l.b16 %v774
    %v790 = vunpack.c.l.b16 %v775
    %v791 = vunpack.c.l.b16 %v776
    %v792 = vunpack.c.l.b16 %v777
    %v793 = vpack.c.b16 %v790, %v789
    %v794 = vpack.c.b16 %v792, %v791
    %v798 = vsel %vm436, %v772, 0
    %v801 = vsel %vm436, %v773, 0
    %803 = vmatprep.subr.bf16.mxu0 0
    %804 = vmatpush1.bf16.msra.mxu0 %v793
    %805 = vmatprep.subr.bf16.mxu0 0
    %806 = vmatpush1.bf16.msra.mxu0 %v794
    %807 = vmatprep.subr.bf16.mxu0 0
    %808 = vmatpush1.bf16.msra.mxu0 0
    %809 = vmatprep.subr.bf16.mxu0 0
    %810 = vmatpush1.bf16.msra.mxu0 0
    %811 = vmatprep.subr.bf16.mxu0 0
    %812 = vmatpush1.bf16.msra.mxu0 0
    %813 = vmatprep.subr.bf16.mxu0 0
    %814 = vmatpush1.bf16.msra.mxu0 0
    %815 = vmatprep.subr.bf16.mxu0 0
    %816 = vmatpush1.bf16.msra.mxu0 0
    %817 = vmatprep.subr.bf16.mxu0 0
    %818 = vmatpush1.bf16.msra.mxu0 0
    %819 = vmatprep.subr.bf16.mxu0 0
    %820 = vmatpush1.bf16.msra.mxu0 0
    %821 = vmatprep.subr.bf16.mxu0 0
    %822 = vmatpush1.bf16.msra.mxu0 0
    %823 = vmatprep.subr.bf16.mxu0 0
    %824 = vmatpush1.bf16.msra.mxu0 0
    %825 = vmatprep.subr.bf16.mxu0 0
    %826 = vmatpush1.bf16.msra.mxu0 0
    %827 = vmatprep.subr.bf16.mxu0 0
    %828 = vmatpush1.bf16.msra.mxu0 0
    %829 = vmatprep.subr.bf16.mxu0 0
    %830 = vmatpush1.bf16.msra.mxu0 0
    %831 = vmatprep.subr.bf16.mxu0 0
    %832 = vmatpush1.bf16.msra.mxu0 0
    %833 = vmatprep.subr.bf16.mxu0 0
    %834 = vmatpush1.bf16.msra.mxu0 0
    %835 = vmatprep.mubr.bf16.mxu0 0
    %836 = vmatmul.mubr.bf16.gmra.mrb[0].mxu0 %v798
    %v837 = vpop.f32.mrb[0].mxu0
    %v838 = vadd.f32 %v783, %v837
    %v839 = vpop.f32.mrb[0].mxu0
    %v840 = vpop.f32.mrb[0].mxu0
    %v841 = vadd.f32 %v783, %v840
    %v842 = vpop.f32.mrb[0].mxu0
    %843 = vmatprep.mubr.bf16.mxu0 0
    %844 = vmatmul.mubr.bf16.gmra.mrb[0].mxu0 %v801
    %v845 = vpop.f32.mrb[0].mxu0
    %v846 = vadd.f32 %v783, %v845
    %v847 = vpop.f32.mrb[0].mxu0
    %v848 = vpop.f32.mrb[0].mxu0
    %v849 = vadd.f32 %v783, %v848
    %v850 = vpop.f32.mrb[0].mxu0
    %851 = vdwg.mxu0
    %v852 = vld [vmem:[#allocation25] sm:$0xf]
    %v853 = vld [vmem:[#allocation25 + $0x4] sm:$0xf]
    %v854 = vld [vmem:[#allocation25 + $0x8] sm:$0xf]
    %v855 = vld [vmem:[#allocation25 + $0xc] sm:$0xf]
    %v856 = vld [vmem:[#allocation26] sm:$0x1]
    %v858 = vlaneseq
    %v859 = vshrl.u32 %v858, 7
    %v860 = vsub.s32 0, %v859
    %v861 = vrot.slane %v856, %v860
    %v867 = vunpack.c.l.b16 %v852
    %v868 = vunpack.c.l.b16 %v853
    %v869 = vunpack.c.l.b16 %v854
    %v870 = vunpack.c.l.b16 %v855
    %v871 = vpack.c.b16 %v868, %v867
    %v872 = vpack.c.b16 %v870, %v869
    %875 = vmatprep.subr.bf16.mxu0 0
    %876 = vmatpush1.bf16.msra.mxu0 %v871
    %877 = vmatprep.subr.bf16.mxu0 0
    %878 = vmatpush1.bf16.msra.mxu0 %v872
    %879 = vmatprep.subr.bf16.mxu0 0
    %880 = vmatpush1.bf16.msra.mxu0 0
    %881 = vmatprep.subr.bf16.mxu0 0
    %882 = vmatpush1.bf16.msra.mxu0 0
    %883 = vmatprep.subr.bf16.mxu0 0
    %884 = vmatpush1.bf16.msra.mxu0 0
    %885 = vmatprep.subr.bf16.mxu0 0
    %886 = vmatpush1.bf16.msra.mxu0 0
    %887 = vmatprep.subr.bf16.mxu0 0
    %888 = vmatpush1.bf16.msra.mxu0 0
    %889 = vmatprep.subr.bf16.mxu0 0
    %890 = vmatpush1.bf16.msra.mxu0 0
    %891 = vmatprep.subr.bf16.mxu0 0
    %892 = vmatpush1.bf16.msra.mxu0 0
    %893 = vmatprep.subr.bf16.mxu0 0
    %894 = vmatpush1.bf16.msra.mxu0 0
    %895 = vmatprep.subr.bf16.mxu0 0
    %896 = vmatpush1.bf16.msra.mxu0 0
    %897 = vmatprep.subr.bf16.mxu0 0
    %898 = vmatpush1.bf16.msra.mxu0 0
    %899 = vmatprep.subr.bf16.mxu0 0
    %900 = vmatpush1.bf16.msra.mxu0 0
    %901 = vmatprep.subr.bf16.mxu0 0
    %902 = vmatpush1.bf16.msra.mxu0 0
    %903 = vmatprep.subr.bf16.mxu0 0
    %904 = vmatpush1.bf16.msra.mxu0 0
    %905 = vmatprep.subr.bf16.mxu0 0
    %906 = vmatpush1.bf16.msra.mxu0 0
    %907 = vmatprep.mubr.bf16.mxu0 0
    %908 = vmatmul.mubr.bf16.gmra.mrb[0].mxu0 %v798
    %v909 = vpop.f32.mrb[0].mxu0
    %v910 = vadd.f32 %v861, %v909
    %v911 = vpop.f32.mrb[0].mxu0
    %v912 = vpop.f32.mrb[0].mxu0
    %v913 = vadd.f32 %v861, %v912
    %v914 = vpop.f32.mrb[0].mxu0
    %915 = vmatprep.mubr.bf16.mxu0 0
    %916 = vmatmul.mubr.bf16.gmra.mrb[0].mxu0 %v801
    %v917 = vpop.f32.mrb[0].mxu0
    %v918 = vadd.f32 %v861, %v917
    %v919 = vpop.f32.mrb[0].mxu0
    %v920 = vpop.f32.mrb[0].mxu0
    %v921 = vadd.f32 %v861, %v920
    %v922 = vpop.f32.mrb[0].mxu0
    %923 = vdwg.mxu0
    %v924 = vld [vmem:[#allocation7] sm:$0x1]
    %v925 = vld [vmem:[#allocation7 + $0x1] sm:$0x1]
    %vm926 = vcmp.gt.f32.partialorder %v924, 0.0
    %vm927 = vcmp.gt.f32.partialorder %v925, 0.0
    %v928 = vsel %vm926, 0.0, -1e+09
    %v929 = vsel %vm927, 0.0, -1e+09
    %931 = vrot.lane.b32.xlu0 %v766, 120
    %v932 = vpop.permute.xlu0 %931
    %934 = vrot.lane.b32.xlu0 %v766, 112
    %v935 = vpop.permute.xlu0 %934
    %937 = vrot.lane.b32.xlu0 %v766, 104
    %v938 = vpop.permute.xlu0 %937
    %v940 = vcombine.low %v766, %v935
    %v941 = vcombine.high %v766, %v935
    %v943 = vunpack.c.l.s4 1983009808
    %v944 = vunpack.c.0.s8 %v943
    %v945 = vlaneseq
    %v946 = vshrl.u32 %v945, 7
    %v947 = vsub.s32 %v944, %v946
    %v948 = vrot.slane %v940, %v947
    %v950 = vunpack.c.l.s4 1983009808
    %v951 = vunpack.c.0.s8 %v950
    %v952 = vlaneseq
    %v953 = vshrl.u32 %v952, 7
    %v954 = vsub.s32 %v951, %v953
    %v955 = vrot.slane %v941, %v954
    %v956 = vcombine.low %v932, %v938
    %v957 = vcombine.high %v932, %v938
    %v959 = vunpack.c.l.s4 1983009808
    %v960 = vunpack.c.0.s8 %v959
    %v961 = vlaneseq
    %v962 = vshrl.u32 %v961, 7
    %v963 = vsub.s32 %v960, %v962
    %v964 = vrot.slane %v956, %v963
    %v966 = vunpack.c.l.s4 1983009808
    %v967 = vunpack.c.0.s8 %v966
    %v968 = vlaneseq
    %v969 = vshrl.u32 %v968, 7
    %v970 = vsub.s32 %v967, %v969
    %v971 = vrot.slane %v957, %v970
    %v972 = vcombine.low %v948, %v964
    %v973 = vcombine.high %v948, %v964
    %v975 = vunpack.c.l.s4 1934713408
    %v976 = vunpack.c.0.s8 %v975
    %v977 = vlaneseq
    %v978 = vshrl.u32 %v977, 7
    %v979 = vsub.s32 %v976, %v978
    %v980 = vrot.slane %v972, %v979
    %v982 = vunpack.c.l.s4 1934713408
    %v983 = vunpack.c.0.s8 %v982
    %v984 = vlaneseq
    %v985 = vshrl.u32 %v984, 7
    %v986 = vsub.s32 %v983, %v985
    %v987 = vrot.slane %v973, %v986
    %v988 = vcombine.low %v955, %v971
    %v989 = vcombine.high %v955, %v971
    %v991 = vunpack.c.l.s4 1934713408
    %v992 = vunpack.c.0.s8 %v991
    %v993 = vlaneseq
    %v994 = vshrl.u32 %v993, 7
    %v995 = vsub.s32 %v992, %v994
    %v996 = vrot.slane %v988, %v995
    %v998 = vunpack.c.l.s4 1934713408
    %v999 = vunpack.c.0.s8 %v998
    %v1000 = vlaneseq
    %v1001 = vshrl.u32 %v1000, 7
    %v1002 = vsub.s32 %v999, %v1001
    %v1003 = vrot.slane %v989, %v1002
    %v1004 = vcombine.high %v980, 0.0
    %v1005 = vcombine.high %v987, 0.0
    %v1006 = vcombine.high %v996, 0.0
    %v1007 = vcombine.high %v1003, 0.0
    %v1008 = vcombine.low %v980, %v987
    %v1010 = vunpack.c.l.s4 1983009808
    %v1011 = vunpack.c.0.s8 %v1010
    %v1012 = vlaneseq
    %v1013 = vshrl.u32 %v1012, 7
    %v1014 = vsub.s32 %v1011, %v1013
    %v1015 = vrot.slane %v1008, %v1014
    %v1016 = vcombine.low %v1004, %v1005
    %v1018 = vunpack.c.l.s4 1983009808
    %v1019 = vunpack.c.0.s8 %v1018
    %v1020 = vlaneseq
    %v1021 = vshrl.u32 %v1020, 7
    %v1022 = vsub.s32 %v1019, %v1021
    %v1023 = vrot.slane %v1016, %v1022
    %v1024 = vcombine.low %v996, %v1003
    %v1026 = vunpack.c.l.s4 1983009808
    %v1027 = vunpack.c.0.s8 %v1026
    %v1028 = vlaneseq
    %v1029 = vshrl.u32 %v1028, 7
    %v1030 = vsub.s32 %v1027, %v1029
    %v1031 = vrot.slane %v1024, %v1030
    %v1032 = vcombine.low %v1006, %v1007
    %v1034 = vunpack.c.l.s4 1983009808
    %v1035 = vunpack.c.0.s8 %v1034
    %v1036 = vlaneseq
    %v1037 = vshrl.u32 %v1036, 7
    %v1038 = vsub.s32 %v1035, %v1037
    %v1039 = vrot.slane %v1032, %v1038
    %v1040 = vcombine.low %v1015, %v1023
    %v1041 = vcombine.high %v1015, %v1023
    %v1043 = vunpack.c.l.s4 1934713408
    %v1044 = vunpack.c.0.s8 %v1043
    %v1045 = vlaneseq
    %v1046 = vshrl.u32 %v1045, 7
    %v1047 = vsub.s32 %v1044, %v1046
    %v1048 = vrot.slane %v1040, %v1047
    %v1050 = vunpack.c.l.s4 1934713408
    %v1051 = vunpack.c.0.s8 %v1050
    %v1052 = vlaneseq
    %v1053 = vshrl.u32 %v1052, 7
    %v1054 = vsub.s32 %v1051, %v1053
    %v1055 = vrot.slane %v1041, %v1054
    %v1056 = vcombine.low %v1031, %v1039
    %v1057 = vcombine.high %v1031, %v1039
    %v1059 = vunpack.c.l.s4 1934713408
    %v1060 = vunpack.c.0.s8 %v1059
    %v1061 = vlaneseq
    %v1062 = vshrl.u32 %v1061, 7
    %v1063 = vsub.s32 %v1060, %v1062
    %v1064 = vrot.slane %v1056, %v1063
    %v1066 = vunpack.c.l.s4 1934713408
    %v1067 = vunpack.c.0.s8 %v1066
    %v1068 = vlaneseq
    %v1069 = vshrl.u32 %v1068, 7
    %v1070 = vsub.s32 %v1067, %v1069
    %v1071 = vrot.slane %v1057, %v1070
    %v1072 = vcombine.low %v1048, %v1064
    %v1073 = vcombine.high %v1048, %v1064
    %v1074 = vcombine.low %v1055, %v1071
    %v1075 = vcombine.high %v1055, %v1071
    %1078 = vrot.lane.b32.xlu0 %v838, 120
    %v1079 = vpop.permute.xlu0 %1078
    %1080 = vrot.lane.b32.xlu0 %v841, 120
    %v1081 = vpop.permute.xlu0 %1080
    %1084 = vrot.lane.b32.xlu0 %v838, 112
    %v1085 = vpop.permute.xlu0 %1084
    %1086 = vrot.lane.b32.xlu0 %v841, 112
    %v1087 = vpop.permute.xlu0 %1086
    %1090 = vrot.lane.b32.xlu0 %v838, 104
    %v1091 = vpop.permute.xlu0 %1090
    %1092 = vrot.lane.b32.xlu0 %v841, 104
    %v1093 = vpop.permute.xlu0 %1092
    %v1096 = vcombine.low %v838, %v1085
    %v1097 = vcombine.high %v838, %v1085
    %v1099 = vunpack.c.l.s4 1983009808
    %v1100 = vunpack.c.0.s8 %v1099
    %v1101 = vlaneseq
    %v1102 = vshrl.u32 %v1101, 7
    %v1103 = vsub.s32 %v1100, %v1102
    %v1104 = vrot.slane %v1096, %v1103
    %v1106 = vunpack.c.l.s4 1983009808
    %v1107 = vunpack.c.0.s8 %v1106
    %v1108 = vlaneseq
    %v1109 = vshrl.u32 %v1108, 7
    %v1110 = vsub.s32 %v1107, %v1109
    %v1111 = vrot.slane %v1097, %v1110
    %v1112 = vcombine.low %v1079, %v1091
    %v1113 = vcombine.high %v1079, %v1091
    %v1115 = vunpack.c.l.s4 1983009808
    %v1116 = vunpack.c.0.s8 %v1115
    %v1117 = vlaneseq
    %v1118 = vshrl.u32 %v1117, 7
    %v1119 = vsub.s32 %v1116, %v1118
    %v1120 = vrot.slane %v1112, %v1119
    %v1122 = vunpack.c.l.s4 1983009808
    %v1123 = vunpack.c.0.s8 %v1122
    %v1124 = vlaneseq
    %v1125 = vshrl.u32 %v1124, 7
    %v1126 = vsub.s32 %v1123, %v1125
    %v1127 = vrot.slane %v1113, %v1126
    %v1128 = vcombine.low %v1104, %v1120
    %v1129 = vcombine.high %v1104, %v1120
    %v1131 = vunpack.c.l.s4 1934713408
    %v1132 = vunpack.c.0.s8 %v1131
    %v1133 = vlaneseq
    %v1134 = vshrl.u32 %v1133, 7
    %v1135 = vsub.s32 %v1132, %v1134
    %v1136 = vrot.slane %v1128, %v1135
    %v1138 = vunpack.c.l.s4 1934713408
    %v1139 = vunpack.c.0.s8 %v1138
    %v1140 = vlaneseq
    %v1141 = vshrl.u32 %v1140, 7
    %v1142 = vsub.s32 %v1139, %v1141
    %v1143 = vrot.slane %v1129, %v1142
    %v1144 = vcombine.low %v1111, %v1127
    %v1145 = vcombine.high %v1111, %v1127
    %v1147 = vunpack.c.l.s4 1934713408
    %v1148 = vunpack.c.0.s8 %v1147
    %v1149 = vlaneseq
    %v1150 = vshrl.u32 %v1149, 7
    %v1151 = vsub.s32 %v1148, %v1150
    %v1152 = vrot.slane %v1144, %v1151
    %v1154 = vunpack.c.l.s4 1934713408
    %v1155 = vunpack.c.0.s8 %v1154
    %v1156 = vlaneseq
    %v1157 = vshrl.u32 %v1156, 7
    %v1158 = vsub.s32 %v1155, %v1157
    %v1159 = vrot.slane %v1145, %v1158
    %v1160 = vcombine.high %v1136, 0.0
    %v1161 = vcombine.high %v1143, 0.0
    %v1162 = vcombine.high %v1152, 0.0
    %v1163 = vcombine.high %v1159, 0.0
    %v1164 = vcombine.low %v841, %v1087
    %v1165 = vcombine.high %v841, %v1087
    %v1167 = vunpack.c.l.s4 1983009808
    %v1168 = vunpack.c.0.s8 %v1167
    %v1169 = vlaneseq
    %v1170 = vshrl.u32 %v1169, 7
    %v1171 = vsub.s32 %v1168, %v1170
    %v1172 = vrot.slane %v1164, %v1171
    %v1174 = vunpack.c.l.s4 1983009808
    %v1175 = vunpack.c.0.s8 %v1174
    %v1176 = vlaneseq
    %v1177 = vshrl.u32 %v1176, 7
    %v1178 = vsub.s32 %v1175, %v1177
    %v1179 = vrot.slane %v1165, %v1178
    %v1180 = vcombine.low %v1081, %v1093
    %v1181 = vcombine.high %v1081, %v1093
    %v1183 = vunpack.c.l.s4 1983009808
    %v1184 = vunpack.c.0.s8 %v1183
    %v1185 = vlaneseq
    %v1186 = vshrl.u32 %v1185, 7
    %v1187 = vsub.s32 %v1184, %v1186
    %v1188 = vrot.slane %v1180, %v1187
    %v1190 = vunpack.c.l.s4 1983009808
    %v1191 = vunpack.c.0.s8 %v1190
    %v1192 = vlaneseq
    %v1193 = vshrl.u32 %v1192, 7
    %v1194 = vsub.s32 %v1191, %v1193
    %v1195 = vrot.slane %v1181, %v1194
    %v1196 = vcombine.low %v1172, %v1188
    %v1197 = vcombine.high %v1172, %v1188
    %v1199 = vunpack.c.l.s4 1934713408
    %v1200 = vunpack.c.0.s8 %v1199
    %v1201 = vlaneseq
    %v1202 = vshrl.u32 %v1201, 7
    %v1203 = vsub.s32 %v1200, %v1202
    %v1204 = vrot.slane %v1196, %v1203
    %v1206 = vunpack.c.l.s4 1934713408
    %v1207 = vunpack.c.0.s8 %v1206
    %v1208 = vlaneseq
    %v1209 = vshrl.u32 %v1208, 7
    %v1210 = vsub.s32 %v1207, %v1209
    %v1211 = vrot.slane %v1197, %v1210
    %v1212 = vcombine.low %v1179, %v1195
    %v1213 = vcombine.high %v1179, %v1195
    %v1215 = vunpack.c.l.s4 1934713408
    %v1216 = vunpack.c.0.s8 %v1215
    %v1217 = vlaneseq
    %v1218 = vshrl.u32 %v1217, 7
    %v1219 = vsub.s32 %v1216, %v1218
    %v1220 = vrot.slane %v1212, %v1219
    %v1222 = vunpack.c.l.s4 1934713408
    %v1223 = vunpack.c.0.s8 %v1222
    %v1224 = vlaneseq
    %v1225 = vshrl.u32 %v1224, 7
    %v1226 = vsub.s32 %v1223, %v1225
    %v1227 = vrot.slane %v1213, %v1226
    %v1228 = vcombine.high %v1204, 0.0
    %v1229 = vcombine.high %v1211, 0.0
    %v1230 = vcombine.high %v1220, 0.0
    %v1231 = vcombine.high %v1227, 0.0
    %v1232 = vcombine.low %v1136, %v1143
    %v1234 = vunpack.c.l.s4 1983009808
    %v1235 = vunpack.c.0.s8 %v1234
    %v1236 = vlaneseq
    %v1237 = vshrl.u32 %v1236, 7
    %v1238 = vsub.s32 %v1235, %v1237
    %v1239 = vrot.slane %v1232, %v1238
    %v1240 = vcombine.low %v1160, %v1161
    %v1242 = vunpack.c.l.s4 1983009808
    %v1243 = vunpack.c.0.s8 %v1242
    %v1244 = vlaneseq
    %v1245 = vshrl.u32 %v1244, 7
    %v1246 = vsub.s32 %v1243, %v1245
    %v1247 = vrot.slane %v1240, %v1246
    %v1248 = vcombine.low %v1152, %v1159
    %v1250 = vunpack.c.l.s4 1983009808
    %v1251 = vunpack.c.0.s8 %v1250
    %v1252 = vlaneseq
    %v1253 = vshrl.u32 %v1252, 7
    %v1254 = vsub.s32 %v1251, %v1253
    %v1255 = vrot.slane %v1248, %v1254
    %v1256 = vcombine.low %v1162, %v1163
    %v1258 = vunpack.c.l.s4 1983009808
    %v1259 = vunpack.c.0.s8 %v1258
    %v1260 = vlaneseq
    %v1261 = vshrl.u32 %v1260, 7
    %v1262 = vsub.s32 %v1259, %v1261
    %v1263 = vrot.slane %v1256, %v1262
    %v1264 = vcombine.low %v1239, %v1247
    %v1265 = vcombine.high %v1239, %v1247
    %v1267 = vunpack.c.l.s4 1934713408
    %v1268 = vunpack.c.0.s8 %v1267
    %v1269 = vlaneseq
    %v1270 = vshrl.u32 %v1269, 7
    %v1271 = vsub.s32 %v1268, %v1270
    %v1272 = vrot.slane %v1264, %v1271
    %v1274 = vunpack.c.l.s4 1934713408
    %v1275 = vunpack.c.0.s8 %v1274
    %v1276 = vlaneseq
    %v1277 = vshrl.u32 %v1276, 7
    %v1278 = vsub.s32 %v1275, %v1277
    %v1279 = vrot.slane %v1265, %v1278
    %v1280 = vcombine.low %v1255, %v1263
    %v1281 = vcombine.high %v1255, %v1263
    %v1283 = vunpack.c.l.s4 1934713408
    %v1284 = vunpack.c.0.s8 %v1283
    %v1285 = vlaneseq
    %v1286 = vshrl.u32 %v1285, 7
    %v1287 = vsub.s32 %v1284, %v1286
    %v1288 = vrot.slane %v1280, %v1287
    %v1290 = vunpack.c.l.s4 1934713408
    %v1291 = vunpack.c.0.s8 %v1290
    %v1292 = vlaneseq
    %v1293 = vshrl.u32 %v1292, 7
    %v1294 = vsub.s32 %v1291, %v1293
    %v1295 = vrot.slane %v1281, %v1294
    %v1296 = vcombine.low %v1272, %v1288
    %v1297 = vcombine.high %v1272, %v1288
    %v1298 = vcombine.low %v1279, %v1295
    %v1299 = vcombine.high %v1279, %v1295
    %v1300 = vcombine.low %v1204, %v1211
    %v1302 = vunpack.c.l.s4 1983009808
    %v1303 = vunpack.c.0.s8 %v1302
    %v1304 = vlaneseq
    %v1305 = vshrl.u32 %v1304, 7
    %v1306 = vsub.s32 %v1303, %v1305
    %v1307 = vrot.slane %v1300, %v1306
    %v1308 = vcombine.low %v1228, %v1229
    %v1310 = vunpack.c.l.s4 1983009808
    %v1311 = vunpack.c.0.s8 %v1310
    %v1312 = vlaneseq
    %v1313 = vshrl.u32 %v1312, 7
    %v1314 = vsub.s32 %v1311, %v1313
    %v1315 = vrot.slane %v1308, %v1314
    %v1316 = vcombine.low %v1220, %v1227
    %v1318 = vunpack.c.l.s4 1983009808
    %v1319 = vunpack.c.0.s8 %v1318
    %v1320 = vlaneseq
    %v1321 = vshrl.u32 %v1320, 7
    %v1322 = vsub.s32 %v1319, %v1321
    %v1323 = vrot.slane %v1316, %v1322
    %v1324 = vcombine.low %v1230, %v1231
    %v1326 = vunpack.c.l.s4 1983009808
    %v1327 = vunpack.c.0.s8 %v1326
    %v1328 = vlaneseq
    %v1329 = vshrl.u32 %v1328, 7
    %v1330 = vsub.s32 %v1327, %v1329
    %v1331 = vrot.slane %v1324, %v1330
    %v1332 = vcombine.low %v1307, %v1315
    %v1333 = vcombine.high %v1307, %v1315
    %v1335 = vunpack.c.l.s4 1934713408
    %v1336 = vunpack.c.0.s8 %v1335
    %v1337 = vlaneseq
    %v1338 = vshrl.u32 %v1337, 7
    %v1339 = vsub.s32 %v1336, %v1338
    %v1340 = vrot.slane %v1332, %v1339
    %v1342 = vunpack.c.l.s4 1934713408
    %v1343 = vunpack.c.0.s8 %v1342
    %v1344 = vlaneseq
    %v1345 = vshrl.u32 %v1344, 7
    %v1346 = vsub.s32 %v1343, %v1345
    %v1347 = vrot.slane %v1333, %v1346
    %v1348 = vcombine.low %v1323, %v1331
    %v1349 = vcombine.high %v1323, %v1331
    %v1351 = vunpack.c.l.s4 1934713408
    %v1352 = vunpack.c.0.s8 %v1351
    %v1353 = vlaneseq
    %v1354 = vshrl.u32 %v1353, 7
    %v1355 = vsub.s32 %v1352, %v1354
    %v1356 = vrot.slane %v1348, %v1355
    %v1358 = vunpack.c.l.s4 1934713408
    %v1359 = vunpack.c.0.s8 %v1358
    %v1360 = vlaneseq
    %v1361 = vshrl.u32 %v1360, 7
    %v1362 = vsub.s32 %v1359, %v1361
    %v1363 = vrot.slane %v1349, %v1362
    %v1364 = vcombine.low %v1340, %v1356
    %v1365 = vcombine.high %v1340, %v1356
    %v1366 = vcombine.low %v1347, %v1363
    %v1367 = vcombine.high %v1347, %v1363
    %1370 = vrot.lane.b32.xlu0 %v910, 120
    %v1371 = vpop.permute.xlu0 %1370
    %1372 = vrot.lane.b32.xlu0 %v913, 120
    %v1373 = vpop.permute.xlu0 %1372
    %1376 = vrot.lane.b32.xlu0 %v910, 112
    %v1377 = vpop.permute.xlu0 %1376
    %1378 = vrot.lane.b32.xlu0 %v913, 112
    %v1379 = vpop.permute.xlu0 %1378
    %1382 = vrot.lane.b32.xlu0 %v910, 104
    %v1383 = vpop.permute.xlu0 %1382
    %1384 = vrot.lane.b32.xlu0 %v913, 104
    %v1385 = vpop.permute.xlu0 %1384
    %v1388 = vcombine.low %v910, %v1377
    %v1389 = vcombine.high %v910, %v1377
    %v1391 = vunpack.c.l.s4 1983009808
    %v1392 = vunpack.c.0.s8 %v1391
    %v1393 = vlaneseq
    %v1394 = vshrl.u32 %v1393, 7
    %v1395 = vsub.s32 %v1392, %v1394
    %v1396 = vrot.slane %v1388, %v1395
    %v1398 = vunpack.c.l.s4 1983009808
    %v1399 = vunpack.c.0.s8 %v1398
    %v1400 = vlaneseq
    %v1401 = vshrl.u32 %v1400, 7
    %v1402 = vsub.s32 %v1399, %v1401
    %v1403 = vrot.slane %v1389, %v1402
    %v1404 = vcombine.low %v1371, %v1383
    %v1405 = vcombine.high %v1371, %v1383
    %v1407 = vunpack.c.l.s4 1983009808
    %v1408 = vunpack.c.0.s8 %v1407
    %v1409 = vlaneseq
    %v1410 = vshrl.u32 %v1409, 7
    %v1411 = vsub.s32 %v1408, %v1410
    %v1412 = vrot.slane %v1404, %v1411
    %v1414 = vunpack.c.l.s4 1983009808
    %v1415 = vunpack.c.0.s8 %v1414
    %v1416 = vlaneseq
    %v1417 = vshrl.u32 %v1416, 7
    %v1418 = vsub.s32 %v1415, %v1417
    %v1419 = vrot.slane %v1405, %v1418
    %v1420 = vcombine.low %v1396, %v1412
    %v1421 = vcombine.high %v1396, %v1412
    %v1423 = vunpack.c.l.s4 1934713408
    %v1424 = vunpack.c.0.s8 %v1423
    %v1425 = vlaneseq
    %v1426 = vshrl.u32 %v1425, 7
    %v1427 = vsub.s32 %v1424, %v1426
    %v1428 = vrot.slane %v1420, %v1427
    %v1430 = vunpack.c.l.s4 1934713408
    %v1431 = vunpack.c.0.s8 %v1430
    %v1432 = vlaneseq
    %v1433 = vshrl.u32 %v1432, 7
    %v1434 = vsub.s32 %v1431, %v1433
    %v1435 = vrot.slane %v1421, %v1434
    %v1436 = vcombine.low %v1403, %v1419
    %v1437 = vcombine.high %v1403, %v1419
    %v1439 = vunpack.c.l.s4 1934713408
    %v1440 = vunpack.c.0.s8 %v1439
    %v1441 = vlaneseq
    %v1442 = vshrl.u32 %v1441, 7
    %v1443 = vsub.s32 %v1440, %v1442
    %v1444 = vrot.slane %v1436, %v1443
    %v1446 = vunpack.c.l.s4 1934713408
    %v1447 = vunpack.c.0.s8 %v1446
    %v1448 = vlaneseq
    %v1449 = vshrl.u32 %v1448, 7
    %v1450 = vsub.s32 %v1447, %v1449
    %v1451 = vrot.slane %v1437, %v1450
    %v1452 = vcombine.high %v1428, 0.0
    %v1453 = vcombine.high %v1435, 0.0
    %v1454 = vcombine.high %v1444, 0.0
    %v1455 = vcombine.high %v1451, 0.0
    %v1456 = vcombine.low %v913, %v1379
    %v1457 = vcombine.high %v913, %v1379
    %v1459 = vunpack.c.l.s4 1983009808
    %v1460 = vunpack.c.0.s8 %v1459
    %v1461 = vlaneseq
    %v1462 = vshrl.u32 %v1461, 7
    %v1463 = vsub.s32 %v1460, %v1462
    %v1464 = vrot.slane %v1456, %v1463
    %v1466 = vunpack.c.l.s4 1983009808
    %v1467 = vunpack.c.0.s8 %v1466
    %v1468 = vlaneseq
    %v1469 = vshrl.u32 %v1468, 7
    %v1470 = vsub.s32 %v1467, %v1469
    %v1471 = vrot.slane %v1457, %v1470
    %v1472 = vcombine.low %v1373, %v1385
    %v1473 = vcombine.high %v1373, %v1385
    %v1475 = vunpack.c.l.s4 1983009808
    %v1476 = vunpack.c.0.s8 %v1475
    %v1477 = vlaneseq
    %v1478 = vshrl.u32 %v1477, 7
    %v1479 = vsub.s32 %v1476, %v1478
    %v1480 = vrot.slane %v1472, %v1479
    %v1482 = vunpack.c.l.s4 1983009808
    %v1483 = vunpack.c.0.s8 %v1482
    %v1484 = vlaneseq
    %v1485 = vshrl.u32 %v1484, 7
    %v1486 = vsub.s32 %v1483, %v1485
    %v1487 = vrot.slane %v1473, %v1486
    %v1488 = vcombine.low %v1464, %v1480
    %v1489 = vcombine.high %v1464, %v1480
    %v1491 = vunpack.c.l.s4 1934713408
    %v1492 = vunpack.c.0.s8 %v1491
    %v1493 = vlaneseq
    %v1494 = vshrl.u32 %v1493, 7
    %v1495 = vsub.s32 %v1492, %v1494
    %v1496 = vrot.slane %v1488, %v1495
    %v1498 = vunpack.c.l.s4 1934713408
    %v1499 = vunpack.c.0.s8 %v1498
    %v1500 = vlaneseq
    %v1501 = vshrl.u32 %v1500, 7
    %v1502 = vsub.s32 %v1499, %v1501
    %v1503 = vrot.slane %v1489, %v1502
    %v1504 = vcombine.low %v1471, %v1487
    %v1505 = vcombine.high %v1471, %v1487
    %v1507 = vunpack.c.l.s4 1934713408
    %v1508 = vunpack.c.0.s8 %v1507
    %v1509 = vlaneseq
    %v1510 = vshrl.u32 %v1509, 7
    %v1511 = vsub.s32 %v1508, %v1510
    %v1512 = vrot.slane %v1504, %v1511
    %v1514 = vunpack.c.l.s4 1934713408
    %v1515 = vunpack.c.0.s8 %v1514
    %v1516 = vlaneseq
    %v1517 = vshrl.u32 %v1516, 7
    %v1518 = vsub.s32 %v1515, %v1517
    %v1519 = vrot.slane %v1505, %v1518
    %v1520 = vcombine.high %v1496, 0.0
    %v1521 = vcombine.high %v1503, 0.0
    %v1522 = vcombine.high %v1512, 0.0
    %v1523 = vcombine.high %v1519, 0.0
    %v1524 = vcombine.low %v1428, %v1435
    %v1526 = vunpack.c.l.s4 1983009808
    %v1527 = vunpack.c.0.s8 %v1526
    %v1528 = vlaneseq
    %v1529 = vshrl.u32 %v1528, 7
    %v1530 = vsub.s32 %v1527, %v1529
    %v1531 = vrot.slane %v1524, %v1530
    %v1532 = vcombine.low %v1452, %v1453
    %v1534 = vunpack.c.l.s4 1983009808
    %v1535 = vunpack.c.0.s8 %v1534
    %v1536 = vlaneseq
    %v1537 = vshrl.u32 %v1536, 7
    %v1538 = vsub.s32 %v1535, %v1537
    %v1539 = vrot.slane %v1532, %v1538
    %v1540 = vcombine.low %v1444, %v1451
    %v1542 = vunpack.c.l.s4 1983009808
    %v1543 = vunpack.c.0.s8 %v1542
    %v1544 = vlaneseq
    %v1545 = vshrl.u32 %v1544, 7
    %v1546 = vsub.s32 %v1543, %v1545
    %v1547 = vrot.slane %v1540, %v1546
    %v1548 = vcombine.low %v1454, %v1455
    %v1550 = vunpack.c.l.s4 1983009808
    %v1551 = vunpack.c.0.s8 %v1550
    %v1552 = vlaneseq
    %v1553 = vshrl.u32 %v1552, 7
    %v1554 = vsub.s32 %v1551, %v1553
    %v1555 = vrot.slane %v1548, %v1554
    %v1556 = vcombine.low %v1531, %v1539
    %v1557 = vcombine.high %v1531, %v1539
    %v1559 = vunpack.c.l.s4 1934713408
    %v1560 = vunpack.c.0.s8 %v1559
    %v1561 = vlaneseq
    %v1562 = vshrl.u32 %v1561, 7
    %v1563 = vsub.s32 %v1560, %v1562
    %v1564 = vrot.slane %v1556, %v1563
    %v1566 = vunpack.c.l.s4 1934713408
    %v1567 = vunpack.c.0.s8 %v1566
    %v1568 = vlaneseq
    %v1569 = vshrl.u32 %v1568, 7
    %v1570 = vsub.s32 %v1567, %v1569
    %v1571 = vrot.slane %v1557, %v1570
    %v1572 = vcombine.low %v1547, %v1555
    %v1573 = vcombine.high %v1547, %v1555
    %v1575 = vunpack.c.l.s4 1934713408
    %v1576 = vunpack.c.0.s8 %v1575
    %v1577 = vlaneseq
    %v1578 = vshrl.u32 %v1577, 7
    %v1579 = vsub.s32 %v1576, %v1578
    %v1580 = vrot.slane %v1572, %v1579
    %v1582 = vunpack.c.l.s4 1934713408
    %v1583 = vunpack.c.0.s8 %v1582
    %v1584 = vlaneseq
    %v1585 = vshrl.u32 %v1584, 7
    %v1586 = vsub.s32 %v1583, %v1585
    %v1587 = vrot.slane %v1573, %v1586
    %v1588 = vcombine.low %v1564, %v1580
    %v1589 = vcombine.high %v1564, %v1580
    %v1590 = vcombine.low %v1571, %v1587
    %v1591 = vcombine.high %v1571, %v1587
    %v1592 = vcombine.low %v1496, %v1503
    %v1594 = vunpack.c.l.s4 1983009808
    %v1595 = vunpack.c.0.s8 %v1594
    %v1596 = vlaneseq
    %v1597 = vshrl.u32 %v1596, 7
    %v1598 = vsub.s32 %v1595, %v1597
    %v1599 = vrot.slane %v1592, %v1598
    %v1600 = vcombine.low %v1520, %v1521
    %v1602 = vunpack.c.l.s4 1983009808
    %v1603 = vunpack.c.0.s8 %v1602
    %v1604 = vlaneseq
    %v1605 = vshrl.u32 %v1604, 7
    %v1606 = vsub.s32 %v1603, %v1605
    %v1607 = vrot.slane %v1600, %v1606
    %v1608 = vcombine.low %v1512, %v1519
    %v1610 = vunpack.c.l.s4 1983009808
    %v1611 = vunpack.c.0.s8 %v1610
    %v1612 = vlaneseq
    %v1613 = vshrl.u32 %v1612, 7
    %v1614 = vsub.s32 %v1611, %v1613
    %v1615 = vrot.slane %v1608, %v1614
    %v1616 = vcombine.low %v1522, %v1523
    %v1618 = vunpack.c.l.s4 1983009808
    %v1619 = vunpack.c.0.s8 %v1618
    %v1620 = vlaneseq
    %v1621 = vshrl.u32 %v1620, 7
    %v1622 = vsub.s32 %v1619, %v1621
    %v1623 = vrot.slane %v1616, %v1622
    %v1624 = vcombine.low %v1599, %v1607
    %v1625 = vcombine.high %v1599, %v1607
    %v1627 = vunpack.c.l.s4 1934713408
    %v1628 = vunpack.c.0.s8 %v1627
    %v1629 = vlaneseq
    %v1630 = vshrl.u32 %v1629, 7
    %v1631 = vsub.s32 %v1628, %v1630
    %v1632 = vrot.slane %v1624, %v1631
    %v1634 = vunpack.c.l.s4 1934713408
    %v1635 = vunpack.c.0.s8 %v1634
    %v1636 = vlaneseq
    %v1637 = vshrl.u32 %v1636, 7
    %v1638 = vsub.s32 %v1635, %v1637
    %v1639 = vrot.slane %v1625, %v1638
    %v1640 = vcombine.low %v1615, %v1623
    %v1641 = vcombine.high %v1615, %v1623
    %v1643 = vunpack.c.l.s4 1934713408
    %v1644 = vunpack.c.0.s8 %v1643
    %v1645 = vlaneseq
    %v1646 = vshrl.u32 %v1645, 7
    %v1647 = vsub.s32 %v1644, %v1646
    %v1648 = vrot.slane %v1640, %v1647
    %v1650 = vunpack.c.l.s4 1934713408
    %v1651 = vunpack.c.0.s8 %v1650
    %v1652 = vlaneseq
    %v1653 = vshrl.u32 %v1652, 7
    %v1654 = vsub.s32 %v1651, %v1653
    %v1655 = vrot.slane %v1641, %v1654
    %v1656 = vcombine.low %v1632, %v1648
    %v1657 = vcombine.high %v1632, %v1648
    %v1658 = vcombine.low %v1639, %v1655
    %v1659 = vcombine.high %v1639, %v1655
    %v1660 = vpack.c.bf16 %v1072, %v1072
    %v1661 = vpack.c.bf16 %v1073, %v1073
    %v1662 = vpack.c.bf16 %v1074, %v1074
    %v1663 = vpack.c.bf16 %v1075, %v1075
    %v1664 = vpack.c.bf16 %v1364, %v1296
    %v1665 = vpack.c.bf16 %v1365, %v1297
    %v1666 = vpack.c.bf16 %v1366, %v1298
    %v1667 = vpack.c.bf16 %v1367, %v1299
    %vm1668 = vcmask 64512
    %v1670 = vsel %vm1668, %v1660, 0
    %v1673 = vsel %vm1668, %v1664, 0
    %1675 = vmatprep.subr.bf16.mxu0 0
    %1676 = vmatpush1.bf16.xpose.msra.mxu0 %v1673
    %1677 = vmatprep.subr.bf16.mxu0 0
    %1678 = vmatpush1.bf16.xpose.msra.mxu0 0
    %1679 = vmatprep.subr.bf16.mxu0 0
    %1680 = vmatpush1.bf16.xpose.msra.mxu0 0
    %1681 = vmatprep.subr.bf16.mxu0 0
    %1682 = vmatpush1.bf16.xpose.msra.mxu0 0
    %1683 = vmatprep.subr.bf16.mxu0 0
    %1684 = vmatpush1.bf16.xpose.msra.mxu0 0
    %1685 = vmatprep.subr.bf16.mxu0 0
    %1686 = vmatpush1.bf16.xpose.msra.mxu0 0
    %1687 = vmatprep.subr.bf16.mxu0 0
    %1688 = vmatpush1.bf16.xpose.msra.mxu0 0
    %1689 = vmatprep.subr.bf16.mxu0 0
    %1690 = vmatpush1.bf16.xpose.msra.mxu0 0
    %1691 = vmatprep.subr.bf16.mxu0 0
    %1692 = vmatpush1.bf16.xpose.msra.mxu0 0
    %1693 = vmatprep.subr.bf16.mxu0 0
    %1694 = vmatpush1.bf16.xpose.msra.mxu0 0
    %1695 = vmatprep.subr.bf16.mxu0 0
    %1696 = vmatpush1.bf16.xpose.msra.mxu0 0
    %1697 = vmatprep.subr.bf16.mxu0 0
    %1698 = vmatpush1.bf16.xpose.msra.mxu0 0
    %1699 = vmatprep.subr.bf16.mxu0 0
    %1700 = vmatpush1.bf16.xpose.msra.mxu0 0
    %1701 = vmatprep.subr.bf16.mxu0 0
    %1702 = vmatpush1.bf16.xpose.msra.mxu0 0
    %1703 = vmatprep.subr.bf16.mxu0 0
    %1704 = vmatpush1.bf16.xpose.msra.mxu0 0
    %1705 = vmatprep.subr.bf16.mxu0 0
    %1706 = vmatpush1.bf16.xpose.msra.mxu0 0
    %1707 = vmatprep.mubr.bf16.mxu0 0
    %1708 = vmatmul.mubr.bf16.gmra.mrb[0].mxu0 %v1670
    %v1709 = vpop.f32.mrb[0].mxu0
    %v1710 = vadd.f32 0.0, %v1709
    %v1711 = vpop.f32.mrb[0].mxu0
    %v1712 = vpop.f32.mrb[0].mxu0
    %v1713 = vpop.f32.mrb[0].mxu0
    %1714 = vdwg.mxu0
    %v1716 = vsel %vm1668, %v1661, 0
    %v1719 = vsel %vm1668, %v1665, 0
    %1721 = vmatprep.subr.bf16.mxu0 0
    %1722 = vmatpush1.bf16.xpose.msra.mxu0 %v1719
    %1723 = vmatprep.subr.bf16.mxu0 0
    %1724 = vmatpush1.bf16.xpose.msra.mxu0 0
    %1725 = vmatprep.subr.bf16.mxu0 0
    %1726 = vmatpush1.bf16.xpose.msra.mxu0 0
    %1727 = vmatprep.subr.bf16.mxu0 0
    %1728 = vmatpush1.bf16.xpose.msra.mxu0 0
    %1729 = vmatprep.subr.bf16.mxu0 0
    %1730 = vmatpush1.bf16.xpose.msra.mxu0 0
    %1731 = vmatprep.subr.bf16.mxu0 0
    %1732 = vmatpush1.bf16.xpose.msra.mxu0 0
    %1733 = vmatprep.subr.bf16.mxu0 0
    %1734 = vmatpush1.bf16.xpose.msra.mxu0 0
    %1735 = vmatprep.subr.bf16.mxu0 0
    %1736 = vmatpush1.bf16.xpose.msra.mxu0 0
    %1737 = vmatprep.subr.bf16.mxu0 0
    %1738 = vmatpush1.bf16.xpose.msra.mxu0 0
    %1739 = vmatprep.subr.bf16.mxu0 0
    %1740 = vmatpush1.bf16.xpose.msra.mxu0 0
    %1741 = vmatprep.subr.bf16.mxu0 0
    %1742 = vmatpush1.bf16.xpose.msra.mxu0 0
    %1743 = vmatprep.subr.bf16.mxu0 0
    %1744 = vmatpush1.bf16.xpose.msra.mxu0 0
    %1745 = vmatprep.subr.bf16.mxu0 0
    %1746 = vmatpush1.bf16.xpose.msra.mxu0 0
    %1747 = vmatprep.subr.bf16.mxu0 0
    %1748 = vmatpush1.bf16.xpose.msra.mxu0 0
    %1749 = vmatprep.subr.bf16.mxu0 0
    %1750 = vmatpush1.bf16.xpose.msra.mxu0 0
    %1751 = vmatprep.subr.bf16.mxu0 0
    %1752 = vmatpush1.bf16.xpose.msra.mxu0 0
    %1753 = vmatprep.mubr.bf16.mxu0 0
    %1754 = vmatmul.mubr.bf16.gmra.mrb[0].mxu0 %v1716
    %v1755 = vpop.f32.mrb[0].mxu0
    %v1756 = vadd.f32 0.0, %v1755
    %v1757 = vpop.f32.mrb[0].mxu0
    %v1758 = vpop.f32.mrb[0].mxu0
    %v1759 = vpop.f32.mrb[0].mxu0
    %1760 = vdwg.mxu0
    %v1762 = vsel %vm1668, %v1662, 0
    %v1765 = vsel %vm1668, %v1666, 0
    %1767 = vmatprep.subr.bf16.mxu0 0
    %1768 = vmatpush1.bf16.xpose.msra.mxu0 %v1765
    %1769 = vmatprep.subr.bf16.mxu0 0
    %1770 = vmatpush1.bf16.xpose.msra.mxu0 0
    %1771 = vmatprep.subr.bf16.mxu0 0
    %1772 = vmatpush1.bf16.xpose.msra.mxu0 0
    %1773 = vmatprep.subr.bf16.mxu0 0
    %1774 = vmatpush1.bf16.xpose.msra.mxu0 0
    %1775 = vmatprep.subr.bf16.mxu0 0
    %1776 = vmatpush1.bf16.xpose.msra.mxu0 0
    %1777 = vmatprep.subr.bf16.mxu0 0
    %1778 = vmatpush1.bf16.xpose.msra.mxu0 0
    %1779 = vmatprep.subr.bf16.mxu0 0
    %1780 = vmatpush1.bf16.xpose.msra.mxu0 0
    %1781 = vmatprep.subr.bf16.mxu0 0
    %1782 = vmatpush1.bf16.xpose.msra.mxu0 0
    %1783 = vmatprep.subr.bf16.mxu0 0
    %1784 = vmatpush1.bf16.xpose.msra.mxu0 0
    %1785 = vmatprep.subr.bf16.mxu0 0
    %1786 = vmatpush1.bf16.xpose.msra.mxu0 0
    %1787 = vmatprep.subr.bf16.mxu0 0
    %1788 = vmatpush1.bf16.xpose.msra.mxu0 0
    %1789 = vmatprep.subr.bf16.mxu0 0
    %1790 = vmatpush1.bf16.xpose.msra.mxu0 0
    %1791 = vmatprep.subr.bf16.mxu0 0
    %1792 = vmatpush1.bf16.xpose.msra.mxu0 0
    %1793 = vmatprep.subr.bf16.mxu0 0
    %1794 = vmatpush1.bf16.xpose.msra.mxu0 0
    %1795 = vmatprep.subr.bf16.mxu0 0
    %1796 = vmatpush1.bf16.xpose.msra.mxu0 0
    %1797 = vmatprep.subr.bf16.mxu0 0
    %1798 = vmatpush1.bf16.xpose.msra.mxu0 0
    %1799 = vmatprep.mubr.bf16.mxu0 0
    %1800 = vmatmul.mubr.bf16.gmra.mrb[0].mxu0 %v1762
    %v1801 = vpop.f32.mrb[0].mxu0
    %v1802 = vadd.f32 0.0, %v1801
    %v1803 = vpop.f32.mrb[0].mxu0
    %v1804 = vpop.f32.mrb[0].mxu0
    %v1805 = vpop.f32.mrb[0].mxu0
    %1806 = vdwg.mxu0
    %v1808 = vsel %vm1668, %v1663, 0
    %v1811 = vsel %vm1668, %v1667, 0
    %1813 = vmatprep.subr.bf16.mxu0 0
    %1814 = vmatpush1.bf16.xpose.msra.mxu0 %v1811
    %1815 = vmatprep.subr.bf16.mxu0 0
    %1816 = vmatpush1.bf16.xpose.msra.mxu0 0
    %1817 = vmatprep.subr.bf16.mxu0 0
    %1818 = vmatpush1.bf16.xpose.msra.mxu0 0
    %1819 = vmatprep.subr.bf16.mxu0 0
    %1820 = vmatpush1.bf16.xpose.msra.mxu0 0
    %1821 = vmatprep.subr.bf16.mxu0 0
    %1822 = vmatpush1.bf16.xpose.msra.mxu0 0
    %1823 = vmatprep.subr.bf16.mxu0 0
    %1824 = vmatpush1.bf16.xpose.msra.mxu0 0
    %1825 = vmatprep.subr.bf16.mxu0 0
    %1826 = vmatpush1.bf16.xpose.msra.mxu0 0
    %1827 = vmatprep.subr.bf16.mxu0 0
    %1828 = vmatpush1.bf16.xpose.msra.mxu0 0
    %1829 = vmatprep.subr.bf16.mxu0 0
    %1830 = vmatpush1.bf16.xpose.msra.mxu0 0
    %1831 = vmatprep.subr.bf16.mxu0 0
    %1832 = vmatpush1.bf16.xpose.msra.mxu0 0
    %1833 = vmatprep.subr.bf16.mxu0 0
    %1834 = vmatpush1.bf16.xpose.msra.mxu0 0
    %1835 = vmatprep.subr.bf16.mxu0 0
    %1836 = vmatpush1.bf16.xpose.msra.mxu0 0
    %1837 = vmatprep.subr.bf16.mxu0 0
    %1838 = vmatpush1.bf16.xpose.msra.mxu0 0
    %1839 = vmatprep.subr.bf16.mxu0 0
    %1840 = vmatpush1.bf16.xpose.msra.mxu0 0
    %1841 = vmatprep.subr.bf16.mxu0 0
    %1842 = vmatpush1.bf16.xpose.msra.mxu0 0
    %1843 = vmatprep.subr.bf16.mxu0 0
    %1844 = vmatpush1.bf16.xpose.msra.mxu0 0
    %1845 = vmatprep.mubr.bf16.mxu0 0
    %1846 = vmatmul.mubr.bf16.gmra.mrb[0].mxu0 %v1808
    %v1847 = vpop.f32.mrb[0].mxu0
    %v1848 = vadd.f32 0.0, %v1847
    %v1849 = vpop.f32.mrb[0].mxu0
    %v1850 = vpop.f32.mrb[0].mxu0
    %v1851 = vpop.f32.mrb[0].mxu0
    %1852 = vdwg.mxu0
    %v1853 = vmul.f32 %v1710, 0.35355338
    %v1854 = vmul.f32 %v1756, 0.35355338
    %v1855 = vmul.f32 %v1802, 0.35355338
    %v1856 = vmul.f32 %v1848, 0.35355338
    %v1858 = vlaneseq
    %v1859 = vshrl.u32 %v1858, 7
    %v1860 = vsub.s32 0, %v1859
    %v1861 = vrot.slane %v928, %v1860
    %v1863 = vadd.f32 %v1853, %v1861
    %v1864 = vadd.f32 %v1854, %v1861
    %v1865 = vadd.f32 %v1855, %v1861
    %v1866 = vadd.f32 %v1856, %v1861
    %vm1867 = vcmask 130048
    %v1868 = vsel %vm1867, %v1863, -inf
    %1869 = vmax.xlane.f32.xlu0 %v1868
    %v1870 = vpop.xlane.xlu0 %1869
    %v1871 = vsel %vm1867, %v1864, -inf
    %1872 = vmax.xlane.f32.xlu0 %v1871
    %v1873 = vpop.xlane.xlu0 %1872
    %v1874 = vsel %vm1867, %v1865, -inf
    %1875 = vmax.xlane.f32.xlu0 %v1874
    %v1876 = vpop.xlane.xlu0 %1875
    %v1877 = vsel %vm1867, %v1866, -inf
    %1878 = vmax.xlane.f32.xlu0 %v1877
    %v1879 = vpop.xlane.xlu0 %1878
    %v1880 = vsub.f32 %v1863, %v1870
    %v1881 = vsub.f32 %v1864, %v1873
    %v1882 = vsub.f32 %v1865, %v1876
    %v1883 = vsub.f32 %v1866, %v1879
    %v1884 = vmul.f32 %v1880, 1.442695
    %v1885 = vpow.pop %v1884
    %v1886 = vmul.f32 %v1881, 1.442695
    %v1887 = vpow.pop %v1886
    %v1888 = vmul.f32 %v1882, 1.442695
    %v1889 = vpow.pop %v1888
    %v1890 = vmul.f32 %v1883, 1.442695
    %v1891 = vpow.pop %v1890
    %v1892 = vsel %vm1867, %v1885, 0.0
    %1893 = vadd.xlane.f32.xlu0 %v1892
    %v1894 = vpop.xlane.xlu0 %1893
    %v1895 = vsel %vm1867, %v1887, 0.0
    %1896 = vadd.xlane.f32.xlu0 %v1895
    %v1897 = vpop.xlane.xlu0 %1896
    %v1898 = vsel %vm1867, %v1889, 0.0
    %1899 = vadd.xlane.f32.xlu0 %v1898
    %v1900 = vpop.xlane.xlu0 %1899
    %v1901 = vsel %vm1867, %v1891, 0.0
    %1902 = vadd.xlane.f32.xlu0 %v1901
    %v1903 = vpop.xlane.xlu0 %1902
    %v1904 = vrcp.pop %v1894
    %v1905 = vrcp.pop %v1897
    %v1906 = vrcp.pop %v1900
    %v1907 = vrcp.pop %v1903
    %v1908 = vmul.f32 %v1885, %v1904
    %v1909 = vmul.f32 %v1887, %v1905
    %v1910 = vmul.f32 %v1889, %v1906
    %v1911 = vmul.f32 %v1891, %v1907
    %1912 = vst.msk [vmem:[#allocation44] sm:$0xff] %vm1867, %v1908
    %1913 = vst.msk [vmem:[#allocation44 + $0x8] sm:$0xff] %vm1867, %v1909
    %1914 = vst.msk [vmem:[#allocation44 + $0x10] sm:$0xff] %vm1867, %v1910
    %1915 = vst.msk [vmem:[#allocation44 + $0x18] sm:$0xff] %vm1867, %v1911
    %v1916 = vpack.c.bf16 %v1908, %v1908
    %v1917 = vpack.c.bf16 %v1909, %v1909
    %v1918 = vpack.c.bf16 %v1910, %v1910
    %v1919 = vpack.c.bf16 %v1911, %v1911
    %v1920 = vpack.c.bf16 %v1656, %v1588
    %v1921 = vpack.c.bf16 %v1657, %v1589
    %v1922 = vpack.c.bf16 %v1658, %v1590
    %v1923 = vpack.c.bf16 %v1659, %v1591
    %v1925 = vsel %vm1867, %v1916, 0
    %1927 = vmatprep.subr.bf16.mxu0 0
    %1928 = vmatpush1.bf16.msra.mxu0 %v1920
    %1929 = vmatprep.subr.bf16.mxu0 0
    %1930 = vmatpush1.bf16.msra.mxu0 0
    %1931 = vmatprep.subr.bf16.mxu0 0
    %1932 = vmatpush1.bf16.msra.mxu0 0
    %1933 = vmatprep.subr.bf16.mxu0 0
    %1934 = vmatpush1.bf16.msra.mxu0 0
    %1935 = vmatprep.subr.bf16.mxu0 0
    %1936 = vmatpush1.bf16.msra.mxu0 0
    %1937 = vmatprep.subr.bf16.mxu0 0
    %1938 = vmatpush1.bf16.msra.mxu0 0
    %1939 = vmatprep.subr.bf16.mxu0 0
    %1940 = vmatpush1.bf16.msra.mxu0 0
    %1941 = vmatprep.subr.bf16.mxu0 0
    %1942 = vmatpush1.bf16.msra.mxu0 0
    %1943 = vmatprep.subr.bf16.mxu0 0
    %1944 = vmatpush1.bf16.msra.mxu0 0
    %1945 = vmatprep.subr.bf16.mxu0 0
    %1946 = vmatpush1.bf16.msra.mxu0 0
    %1947 = vmatprep.subr.bf16.mxu0 0
    %1948 = vmatpush1.bf16.msra.mxu0 0
    %1949 = vmatprep.subr.bf16.mxu0 0
    %1950 = vmatpush1.bf16.msra.mxu0 0
    %1951 = vmatprep.subr.bf16.mxu0 0
    %1952 = vmatpush1.bf16.msra.mxu0 0
    %1953 = vmatprep.subr.bf16.mxu0 0
    %1954 = vmatpush1.bf16.msra.mxu0 0
    %1955 = vmatprep.subr.bf16.mxu0 0
    %1956 = vmatpush1.bf16.msra.mxu0 0
    %1957 = vmatprep.subr.bf16.mxu0 0
    %1958 = vmatpush1.bf16.msra.mxu0 0
    %1959 = vmatprep.mubr.bf16.mxu0 0
    %1960 = vmatmul.mubr.bf16.gmra.mrb[0].mxu0 %v1925
    %v1961 = vpop.f32.mrb[0].mxu0
    %v1962 = vadd.f32 0.0, %v1961
    %v1963 = vpop.f32.mrb[0].mxu0
    %v1964 = vpop.f32.mrb[0].mxu0
    %v1965 = vpop.f32.mrb[0].mxu0
    %1966 = vdwg.mxu0
    %v1968 = vsel %vm1867, %v1917, 0
    %1970 = vmatprep.subr.bf16.mxu0 0
    %1971 = vmatpush1.bf16.msra.mxu0 %v1921
    %1972 = vmatprep.subr.bf16.mxu0 0
    %1973 = vmatpush1.bf16.msra.mxu0 0
    %1974 = vmatprep.subr.bf16.mxu0 0
    %1975 = vmatpush1.bf16.msra.mxu0 0
    %1976 = vmatprep.subr.bf16.mxu0 0
    %1977 = vmatpush1.bf16.msra.mxu0 0
    %1978 = vmatprep.subr.bf16.mxu0 0
    %1979 = vmatpush1.bf16.msra.mxu0 0
    %1980 = vmatprep.subr.bf16.mxu0 0
    %1981 = vmatpush1.bf16.msra.mxu0 0
    %1982 = vmatprep.subr.bf16.mxu0 0
    %1983 = vmatpush1.bf16.msra.mxu0 0
    %1984 = vmatprep.subr.bf16.mxu0 0
    %1985 = vmatpush1.bf16.msra.mxu0 0
    %1986 = vmatprep.subr.bf16.mxu0 0
    %1987 = vmatpush1.bf16.msra.mxu0 0
    %1988 = vmatprep.subr.bf16.mxu0 0
    %1989 = vmatpush1.bf16.msra.mxu0 0
    %1990 = vmatprep.subr.bf16.mxu0 0
    %1991 = vmatpush1.bf16.msra.mxu0 0
    %1992 = vmatprep.subr.bf16.mxu0 0
    %1993 = vmatpush1.bf16.msra.mxu0 0
    %1994 = vmatprep.subr.bf16.mxu0 0
    %1995 = vmatpush1.bf16.msra.mxu0 0
    %1996 = vmatprep.subr.bf16.mxu0 0
    %1997 = vmatpush1.bf16.msra.mxu0 0
    %1998 = vmatprep.subr.bf16.mxu0 0
    %1999 = vmatpush1.bf16.msra.mxu0 0
    %2000 = vmatprep.subr.bf16.mxu0 0
    %2001 = vmatpush1.bf16.msra.mxu0 0
    %2002 = vmatprep.mubr.bf16.mxu0 0
    %2003 = vmatmul.mubr.bf16.gmra.mrb[0].mxu0 %v1968
    %v2004 = vpop.f32.mrb[0].mxu0
    %v2005 = vadd.f32 0.0, %v2004
    %v2006 = vpop.f32.mrb[0].mxu0
    %v2007 = vpop.f32.mrb[0].mxu0
    %v2008 = vpop.f32.mrb[0].mxu0
    %2009 = vdwg.mxu0
    %v2011 = vsel %vm1867, %v1918, 0
    %2013 = vmatprep.subr.bf16.mxu0 0
    %2014 = vmatpush1.bf16.msra.mxu0 %v1922
    %2015 = vmatprep.subr.bf16.mxu0 0
    %2016 = vmatpush1.bf16.msra.mxu0 0
    %2017 = vmatprep.subr.bf16.mxu0 0
    %2018 = vmatpush1.bf16.msra.mxu0 0
    %2019 = vmatprep.subr.bf16.mxu0 0
    %2020 = vmatpush1.bf16.msra.mxu0 0
    %2021 = vmatprep.subr.bf16.mxu0 0
    %2022 = vmatpush1.bf16.msra.mxu0 0
    %2023 = vmatprep.subr.bf16.mxu0 0
    %2024 = vmatpush1.bf16.msra.mxu0 0
    %2025 = vmatprep.subr.bf16.mxu0 0
    %2026 = vmatpush1.bf16.msra.mxu0 0
    %2027 = vmatprep.subr.bf16.mxu0 0
    %2028 = vmatpush1.bf16.msra.mxu0 0
    %2029 = vmatprep.subr.bf16.mxu0 0
    %2030 = vmatpush1.bf16.msra.mxu0 0
    %2031 = vmatprep.subr.bf16.mxu0 0
    %2032 = vmatpush1.bf16.msra.mxu0 0
    %2033 = vmatprep.subr.bf16.mxu0 0
    %2034 = vmatpush1.bf16.msra.mxu0 0
    %2035 = vmatprep.subr.bf16.mxu0 0
    %2036 = vmatpush1.bf16.msra.mxu0 0
    %2037 = vmatprep.subr.bf16.mxu0 0
    %2038 = vmatpush1.bf16.msra.mxu0 0
    %2039 = vmatprep.subr.bf16.mxu0 0
    %2040 = vmatpush1.bf16.msra.mxu0 0
    %2041 = vmatprep.subr.bf16.mxu0 0
    %2042 = vmatpush1.bf16.msra.mxu0 0
    %2043 = vmatprep.subr.bf16.mxu0 0
    %2044 = vmatpush1.bf16.msra.mxu0 0
    %2045 = vmatprep.mubr.bf16.mxu0 0
    %2046 = vmatmul.mubr.bf16.gmra.mrb[0].mxu0 %v2011
    %v2047 = vpop.f32.mrb[0].mxu0
    %v2048 = vadd.f32 0.0, %v2047
    %v2049 = vpop.f32.mrb[0].mxu0
    %v2050 = vpop.f32.mrb[0].mxu0
    %v2051 = vpop.f32.mrb[0].mxu0
    %2052 = vdwg.mxu0
    %v2054 = vsel %vm1867, %v1919, 0
    %2056 = vmatprep.subr.bf16.mxu0 0
    %2057 = vmatpush1.bf16.msra.mxu0 %v1923
    %2058 = vmatprep.subr.bf16.mxu0 0
    %2059 = vmatpush1.bf16.msra.mxu0 0
    %2060 = vmatprep.subr.bf16.mxu0 0
    %2061 = vmatpush1.bf16.msra.mxu0 0
    %2062 = vmatprep.subr.bf16.mxu0 0
    %2063 = vmatpush1.bf16.msra.mxu0 0
    %2064 = vmatprep.subr.bf16.mxu0 0
    %2065 = vmatpush1.bf16.msra.mxu0 0
    %2066 = vmatprep.subr.bf16.mxu0 0
    %2067 = vmatpush1.bf16.msra.mxu0 0
    %2068 = vmatprep.subr.bf16.mxu0 0
    %2069 = vmatpush1.bf16.msra.mxu0 0
    %2070 = vmatprep.subr.bf16.mxu0 0
    %2071 = vmatpush1.bf16.msra.mxu0 0
    %2072 = vmatprep.subr.bf16.mxu0 0
    %2073 = vmatpush1.bf16.msra.mxu0 0
    %2074 = vmatprep.subr.bf16.mxu0 0
    %2075 = vmatpush1.bf16.msra.mxu0 0
    %2076 = vmatprep.subr.bf16.mxu0 0
    %2077 = vmatpush1.bf16.msra.mxu0 0
    %2078 = vmatprep.subr.bf16.mxu0 0
    %2079 = vmatpush1.bf16.msra.mxu0 0
    %2080 = vmatprep.subr.bf16.mxu0 0
    %2081 = vmatpush1.bf16.msra.mxu0 0
    %2082 = vmatprep.subr.bf16.mxu0 0
    %2083 = vmatpush1.bf16.msra.mxu0 0
    %2084 = vmatprep.subr.bf16.mxu0 0
    %2085 = vmatpush1.bf16.msra.mxu0 0
    %2086 = vmatprep.subr.bf16.mxu0 0
    %2087 = vmatpush1.bf16.msra.mxu0 0
    %2088 = vmatprep.mubr.bf16.mxu0 0
    %2089 = vmatmul.mubr.bf16.gmra.mrb[0].mxu0 %v2054
    %v2090 = vpop.f32.mrb[0].mxu0
    %v2091 = vadd.f32 0.0, %v2090
    %v2092 = vpop.f32.mrb[0].mxu0
    %v2093 = vpop.f32.mrb[0].mxu0
    %v2094 = vpop.f32.mrb[0].mxu0
    %2095 = vdwg.mxu0
    %v2096 = vcombine.low %v1962, %v2048
    %v2097 = vcombine.high %v1962, %v2048
    %v2099 = vunpack.c.l.s4 1983009808
    %v2100 = vunpack.c.0.s8 %v2099
    %v2101 = vlaneseq
    %v2102 = vshrl.u32 %v2101, 7
    %v2103 = vsub.s32 %v2100, %v2102
    %v2104 = vrot.slane %v2096, %v2103
    %v2106 = vunpack.c.l.s4 1983009808
    %v2107 = vunpack.c.0.s8 %v2106
    %v2108 = vlaneseq
    %v2109 = vshrl.u32 %v2108, 7
    %v2110 = vsub.s32 %v2107, %v2109
    %v2111 = vrot.slane %v2097, %v2110
    %v2112 = vcombine.low %v2005, %v2091
    %v2113 = vcombine.high %v2005, %v2091
    %v2115 = vunpack.c.l.s4 1983009808
    %v2116 = vunpack.c.0.s8 %v2115
    %v2117 = vlaneseq
    %v2118 = vshrl.u32 %v2117, 7
    %v2119 = vsub.s32 %v2116, %v2118
    %v2120 = vrot.slane %v2112, %v2119
    %v2122 = vunpack.c.l.s4 1983009808
    %v2123 = vunpack.c.0.s8 %v2122
    %v2124 = vlaneseq
    %v2125 = vshrl.u32 %v2124, 7
    %v2126 = vsub.s32 %v2123, %v2125
    %v2127 = vrot.slane %v2113, %v2126
    %v2128 = vcombine.low %v2104, %v2120
    %v2129 = vcombine.high %v2104, %v2120
    %v2131 = vunpack.c.l.s4 1934713408
    %v2132 = vunpack.c.0.s8 %v2131
    %v2133 = vlaneseq
    %v2134 = vshrl.u32 %v2133, 7
    %v2135 = vsub.s32 %v2132, %v2134
    %v2136 = vrot.slane %v2128, %v2135
    %v2138 = vunpack.c.l.s4 1934713408
    %v2139 = vunpack.c.0.s8 %v2138
    %v2140 = vlaneseq
    %v2141 = vshrl.u32 %v2140, 7
    %v2142 = vsub.s32 %v2139, %v2141
    %v2143 = vrot.slane %v2129, %v2142
    %v2144 = vcombine.low %v2111, %v2127
    %v2145 = vcombine.high %v2111, %v2127
    %v2147 = vunpack.c.l.s4 1934713408
    %v2148 = vunpack.c.0.s8 %v2147
    %v2149 = vlaneseq
    %v2150 = vshrl.u32 %v2149, 7
    %v2151 = vsub.s32 %v2148, %v2150
    %v2152 = vrot.slane %v2144, %v2151
    %v2154 = vunpack.c.l.s4 1934713408
    %v2155 = vunpack.c.0.s8 %v2154
    %v2156 = vlaneseq
    %v2157 = vshrl.u32 %v2156, 7
    %v2158 = vsub.s32 %v2155, %v2157
    %v2159 = vrot.slane %v2145, %v2158
    %v2160 = vcombine.high %v2136, 0.0
    %v2161 = vcombine.high %v2143, 0.0
    %v2162 = vcombine.high %v2152, 0.0
    %v2163 = vcombine.high %v2159, 0.0
    %v2164 = vcombine.low %v2136, %v2143
    %v2166 = vunpack.c.l.s4 1983009808
    %v2167 = vunpack.c.0.s8 %v2166
    %v2168 = vlaneseq
    %v2169 = vshrl.u32 %v2168, 7
    %v2170 = vsub.s32 %v2167, %v2169
    %v2171 = vrot.slane %v2164, %v2170
    %v2172 = vcombine.low %v2160, %v2161
    %v2174 = vunpack.c.l.s4 1983009808
    %v2175 = vunpack.c.0.s8 %v2174
    %v2176 = vlaneseq
    %v2177 = vshrl.u32 %v2176, 7
    %v2178 = vsub.s32 %v2175, %v2177
    %v2179 = vrot.slane %v2172, %v2178
    %v2180 = vcombine.low %v2152, %v2159
    %v2182 = vunpack.c.l.s4 1983009808
    %v2183 = vunpack.c.0.s8 %v2182
    %v2184 = vlaneseq
    %v2185 = vshrl.u32 %v2184, 7
    %v2186 = vsub.s32 %v2183, %v2185
    %v2187 = vrot.slane %v2180, %v2186
    %v2188 = vcombine.low %v2162, %v2163
    %v2190 = vunpack.c.l.s4 1983009808
    %v2191 = vunpack.c.0.s8 %v2190
    %v2192 = vlaneseq
    %v2193 = vshrl.u32 %v2192, 7
    %v2194 = vsub.s32 %v2191, %v2193
    %v2195 = vrot.slane %v2188, %v2194
    %v2196 = vcombine.low %v2171, %v2179
    %v2197 = vcombine.high %v2171, %v2179
    %v2199 = vunpack.c.l.s4 1934713408
    %v2200 = vunpack.c.0.s8 %v2199
    %v2201 = vlaneseq
    %v2202 = vshrl.u32 %v2201, 7
    %v2203 = vsub.s32 %v2200, %v2202
    %v2204 = vrot.slane %v2196, %v2203
    %v2206 = vunpack.c.l.s4 1934713408
    %v2207 = vunpack.c.0.s8 %v2206
    %v2208 = vlaneseq
    %v2209 = vshrl.u32 %v2208, 7
    %v2210 = vsub.s32 %v2207, %v2209
    %v2211 = vrot.slane %v2197, %v2210
    %v2212 = vcombine.low %v2187, %v2195
    %v2213 = vcombine.high %v2187, %v2195
    %v2215 = vunpack.c.l.s4 1934713408
    %v2216 = vunpack.c.0.s8 %v2215
    %v2217 = vlaneseq
    %v2218 = vshrl.u32 %v2217, 7
    %v2219 = vsub.s32 %v2216, %v2218
    %v2220 = vrot.slane %v2212, %v2219
    %v2222 = vunpack.c.l.s4 1934713408
    %v2223 = vunpack.c.0.s8 %v2222
    %v2224 = vlaneseq
    %v2225 = vshrl.u32 %v2224, 7
    %v2226 = vsub.s32 %v2223, %v2225
    %v2227 = vrot.slane %v2213, %v2226
    %v2228 = vcombine.low %v2204, %v2220
    %v2229 = vcombine.high %v2204, %v2220
    %v2230 = vcombine.low %v2211, %v2227
    %v2231 = vcombine.high %v2211, %v2227
    %2233 = vrot.lane.b32.xlu0 %v2229, 8
    %v2234 = vpop.permute.xlu0 %2233
    %2237 = vrot.lane.b32.xlu0 %v2230, 16
    %v2238 = vpop.permute.xlu0 %2237
    %2241 = vrot.lane.b32.xlu0 %v2231, 24
    %v2242 = vpop.permute.xlu0 %2241
    %v2244 = vsel %vm1668, %v2228, %v2234
    %v2245 = vsel %vm1867, %v2244, %v2238
    %vm2246 = vcmask 195584
    %v2247 = vsel %vm2246, %v2245, %v2242
    %2249 = vrot.lane.b32.xlu0 %v769, 120
    %v2250 = vpop.permute.xlu0 %2249
    %2252 = vrot.lane.b32.xlu0 %v769, 112
    %v2253 = vpop.permute.xlu0 %2252
    %2255 = vrot.lane.b32.xlu0 %v769, 104
    %v2256 = vpop.permute.xlu0 %2255
    %v2258 = vcombine.low %v769, %v2253
    %v2259 = vcombine.high %v769, %v2253
    %v2261 = vunpack.c.l.s4 1983009808
    %v2262 = vunpack.c.0.s8 %v2261
    %v2263 = vlaneseq
    %v2264 = vshrl.u32 %v2263, 7
    %v2265 = vsub.s32 %v2262, %v2264
    %v2266 = vrot.slane %v2258, %v2265
    %v2268 = vunpack.c.l.s4 1983009808
    %v2269 = vunpack.c.0.s8 %v2268
    %v2270 = vlaneseq
    %v2271 = vshrl.u32 %v2270, 7
    %v2272 = vsub.s32 %v2269, %v2271
    %v2273 = vrot.slane %v2259, %v2272
    %v2274 = vcombine.low %v2250, %v2256
    %v2275 = vcombine.high %v2250, %v2256
    %v2277 = vunpack.c.l.s4 1983009808
    %v2278 = vunpack.c.0.s8 %v2277
    %v2279 = vlaneseq
    %v2280 = vshrl.u32 %v2279, 7
    %v2281 = vsub.s32 %v2278, %v2280
    %v2282 = vrot.slane %v2274, %v2281
    %v2284 = vunpack.c.l.s4 1983009808
    %v2285 = vunpack.c.0.s8 %v2284
    %v2286 = vlaneseq
    %v2287 = vshrl.u32 %v2286, 7
    %v2288 = vsub.s32 %v2285, %v2287
    %v2289 = vrot.slane %v2275, %v2288
    %v2290 = vcombine.low %v2266, %v2282
    %v2291 = vcombine.high %v2266, %v2282
    %v2293 = vunpack.c.l.s4 1934713408
    %v2294 = vunpack.c.0.s8 %v2293
    %v2295 = vlaneseq
    %v2296 = vshrl.u32 %v2295, 7
    %v2297 = vsub.s32 %v2294, %v2296
    %v2298 = vrot.slane %v2290, %v2297
    %v2300 = vunpack.c.l.s4 1934713408
    %v2301 = vunpack.c.0.s8 %v2300
    %v2302 = vlaneseq
    %v2303 = vshrl.u32 %v2302, 7
    %v2304 = vsub.s32 %v2301, %v2303
    %v2305 = vrot.slane %v2291, %v2304
    %v2306 = vcombine.low %v2273, %v2289
    %v2307 = vcombine.high %v2273, %v2289
    %v2309 = vunpack.c.l.s4 1934713408
    %v2310 = vunpack.c.0.s8 %v2309
    %v2311 = vlaneseq
    %v2312 = vshrl.u32 %v2311, 7
    %v2313 = vsub.s32 %v2310, %v2312
    %v2314 = vrot.slane %v2306, %v2313
    %v2316 = vunpack.c.l.s4 1934713408
    %v2317 = vunpack.c.0.s8 %v2316
    %v2318 = vlaneseq
    %v2319 = vshrl.u32 %v2318, 7
    %v2320 = vsub.s32 %v2317, %v2319
    %v2321 = vrot.slane %v2307, %v2320
    %v2322 = vcombine.high %v2298, 0.0
    %v2323 = vcombine.high %v2305, 0.0
    %v2324 = vcombine.high %v2314, 0.0
    %v2325 = vcombine.high %v2321, 0.0
    %v2326 = vcombine.low %v2298, %v2305
    %v2328 = vunpack.c.l.s4 1983009808
    %v2329 = vunpack.c.0.s8 %v2328
    %v2330 = vlaneseq
    %v2331 = vshrl.u32 %v2330, 7
    %v2332 = vsub.s32 %v2329, %v2331
    %v2333 = vrot.slane %v2326, %v2332
    %v2334 = vcombine.low %v2322, %v2323
    %v2336 = vunpack.c.l.s4 1983009808
    %v2337 = vunpack.c.0.s8 %v2336
    %v2338 = vlaneseq
    %v2339 = vshrl.u32 %v2338, 7
    %v2340 = vsub.s32 %v2337, %v2339
    %v2341 = vrot.slane %v2334, %v2340
    %v2342 = vcombine.low %v2314, %v2321
    %v2344 = vunpack.c.l.s4 1983009808
    %v2345 = vunpack.c.0.s8 %v2344
    %v2346 = vlaneseq
    %v2347 = vshrl.u32 %v2346, 7
    %v2348 = vsub.s32 %v2345, %v2347
    %v2349 = vrot.slane %v2342, %v2348
    %v2350 = vcombine.low %v2324, %v2325
    %v2352 = vunpack.c.l.s4 1983009808
    %v2353 = vunpack.c.0.s8 %v2352
    %v2354 = vlaneseq
    %v2355 = vshrl.u32 %v2354, 7
    %v2356 = vsub.s32 %v2353, %v2355
    %v2357 = vrot.slane %v2350, %v2356
    %v2358 = vcombine.low %v2333, %v2341
    %v2359 = vcombine.high %v2333, %v2341
    %v2361 = vunpack.c.l.s4 1934713408
    %v2362 = vunpack.c.0.s8 %v2361
    %v2363 = vlaneseq
    %v2364 = vshrl.u32 %v2363, 7
    %v2365 = vsub.s32 %v2362, %v2364
    %v2366 = vrot.slane %v2358, %v2365
    %v2368 = vunpack.c.l.s4 1934713408
    %v2369 = vunpack.c.0.s8 %v2368
    %v2370 = vlaneseq
    %v2371 = vshrl.u32 %v2370, 7
    %v2372 = vsub.s32 %v2369, %v2371
    %v2373 = vrot.slane %v2359, %v2372
    %v2374 = vcombine.low %v2349, %v2357
    %v2375 = vcombine.high %v2349, %v2357
    %v2377 = vunpack.c.l.s4 1934713408
    %v2378 = vunpack.c.0.s8 %v2377
    %v2379 = vlaneseq
    %v2380 = vshrl.u32 %v2379, 7
    %v2381 = vsub.s32 %v2378, %v2380
    %v2382 = vrot.slane %v2374, %v2381
    %v2384 = vunpack.c.l.s4 1934713408
    %v2385 = vunpack.c.0.s8 %v2384
    %v2386 = vlaneseq
    %v2387 = vshrl.u32 %v2386, 7
    %v2388 = vsub.s32 %v2385, %v2387
    %v2389 = vrot.slane %v2375, %v2388
    %v2390 = vcombine.low %v2366, %v2382
    %v2391 = vcombine.high %v2366, %v2382
    %v2392 = vcombine.low %v2373, %v2389
    %v2393 = vcombine.high %v2373, %v2389
    %2396 = vrot.lane.b32.xlu0 %v846, 120
    %v2397 = vpop.permute.xlu0 %2396
    %2398 = vrot.lane.b32.xlu0 %v849, 120
    %v2399 = vpop.permute.xlu0 %2398
    %2402 = vrot.lane.b32.xlu0 %v846, 112
    %v2403 = vpop.permute.xlu0 %2402
    %2404 = vrot.lane.b32.xlu0 %v849, 112
    %v2405 = vpop.permute.xlu0 %2404
    %2408 = vrot.lane.b32.xlu0 %v846, 104
    %v2409 = vpop.permute.xlu0 %2408
    %2410 = vrot.lane.b32.xlu0 %v849, 104
    %v2411 = vpop.permute.xlu0 %2410
    %v2414 = vcombine.low %v846, %v2403
    %v2415 = vcombine.high %v846, %v2403
    %v2417 = vunpack.c.l.s4 1983009808
    %v2418 = vunpack.c.0.s8 %v2417
    %v2419 = vlaneseq
    %v2420 = vshrl.u32 %v2419, 7
    %v2421 = vsub.s32 %v2418, %v2420
    %v2422 = vrot.slane %v2414, %v2421
    %v2424 = vunpack.c.l.s4 1983009808
    %v2425 = vunpack.c.0.s8 %v2424
    %v2426 = vlaneseq
    %v2427 = vshrl.u32 %v2426, 7
    %v2428 = vsub.s32 %v2425, %v2427
    %v2429 = vrot.slane %v2415, %v2428
    %v2430 = vcombine.low %v2397, %v2409
    %v2431 = vcombine.high %v2397, %v2409
    %v2433 = vunpack.c.l.s4 1983009808
    %v2434 = vunpack.c.0.s8 %v2433
    %v2435 = vlaneseq
    %v2436 = vshrl.u32 %v2435, 7
    %v2437 = vsub.s32 %v2434, %v2436
    %v2438 = vrot.slane %v2430, %v2437
    %v2440 = vunpack.c.l.s4 1983009808
    %v2441 = vunpack.c.0.s8 %v2440
    %v2442 = vlaneseq
    %v2443 = vshrl.u32 %v2442, 7
    %v2444 = vsub.s32 %v2441, %v2443
    %v2445 = vrot.slane %v2431, %v2444
    %v2446 = vcombine.low %v2422, %v2438
    %v2447 = vcombine.high %v2422, %v2438
    %v2449 = vunpack.c.l.s4 1934713408
    %v2450 = vunpack.c.0.s8 %v2449
    %v2451 = vlaneseq
    %v2452 = vshrl.u32 %v2451, 7
    %v2453 = vsub.s32 %v2450, %v2452
    %v2454 = vrot.slane %v2446, %v2453
    %v2456 = vunpack.c.l.s4 1934713408
    %v2457 = vunpack.c.0.s8 %v2456
    %v2458 = vlaneseq
    %v2459 = vshrl.u32 %v2458, 7
    %v2460 = vsub.s32 %v2457, %v2459
    %v2461 = vrot.slane %v2447, %v2460
    %v2462 = vcombine.low %v2429, %v2445
    %v2463 = vcombine.high %v2429, %v2445
    %v2465 = vunpack.c.l.s4 1934713408
    %v2466 = vunpack.c.0.s8 %v2465
    %v2467 = vlaneseq
    %v2468 = vshrl.u32 %v2467, 7
    %v2469 = vsub.s32 %v2466, %v2468
    %v2470 = vrot.slane %v2462, %v2469
    %v2472 = vunpack.c.l.s4 1934713408
    %v2473 = vunpack.c.0.s8 %v2472
    %v2474 = vlaneseq
    %v2475 = vshrl.u32 %v2474, 7
    %v2476 = vsub.s32 %v2473, %v2475
    %v2477 = vrot.slane %v2463, %v2476
    %v2478 = vcombine.high %v2454, 0.0
    %v2479 = vcombine.high %v2461, 0.0
    %v2480 = vcombine.high %v2470, 0.0
    %v2481 = vcombine.high %v2477, 0.0
    %v2482 = vcombine.low %v849, %v2405
    %v2483 = vcombine.high %v849, %v2405
    %v2485 = vunpack.c.l.s4 1983009808
    %v2486 = vunpack.c.0.s8 %v2485
    %v2487 = vlaneseq
    %v2488 = vshrl.u32 %v2487, 7
    %v2489 = vsub.s32 %v2486, %v2488
    %v2490 = vrot.slane %v2482, %v2489
    %v2492 = vunpack.c.l.s4 1983009808
    %v2493 = vunpack.c.0.s8 %v2492
    %v2494 = vlaneseq
    %v2495 = vshrl.u32 %v2494, 7
    %v2496 = vsub.s32 %v2493, %v2495
    %v2497 = vrot.slane %v2483, %v2496
    %v2498 = vcombine.low %v2399, %v2411
    %v2499 = vcombine.high %v2399, %v2411
    %v2501 = vunpack.c.l.s4 1983009808
    %v2502 = vunpack.c.0.s8 %v2501
    %v2503 = vlaneseq
    %v2504 = vshrl.u32 %v2503, 7
    %v2505 = vsub.s32 %v2502, %v2504
    %v2506 = vrot.slane %v2498, %v2505
    %v2508 = vunpack.c.l.s4 1983009808
    %v2509 = vunpack.c.0.s8 %v2508
    %v2510 = vlaneseq
    %v2511 = vshrl.u32 %v2510, 7
    %v2512 = vsub.s32 %v2509, %v2511
    %v2513 = vrot.slane %v2499, %v2512
    %v2514 = vcombine.low %v2490, %v2506
    %v2515 = vcombine.high %v2490, %v2506
    %v2517 = vunpack.c.l.s4 1934713408
    %v2518 = vunpack.c.0.s8 %v2517
    %v2519 = vlaneseq
    %v2520 = vshrl.u32 %v2519, 7
    %v2521 = vsub.s32 %v2518, %v2520
    %v2522 = vrot.slane %v2514, %v2521
    %v2524 = vunpack.c.l.s4 1934713408
    %v2525 = vunpack.c.0.s8 %v2524
    %v2526 = vlaneseq
    %v2527 = vshrl.u32 %v2526, 7
    %v2528 = vsub.s32 %v2525, %v2527
    %v2529 = vrot.slane %v2515, %v2528
    %v2530 = vcombine.low %v2497, %v2513
    %v2531 = vcombine.high %v2497, %v2513
    %v2533 = vunpack.c.l.s4 1934713408
    %v2534 = vunpack.c.0.s8 %v2533
    %v2535 = vlaneseq
    %v2536 = vshrl.u32 %v2535, 7
    %v2537 = vsub.s32 %v2534, %v2536
    %v2538 = vrot.slane %v2530, %v2537
    %v2540 = vunpack.c.l.s4 1934713408
    %v2541 = vunpack.c.0.s8 %v2540
    %v2542 = vlaneseq
    %v2543 = vshrl.u32 %v2542, 7
    %v2544 = vsub.s32 %v2541, %v2543
    %v2545 = vrot.slane %v2531, %v2544
    %v2546 = vcombine.high %v2522, 0.0
    %v2547 = vcombine.high %v2529, 0.0
    %v2548 = vcombine.high %v2538, 0.0
    %v2549 = vcombine.high %v2545, 0.0
    %v2550 = vcombine.low %v2454, %v2461
    %v2552 = vunpack.c.l.s4 1983009808
    %v2553 = vunpack.c.0.s8 %v2552
    %v2554 = vlaneseq
    %v2555 = vshrl.u32 %v2554, 7
    %v2556 = vsub.s32 %v2553, %v2555
    %v2557 = vrot.slane %v2550, %v2556
    %v2558 = vcombine.low %v2478, %v2479
    %v2560 = vunpack.c.l.s4 1983009808
    %v2561 = vunpack.c.0.s8 %v2560
    %v2562 = vlaneseq
    %v2563 = vshrl.u32 %v2562, 7
    %v2564 = vsub.s32 %v2561, %v2563
    %v2565 = vrot.slane %v2558, %v2564
    %v2566 = vcombine.low %v2470, %v2477
    %v2568 = vunpack.c.l.s4 1983009808
    %v2569 = vunpack.c.0.s8 %v2568
    %v2570 = vlaneseq
    %v2571 = vshrl.u32 %v2570, 7
    %v2572 = vsub.s32 %v2569, %v2571
    %v2573 = vrot.slane %v2566, %v2572
    %v2574 = vcombine.low %v2480, %v2481
    %v2576 = vunpack.c.l.s4 1983009808
    %v2577 = vunpack.c.0.s8 %v2576
    %v2578 = vlaneseq
    %v2579 = vshrl.u32 %v2578, 7
    %v2580 = vsub.s32 %v2577, %v2579
    %v2581 = vrot.slane %v2574, %v2580
    %v2582 = vcombine.low %v2557, %v2565
    %v2583 = vcombine.high %v2557, %v2565
    %v2585 = vunpack.c.l.s4 1934713408
    %v2586 = vunpack.c.0.s8 %v2585
    %v2587 = vlaneseq
    %v2588 = vshrl.u32 %v2587, 7
    %v2589 = vsub.s32 %v2586, %v2588
    %v2590 = vrot.slane %v2582, %v2589
    %v2592 = vunpack.c.l.s4 1934713408
    %v2593 = vunpack.c.0.s8 %v2592
    %v2594 = vlaneseq
    %v2595 = vshrl.u32 %v2594, 7
    %v2596 = vsub.s32 %v2593, %v2595
    %v2597 = vrot.slane %v2583, %v2596
    %v2598 = vcombine.low %v2573, %v2581
    %v2599 = vcombine.high %v2573, %v2581
    %v2601 = vunpack.c.l.s4 1934713408
    %v2602 = vunpack.c.0.s8 %v2601
    %v2603 = vlaneseq
    %v2604 = vshrl.u32 %v2603, 7
    %v2605 = vsub.s32 %v2602, %v2604
    %v2606 = vrot.slane %v2598, %v2605
    %v2608 = vunpack.c.l.s4 1934713408
    %v2609 = vunpack.c.0.s8 %v2608
    %v2610 = vlaneseq
    %v2611 = vshrl.u32 %v2610, 7
    %v2612 = vsub.s32 %v2609, %v2611
    %v2613 = vrot.slane %v2599, %v2612
    %v2614 = vcombine.low %v2590, %v2606
    %v2615 = vcombine.high %v2590, %v2606
    %v2616 = vcombine.low %v2597, %v2613
    %v2617 = vcombine.high %v2597, %v2613
    %v2618 = vcombine.low %v2522, %v2529
    %v2620 = vunpack.c.l.s4 1983009808
    %v2621 = vunpack.c.0.s8 %v2620
    %v2622 = vlaneseq
    %v2623 = vshrl.u32 %v2622, 7
    %v2624 = vsub.s32 %v2621, %v2623
    %v2625 = vrot.slane %v2618, %v2624
    %v2626 = vcombine.low %v2546, %v2547
    %v2628 = vunpack.c.l.s4 1983009808
    %v2629 = vunpack.c.0.s8 %v2628
    %v2630 = vlaneseq
    %v2631 = vshrl.u32 %v2630, 7
    %v2632 = vsub.s32 %v2629, %v2631
    %v2633 = vrot.slane %v2626, %v2632
    %v2634 = vcombine.low %v2538, %v2545
    %v2636 = vunpack.c.l.s4 1983009808
    %v2637 = vunpack.c.0.s8 %v2636
    %v2638 = vlaneseq
    %v2639 = vshrl.u32 %v2638, 7
    %v2640 = vsub.s32 %v2637, %v2639
    %v2641 = vrot.slane %v2634, %v2640
    %v2642 = vcombine.low %v2548, %v2549
    %v2644 = vunpack.c.l.s4 1983009808
    %v2645 = vunpack.c.0.s8 %v2644
    %v2646 = vlaneseq
    %v2647 = vshrl.u32 %v2646, 7
    %v2648 = vsub.s32 %v2645, %v2647
    %v2649 = vrot.slane %v2642, %v2648
    %v2650 = vcombine.low %v2625, %v2633
    %v2651 = vcombine.high %v2625, %v2633
    %v2653 = vunpack.c.l.s4 1934713408
    %v2654 = vunpack.c.0.s8 %v2653
    %v2655 = vlaneseq
    %v2656 = vshrl.u32 %v2655, 7
    %v2657 = vsub.s32 %v2654, %v2656
    %v2658 = vrot.slane %v2650, %v2657
    %v2660 = vunpack.c.l.s4 1934713408
    %v2661 = vunpack.c.0.s8 %v2660
    %v2662 = vlaneseq
    %v2663 = vshrl.u32 %v2662, 7
    %v2664 = vsub.s32 %v2661, %v2663
    %v2665 = vrot.slane %v2651, %v2664
    %v2666 = vcombine.low %v2641, %v2649
    %v2667 = vcombine.high %v2641, %v2649
    %v2669 = vunpack.c.l.s4 1934713408
    %v2670 = vunpack.c.0.s8 %v2669
    %v2671 = vlaneseq
    %v2672 = vshrl.u32 %v2671, 7
    %v2673 = vsub.s32 %v2670, %v2672
    %v2674 = vrot.slane %v2666, %v2673
    %v2676 = vunpack.c.l.s4 1934713408
    %v2677 = vunpack.c.0.s8 %v2676
    %v2678 = vlaneseq
    %v2679 = vshrl.u32 %v2678, 7
    %v2680 = vsub.s32 %v2677, %v2679
    %v2681 = vrot.slane %v2667, %v2680
    %v2682 = vcombine.low %v2658, %v2674
    %v2683 = vcombine.high %v2658, %v2674
    %v2684 = vcombine.low %v2665, %v2681
    %v2685 = vcombine.high %v2665, %v2681
    %2688 = vrot.lane.b32.xlu0 %v918, 120
    %v2689 = vpop.permute.xlu0 %2688
    %2690 = vrot.lane.b32.xlu0 %v921, 120
    %v2691 = vpop.permute.xlu0 %2690
    %2694 = vrot.lane.b32.xlu0 %v918, 112
    %v2695 = vpop.permute.xlu0 %2694
    %2696 = vrot.lane.b32.xlu0 %v921, 112
    %v2697 = vpop.permute.xlu0 %2696
    %2700 = vrot.lane.b32.xlu0 %v918, 104
    %v2701 = vpop.permute.xlu0 %2700
    %2702 = vrot.lane.b32.xlu0 %v921, 104
    %v2703 = vpop.permute.xlu0 %2702
    %v2706 = vcombine.low %v918, %v2695
    %v2707 = vcombine.high %v918, %v2695
    %v2709 = vunpack.c.l.s4 1983009808
    %v2710 = vunpack.c.0.s8 %v2709
    %v2711 = vlaneseq
    %v2712 = vshrl.u32 %v2711, 7
    %v2713 = vsub.s32 %v2710, %v2712
    %v2714 = vrot.slane %v2706, %v2713
    %v2716 = vunpack.c.l.s4 1983009808
    %v2717 = vunpack.c.0.s8 %v2716
    %v2718 = vlaneseq
    %v2719 = vshrl.u32 %v2718, 7
    %v2720 = vsub.s32 %v2717, %v2719
    %v2721 = vrot.slane %v2707, %v2720
    %v2722 = vcombine.low %v2689, %v2701
    %v2723 = vcombine.high %v2689, %v2701
    %v2725 = vunpack.c.l.s4 1983009808
    %v2726 = vunpack.c.0.s8 %v2725
    %v2727 = vlaneseq
    %v2728 = vshrl.u32 %v2727, 7
    %v2729 = vsub.s32 %v2726, %v2728
    %v2730 = vrot.slane %v2722, %v2729
    %v2732 = vunpack.c.l.s4 1983009808
    %v2733 = vunpack.c.0.s8 %v2732
    %v2734 = vlaneseq
    %v2735 = vshrl.u32 %v2734, 7
    %v2736 = vsub.s32 %v2733, %v2735
    %v2737 = vrot.slane %v2723, %v2736
    %v2738 = vcombine.low %v2714, %v2730
    %v2739 = vcombine.high %v2714, %v2730
    %v2741 = vunpack.c.l.s4 1934713408
    %v2742 = vunpack.c.0.s8 %v2741
    %v2743 = vlaneseq
    %v2744 = vshrl.u32 %v2743, 7
    %v2745 = vsub.s32 %v2742, %v2744
    %v2746 = vrot.slane %v2738, %v2745
    %v2748 = vunpack.c.l.s4 1934713408
    %v2749 = vunpack.c.0.s8 %v2748
    %v2750 = vlaneseq
    %v2751 = vshrl.u32 %v2750, 7
    %v2752 = vsub.s32 %v2749, %v2751
    %v2753 = vrot.slane %v2739, %v2752
    %v2754 = vcombine.low %v2721, %v2737
    %v2755 = vcombine.high %v2721, %v2737
    %v2757 = vunpack.c.l.s4 1934713408
    %v2758 = vunpack.c.0.s8 %v2757
    %v2759 = vlaneseq
    %v2760 = vshrl.u32 %v2759, 7
    %v2761 = vsub.s32 %v2758, %v2760
    %v2762 = vrot.slane %v2754, %v2761
    %v2764 = vunpack.c.l.s4 1934713408
    %v2765 = vunpack.c.0.s8 %v2764
    %v2766 = vlaneseq
    %v2767 = vshrl.u32 %v2766, 7
    %v2768 = vsub.s32 %v2765, %v2767
    %v2769 = vrot.slane %v2755, %v2768
    %v2770 = vcombine.high %v2746, 0.0
    %v2771 = vcombine.high %v2753, 0.0
    %v2772 = vcombine.high %v2762, 0.0
    %v2773 = vcombine.high %v2769, 0.0
    %v2774 = vcombine.low %v921, %v2697
    %v2775 = vcombine.high %v921, %v2697
    %v2777 = vunpack.c.l.s4 1983009808
    %v2778 = vunpack.c.0.s8 %v2777
    %v2779 = vlaneseq
    %v2780 = vshrl.u32 %v2779, 7
    %v2781 = vsub.s32 %v2778, %v2780
    %v2782 = vrot.slane %v2774, %v2781
    %v2784 = vunpack.c.l.s4 1983009808
    %v2785 = vunpack.c.0.s8 %v2784
    %v2786 = vlaneseq
    %v2787 = vshrl.u32 %v2786, 7
    %v2788 = vsub.s32 %v2785, %v2787
    %v2789 = vrot.slane %v2775, %v2788
    %v2790 = vcombine.low %v2691, %v2703
    %v2791 = vcombine.high %v2691, %v2703
    %v2793 = vunpack.c.l.s4 1983009808
    %v2794 = vunpack.c.0.s8 %v2793
    %v2795 = vlaneseq
    %v2796 = vshrl.u32 %v2795, 7
    %v2797 = vsub.s32 %v2794, %v2796
    %v2798 = vrot.slane %v2790, %v2797
    %v2800 = vunpack.c.l.s4 1983009808
    %v2801 = vunpack.c.0.s8 %v2800
    %v2802 = vlaneseq
    %v2803 = vshrl.u32 %v2802, 7
    %v2804 = vsub.s32 %v2801, %v2803
    %v2805 = vrot.slane %v2791, %v2804
    %v2806 = vcombine.low %v2782, %v2798
    %v2807 = vcombine.high %v2782, %v2798
    %v2809 = vunpack.c.l.s4 1934713408
    %v2810 = vunpack.c.0.s8 %v2809
    %v2811 = vlaneseq
    %v2812 = vshrl.u32 %v2811, 7
    %v2813 = vsub.s32 %v2810, %v2812
    %v2814 = vrot.slane %v2806, %v2813
    %v2816 = vunpack.c.l.s4 1934713408
    %v2817 = vunpack.c.0.s8 %v2816
    %v2818 = vlaneseq
    %v2819 = vshrl.u32 %v2818, 7
    %v2820 = vsub.s32 %v2817, %v2819
    %v2821 = vrot.slane %v2807, %v2820
    %v2822 = vcombine.low %v2789, %v2805
    %v2823 = vcombine.high %v2789, %v2805
    %v2825 = vunpack.c.l.s4 1934713408
    %v2826 = vunpack.c.0.s8 %v2825
    %v2827 = vlaneseq
    %v2828 = vshrl.u32 %v2827, 7
    %v2829 = vsub.s32 %v2826, %v2828
    %v2830 = vrot.slane %v2822, %v2829
    %v2832 = vunpack.c.l.s4 1934713408
    %v2833 = vunpack.c.0.s8 %v2832
    %v2834 = vlaneseq
    %v2835 = vshrl.u32 %v2834, 7
    %v2836 = vsub.s32 %v2833, %v2835
    %v2837 = vrot.slane %v2823, %v2836
    %v2838 = vcombine.high %v2814, 0.0
    %v2839 = vcombine.high %v2821, 0.0
    %v2840 = vcombine.high %v2830, 0.0
    %v2841 = vcombine.high %v2837, 0.0
    %v2842 = vcombine.low %v2746, %v2753
    %v2844 = vunpack.c.l.s4 1983009808
    %v2845 = vunpack.c.0.s8 %v2844
    %v2846 = vlaneseq
    %v2847 = vshrl.u32 %v2846, 7
    %v2848 = vsub.s32 %v2845, %v2847
    %v2849 = vrot.slane %v2842, %v2848
    %v2850 = vcombine.low %v2770, %v2771
    %v2852 = vunpack.c.l.s4 1983009808
    %v2853 = vunpack.c.0.s8 %v2852
    %v2854 = vlaneseq
    %v2855 = vshrl.u32 %v2854, 7
    %v2856 = vsub.s32 %v2853, %v2855
    %v2857 = vrot.slane %v2850, %v2856
    %v2858 = vcombine.low %v2762, %v2769
    %v2860 = vunpack.c.l.s4 1983009808
    %v2861 = vunpack.c.0.s8 %v2860
    %v2862 = vlaneseq
    %v2863 = vshrl.u32 %v2862, 7
    %v2864 = vsub.s32 %v2861, %v2863
    %v2865 = vrot.slane %v2858, %v2864
    %v2866 = vcombine.low %v2772, %v2773
    %v2868 = vunpack.c.l.s4 1983009808
    %v2869 = vunpack.c.0.s8 %v2868
    %v2870 = vlaneseq
    %v2871 = vshrl.u32 %v2870, 7
    %v2872 = vsub.s32 %v2869, %v2871
    %v2873 = vrot.slane %v2866, %v2872
    %v2874 = vcombine.low %v2849, %v2857
    %v2875 = vcombine.high %v2849, %v2857
    %v2877 = vunpack.c.l.s4 1934713408
    %v2878 = vunpack.c.0.s8 %v2877
    %v2879 = vlaneseq
    %v2880 = vshrl.u32 %v2879, 7
    %v2881 = vsub.s32 %v2878, %v2880
    %v2882 = vrot.slane %v2874, %v2881
    %v2884 = vunpack.c.l.s4 1934713408
    %v2885 = vunpack.c.0.s8 %v2884
    %v2886 = vlaneseq
    %v2887 = vshrl.u32 %v2886, 7
    %v2888 = vsub.s32 %v2885, %v2887
    %v2889 = vrot.slane %v2875, %v2888
    %v2890 = vcombine.low %v2865, %v2873
    %v2891 = vcombine.high %v2865, %v2873
    %v2893 = vunpack.c.l.s4 1934713408
    %v2894 = vunpack.c.0.s8 %v2893
    %v2895 = vlaneseq
    %v2896 = vshrl.u32 %v2895, 7
    %v2897 = vsub.s32 %v2894, %v2896
    %v2898 = vrot.slane %v2890, %v2897
    %v2900 = vunpack.c.l.s4 1934713408
    %v2901 = vunpack.c.0.s8 %v2900
    %v2902 = vlaneseq
    %v2903 = vshrl.u32 %v2902, 7
    %v2904 = vsub.s32 %v2901, %v2903
    %v2905 = vrot.slane %v2891, %v2904
    %v2906 = vcombine.low %v2882, %v2898
    %v2907 = vcombine.high %v2882, %v2898
    %v2908 = vcombine.low %v2889, %v2905
    %v2909 = vcombine.high %v2889, %v2905
    %v2910 = vcombine.low %v2814, %v2821
    %v2912 = vunpack.c.l.s4 1983009808
    %v2913 = vunpack.c.0.s8 %v2912
    %v2914 = vlaneseq
    %v2915 = vshrl.u32 %v2914, 7
    %v2916 = vsub.s32 %v2913, %v2915
    %v2917 = vrot.slane %v2910, %v2916
    %v2918 = vcombine.low %v2838, %v2839
    %v2920 = vunpack.c.l.s4 1983009808
    %v2921 = vunpack.c.0.s8 %v2920
    %v2922 = vlaneseq
    %v2923 = vshrl.u32 %v2922, 7
    %v2924 = vsub.s32 %v2921, %v2923
    %v2925 = vrot.slane %v2918, %v2924
    %v2926 = vcombine.low %v2830, %v2837
    %v2928 = vunpack.c.l.s4 1983009808
    %v2929 = vunpack.c.0.s8 %v2928
    %v2930 = vlaneseq
    %v2931 = vshrl.u32 %v2930, 7
    %v2932 = vsub.s32 %v2929, %v2931
    %v2933 = vrot.slane %v2926, %v2932
    %v2934 = vcombine.low %v2840, %v2841
    %v2936 = vunpack.c.l.s4 1983009808
    %v2937 = vunpack.c.0.s8 %v2936
    %v2938 = vlaneseq
    %v2939 = vshrl.u32 %v2938, 7
    %v2940 = vsub.s32 %v2937, %v2939
    %v2941 = vrot.slane %v2934, %v2940
    %v2942 = vcombine.low %v2917, %v2925
    %v2943 = vcombine.high %v2917, %v2925
    %v2945 = vunpack.c.l.s4 1934713408
    %v2946 = vunpack.c.0.s8 %v2945
    %v2947 = vlaneseq
    %v2948 = vshrl.u32 %v2947, 7
    %v2949 = vsub.s32 %v2946, %v2948
    %v2950 = vrot.slane %v2942, %v2949
    %v2952 = vunpack.c.l.s4 1934713408
    %v2953 = vunpack.c.0.s8 %v2952
    %v2954 = vlaneseq
    %v2955 = vshrl.u32 %v2954, 7
    %v2956 = vsub.s32 %v2953, %v2955
    %v2957 = vrot.slane %v2943, %v2956
    %v2958 = vcombine.low %v2933, %v2941
    %v2959 = vcombine.high %v2933, %v2941
    %v2961 = vunpack.c.l.s4 1934713408
    %v2962 = vunpack.c.0.s8 %v2961
    %v2963 = vlaneseq
    %v2964 = vshrl.u32 %v2963, 7
    %v2965 = vsub.s32 %v2962, %v2964
    %v2966 = vrot.slane %v2958, %v2965
    %v2968 = vunpack.c.l.s4 1934713408
    %v2969 = vunpack.c.0.s8 %v2968
    %v2970 = vlaneseq
    %v2971 = vshrl.u32 %v2970, 7
    %v2972 = vsub.s32 %v2969, %v2971
    %v2973 = vrot.slane %v2959, %v2972
    %v2974 = vcombine.low %v2950, %v2966
    %v2975 = vcombine.high %v2950, %v2966
    %v2976 = vcombine.low %v2957, %v2973
    %v2977 = vcombine.high %v2957, %v2973
    %v2978 = vpack.c.bf16 %v2390, %v2390
    %v2979 = vpack.c.bf16 %v2391, %v2391
    %v2980 = vpack.c.bf16 %v2392, %v2392
    %v2981 = vpack.c.bf16 %v2393, %v2393
    %v2982 = vpack.c.bf16 %v2682, %v2614
    %v2983 = vpack.c.bf16 %v2683, %v2615
    %v2984 = vpack.c.bf16 %v2684, %v2616
    %v2985 = vpack.c.bf16 %v2685, %v2617
    %v2987 = vsel %vm1668, %v2978, 0
    %v2990 = vsel %vm1668, %v2982, 0
    %2992 = vmatprep.subr.bf16.mxu0 0
    %2993 = vmatpush1.bf16.xpose.msra.mxu0 %v2990
    %2994 = vmatprep.subr.bf16.mxu0 0
    %2995 = vmatpush1.bf16.xpose.msra.mxu0 0
    %2996 = vmatprep.subr.bf16.mxu0 0
    %2997 = vmatpush1.bf16.xpose.msra.mxu0 0
    %2998 = vmatprep.subr.bf16.mxu0 0
    %2999 = vmatpush1.bf16.xpose.msra.mxu0 0
    %3000 = vmatprep.subr.bf16.mxu0 0
    %3001 = vmatpush1.bf16.xpose.msra.mxu0 0
    %3002 = vmatprep.subr.bf16.mxu0 0
    %3003 = vmatpush1.bf16.xpose.msra.mxu0 0
    %3004 = vmatprep.subr.bf16.mxu0 0
    %3005 = vmatpush1.bf16.xpose.msra.mxu0 0
    %3006 = vmatprep.subr.bf16.mxu0 0
    %3007 = vmatpush1.bf16.xpose.msra.mxu0 0
    %3008 = vmatprep.subr.bf16.mxu0 0
    %3009 = vmatpush1.bf16.xpose.msra.mxu0 0
    %3010 = vmatprep.subr.bf16.mxu0 0
    %3011 = vmatpush1.bf16.xpose.msra.mxu0 0
    %3012 = vmatprep.subr.bf16.mxu0 0
    %3013 = vmatpush1.bf16.xpose.msra.mxu0 0
    %3014 = vmatprep.subr.bf16.mxu0 0
    %3015 = vmatpush1.bf16.xpose.msra.mxu0 0
    %3016 = vmatprep.subr.bf16.mxu0 0
    %3017 = vmatpush1.bf16.xpose.msra.mxu0 0
    %3018 = vmatprep.subr.bf16.mxu0 0
    %3019 = vmatpush1.bf16.xpose.msra.mxu0 0
    %3020 = vmatprep.subr.bf16.mxu0 0
    %3021 = vmatpush1.bf16.xpose.msra.mxu0 0
    %3022 = vmatprep.subr.bf16.mxu0 0
    %3023 = vmatpush1.bf16.xpose.msra.mxu0 0
    %3024 = vmatprep.mubr.bf16.mxu0 0
    %3025 = vmatmul.mubr.bf16.gmra.mrb[0].mxu0 %v2987
    %v3026 = vpop.f32.mrb[0].mxu0
    %v3027 = vadd.f32 0.0, %v3026
    %v3028 = vpop.f32.mrb[0].mxu0
    %v3029 = vpop.f32.mrb[0].mxu0
    %v3030 = vpop.f32.mrb[0].mxu0
    %3031 = vdwg.mxu0
    %v3033 = vsel %vm1668, %v2979, 0
    %v3036 = vsel %vm1668, %v2983, 0
    %3038 = vmatprep.subr.bf16.mxu0 0
    %3039 = vmatpush1.bf16.xpose.msra.mxu0 %v3036
    %3040 = vmatprep.subr.bf16.mxu0 0
    %3041 = vmatpush1.bf16.xpose.msra.mxu0 0
    %3042 = vmatprep.subr.bf16.mxu0 0
    %3043 = vmatpush1.bf16.xpose.msra.mxu0 0
    %3044 = vmatprep.subr.bf16.mxu0 0
    %3045 = vmatpush1.bf16.xpose.msra.mxu0 0
    %3046 = vmatprep.subr.bf16.mxu0 0
    %3047 = vmatpush1.bf16.xpose.msra.mxu0 0
    %3048 = vmatprep.subr.bf16.mxu0 0
    %3049 = vmatpush1.bf16.xpose.msra.mxu0 0
    %3050 = vmatprep.subr.bf16.mxu0 0
    %3051 = vmatpush1.bf16.xpose.msra.mxu0 0
    %3052 = vmatprep.subr.bf16.mxu0 0
    %3053 = vmatpush1.bf16.xpose.msra.mxu0 0
    %3054 = vmatprep.subr.bf16.mxu0 0
    %3055 = vmatpush1.bf16.xpose.msra.mxu0 0
    %3056 = vmatprep.subr.bf16.mxu0 0
    %3057 = vmatpush1.bf16.xpose.msra.mxu0 0
    %3058 = vmatprep.subr.bf16.mxu0 0
    %3059 = vmatpush1.bf16.xpose.msra.mxu0 0
    %3060 = vmatprep.subr.bf16.mxu0 0
    %3061 = vmatpush1.bf16.xpose.msra.mxu0 0
    %3062 = vmatprep.subr.bf16.mxu0 0
    %3063 = vmatpush1.bf16.xpose.msra.mxu0 0
    %3064 = vmatprep.subr.bf16.mxu0 0
    %3065 = vmatpush1.bf16.xpose.msra.mxu0 0
    %3066 = vmatprep.subr.bf16.mxu0 0
    %3067 = vmatpush1.bf16.xpose.msra.mxu0 0
    %3068 = vmatprep.subr.bf16.mxu0 0
    %3069 = vmatpush1.bf16.xpose.msra.mxu0 0
    %3070 = vmatprep.mubr.bf16.mxu0 0
    %3071 = vmatmul.mubr.bf16.gmra.mrb[0].mxu0 %v3033
    %v3072 = vpop.f32.mrb[0].mxu0
    %v3073 = vadd.f32 0.0, %v3072
    %v3074 = vpop.f32.mrb[0].mxu0
    %v3075 = vpop.f32.mrb[0].mxu0
    %v3076 = vpop.f32.mrb[0].mxu0
    %3077 = vdwg.mxu0
    %v3079 = vsel %vm1668, %v2980, 0
    %v3082 = vsel %vm1668, %v2984, 0
    %3084 = vmatprep.subr.bf16.mxu0 0
    %3085 = vmatpush1.bf16.xpose.msra.mxu0 %v3082
    %3086 = vmatprep.subr.bf16.mxu0 0
    %3087 = vmatpush1.bf16.xpose.msra.mxu0 0
    %3088 = vmatprep.subr.bf16.mxu0 0
    %3089 = vmatpush1.bf16.xpose.msra.mxu0 0
    %3090 = vmatprep.subr.bf16.mxu0 0
    %3091 = vmatpush1.bf16.xpose.msra.mxu0 0
    %3092 = vmatprep.subr.bf16.mxu0 0
    %3093 = vmatpush1.bf16.xpose.msra.mxu0 0
    %3094 = vmatprep.subr.bf16.mxu0 0
    %3095 = vmatpush1.bf16.xpose.msra.mxu0 0
    %3096 = vmatprep.subr.bf16.mxu0 0
    %3097 = vmatpush1.bf16.xpose.msra.mxu0 0
    %3098 = vmatprep.subr.bf16.mxu0 0
    %3099 = vmatpush1.bf16.xpose.msra.mxu0 0
    %3100 = vmatprep.subr.bf16.mxu0 0
    %3101 = vmatpush1.bf16.xpose.msra.mxu0 0
    %3102 = vmatprep.subr.bf16.mxu0 0
    %3103 = vmatpush1.bf16.xpose.msra.mxu0 0
    %3104 = vmatprep.subr.bf16.mxu0 0
    %3105 = vmatpush1.bf16.xpose.msra.mxu0 0
    %3106 = vmatprep.subr.bf16.mxu0 0
    %3107 = vmatpush1.bf16.xpose.msra.mxu0 0
    %3108 = vmatprep.subr.bf16.mxu0 0
    %3109 = vmatpush1.bf16.xpose.msra.mxu0 0
    %3110 = vmatprep.subr.bf16.mxu0 0
    %3111 = vmatpush1.bf16.xpose.msra.mxu0 0
    %3112 = vmatprep.subr.bf16.mxu0 0
    %3113 = vmatpush1.bf16.xpose.msra.mxu0 0
    %3114 = vmatprep.subr.bf16.mxu0 0
    %3115 = vmatpush1.bf16.xpose.msra.mxu0 0
    %3116 = vmatprep.mubr.bf16.mxu0 0
    %3117 = vmatmul.mubr.bf16.gmra.mrb[0].mxu0 %v3079
    %v3118 = vpop.f32.mrb[0].mxu0
    %v3119 = vadd.f32 0.0, %v3118
    %v3120 = vpop.f32.mrb[0].mxu0
    %v3121 = vpop.f32.mrb[0].mxu0
    %v3122 = vpop.f32.mrb[0].mxu0
    %3123 = vdwg.mxu0
    %v3125 = vsel %vm1668, %v2981, 0
    %v3128 = vsel %vm1668, %v2985, 0
    %3130 = vmatprep.subr.bf16.mxu0 0
    %3131 = vmatpush1.bf16.xpose.msra.mxu0 %v3128
    %3132 = vmatprep.subr.bf16.mxu0 0
    %3133 = vmatpush1.bf16.xpose.msra.mxu0 0
    %3134 = vmatprep.subr.bf16.mxu0 0
    %3135 = vmatpush1.bf16.xpose.msra.mxu0 0
    %3136 = vmatprep.subr.bf16.mxu0 0
    %3137 = vmatpush1.bf16.xpose.msra.mxu0 0
    %3138 = vmatprep.subr.bf16.mxu0 0
    %3139 = vmatpush1.bf16.xpose.msra.mxu0 0
    %3140 = vmatprep.subr.bf16.mxu0 0
    %3141 = vmatpush1.bf16.xpose.msra.mxu0 0
    %3142 = vmatprep.subr.bf16.mxu0 0
    %3143 = vmatpush1.bf16.xpose.msra.mxu0 0
    %3144 = vmatprep.subr.bf16.mxu0 0
    %3145 = vmatpush1.bf16.xpose.msra.mxu0 0
    %3146 = vmatprep.subr.bf16.mxu0 0
    %3147 = vmatpush1.bf16.xpose.msra.mxu0 0
    %3148 = vmatprep.subr.bf16.mxu0 0
    %3149 = vmatpush1.bf16.xpose.msra.mxu0 0
    %3150 = vmatprep.subr.bf16.mxu0 0
    %3151 = vmatpush1.bf16.xpose.msra.mxu0 0
    %3152 = vmatprep.subr.bf16.mxu0 0
    %3153 = vmatpush1.bf16.xpose.msra.mxu0 0
    %3154 = vmatprep.subr.bf16.mxu0 0
    %3155 = vmatpush1.bf16.xpose.msra.mxu0 0
    %3156 = vmatprep.subr.bf16.mxu0 0
    %3157 = vmatpush1.bf16.xpose.msra.mxu0 0
    %3158 = vmatprep.subr.bf16.mxu0 0
    %3159 = vmatpush1.bf16.xpose.msra.mxu0 0
    %3160 = vmatprep.subr.bf16.mxu0 0
    %3161 = vmatpush1.bf16.xpose.msra.mxu0 0
    %3162 = vmatprep.mubr.bf16.mxu0 0
    %3163 = vmatmul.mubr.bf16.gmra.mrb[0].mxu0 %v3125
    %v3164 = vpop.f32.mrb[0].mxu0
    %v3165 = vadd.f32 0.0, %v3164
    %v3166 = vpop.f32.mrb[0].mxu0
    %v3167 = vpop.f32.mrb[0].mxu0
    %v3168 = vpop.f32.mrb[0].mxu0
    %3169 = vdwg.mxu0
    %v3170 = vmul.f32 %v3027, 0.35355338
    %v3171 = vmul.f32 %v3073, 0.35355338
    %v3172 = vmul.f32 %v3119, 0.35355338
    %v3173 = vmul.f32 %v3165, 0.35355338
    %v3175 = vlaneseq
    %v3176 = vshrl.u32 %v3175, 7
    %v3177 = vsub.s32 0, %v3176
    %v3178 = vrot.slane %v929, %v3177
    %v3180 = vadd.f32 %v3170, %v3178
    %v3181 = vadd.f32 %v3171, %v3178
    %v3182 = vadd.f32 %v3172, %v3178
    %v3183 = vadd.f32 %v3173, %v3178
    %v3184 = vsel %vm1867, %v3180, -inf
    %3185 = vmax.xlane.f32.xlu0 %v3184
    %v3186 = vpop.xlane.xlu0 %3185
    %v3187 = vsel %vm1867, %v3181, -inf
    %3188 = vmax.xlane.f32.xlu0 %v3187
    %v3189 = vpop.xlane.xlu0 %3188
    %v3190 = vsel %vm1867, %v3182, -inf
    %3191 = vmax.xlane.f32.xlu0 %v3190
    %v3192 = vpop.xlane.xlu0 %3191
    %v3193 = vsel %vm1867, %v3183, -inf
    %3194 = vmax.xlane.f32.xlu0 %v3193
    %v3195 = vpop.xlane.xlu0 %3194
    %v3196 = vsub.f32 %v3180, %v3186
    %v3197 = vsub.f32 %v3181, %v3189
    %v3198 = vsub.f32 %v3182, %v3192
    %v3199 = vsub.f32 %v3183, %v3195
    %v3200 = vmul.f32 %v3196, 1.442695
    %v3201 = vpow.pop %v3200
    %v3202 = vmul.f32 %v3197, 1.442695
    %v3203 = vpow.pop %v3202
    %v3204 = vmul.f32 %v3198, 1.442695
    %v3205 = vpow.pop %v3204
    %v3206 = vmul.f32 %v3199, 1.442695
    %v3207 = vpow.pop %v3206
    %v3208 = vsel %vm1867, %v3201, 0.0
    %3209 = vadd.xlane.f32.xlu0 %v3208
    %v3210 = vpop.xlane.xlu0 %3209
    %v3211 = vsel %vm1867, %v3203, 0.0
    %3212 = vadd.xlane.f32.xlu0 %v3211
    %v3213 = vpop.xlane.xlu0 %3212
    %v3214 = vsel %vm1867, %v3205, 0.0
    %3215 = vadd.xlane.f32.xlu0 %v3214
    %v3216 = vpop.xlane.xlu0 %3215
    %v3217 = vsel %vm1867, %v3207, 0.0
    %3218 = vadd.xlane.f32.xlu0 %v3217
    %v3219 = vpop.xlane.xlu0 %3218
    %v3220 = vrcp.pop %v3210
    %v3221 = vrcp.pop %v3213
    %v3222 = vrcp.pop %v3216
    %v3223 = vrcp.pop %v3219
    %v3224 = vmul.f32 %v3201, %v3220
    %v3225 = vmul.f32 %v3203, %v3221
    %v3226 = vmul.f32 %v3205, %v3222
    %v3227 = vmul.f32 %v3207, %v3223
    %s3228 = scalar_lea.vmem [#allocation44], 32
    %3229 = vst.msk [vmem:[%s3228] sm:$0xff] %vm1867, %v3224
    %3230 = vst.msk [vmem:[%s3228 + $0x8] sm:$0xff] %vm1867, %v3225
    %3231 = vst.msk [vmem:[%s3228 + $0x10] sm:$0xff] %vm1867, %v3226
    %3232 = vst.msk [vmem:[%s3228 + $0x18] sm:$0xff] %vm1867, %v3227
    %v3233 = vpack.c.bf16 %v3224, %v3224
    %v3234 = vpack.c.bf16 %v3225, %v3225
    %v3235 = vpack.c.bf16 %v3226, %v3226
    %v3236 = vpack.c.bf16 %v3227, %v3227
    %v3237 = vpack.c.bf16 %v2974, %v2906
    %v3238 = vpack.c.bf16 %v2975, %v2907
    %v3239 = vpack.c.bf16 %v2976, %v2908
    %v3240 = vpack.c.bf16 %v2977, %v2909
    %v3242 = vsel %vm1867, %v3233, 0
    %3244 = vmatprep.subr.bf16.mxu0 0
    %3245 = vmatpush1.bf16.msra.mxu0 %v3237
    %3246 = vmatprep.subr.bf16.mxu0 0
    %3247 = vmatpush1.bf16.msra.mxu0 0
    %3248 = vmatprep.subr.bf16.mxu0 0
    %3249 = vmatpush1.bf16.msra.mxu0 0
    %3250 = vmatprep.subr.bf16.mxu0 0
    %3251 = vmatpush1.bf16.msra.mxu0 0
    %3252 = vmatprep.subr.bf16.mxu0 0
    %3253 = vmatpush1.bf16.msra.mxu0 0
    %3254 = vmatprep.subr.bf16.mxu0 0
    %3255 = vmatpush1.bf16.msra.mxu0 0
    %3256 = vmatprep.subr.bf16.mxu0 0
    %3257 = vmatpush1.bf16.msra.mxu0 0
    %3258 = vmatprep.subr.bf16.mxu0 0
    %3259 = vmatpush1.bf16.msra.mxu0 0
    %3260 = vmatprep.subr.bf16.mxu0 0
    %3261 = vmatpush1.bf16.msra.mxu0 0
    %3262 = vmatprep.subr.bf16.mxu0 0
    %3263 = vmatpush1.bf16.msra.mxu0 0
    %3264 = vmatprep.subr.bf16.mxu0 0
    %3265 = vmatpush1.bf16.msra.mxu0 0
    %3266 = vmatprep.subr.bf16.mxu0 0
    %3267 = vmatpush1.bf16.msra.mxu0 0
    %3268 = vmatprep.subr.bf16.mxu0 0
    %3269 = vmatpush1.bf16.msra.mxu0 0
    %3270 = vmatprep.subr.bf16.mxu0 0
    %3271 = vmatpush1.bf16.msra.mxu0 0
    %3272 = vmatprep.subr.bf16.mxu0 0
    %3273 = vmatpush1.bf16.msra.mxu0 0
    %3274 = vmatprep.subr.bf16.mxu0 0
    %3275 = vmatpush1.bf16.msra.mxu0 0
    %3276 = vmatprep.mubr.bf16.mxu0 0
    %3277 = vmatmul.mubr.bf16.gmra.mrb[0].mxu0 %v3242
    %v3278 = vpop.f32.mrb[0].mxu0
    %v3279 = vadd.f32 0.0, %v3278
    %v3280 = vpop.f32.mrb[0].mxu0
    %v3281 = vpop.f32.mrb[0].mxu0
    %v3282 = vpop.f32.mrb[0].mxu0
    %3283 = vdwg.mxu0
    %v3285 = vsel %vm1867, %v3234, 0
    %3287 = vmatprep.subr.bf16.mxu0 0
    %3288 = vmatpush1.bf16.msra.mxu0 %v3238
    %3289 = vmatprep.subr.bf16.mxu0 0
    %3290 = vmatpush1.bf16.msra.mxu0 0
    %3291 = vmatprep.subr.bf16.mxu0 0
    %3292 = vmatpush1.bf16.msra.mxu0 0
    %3293 = vmatprep.subr.bf16.mxu0 0
    %3294 = vmatpush1.bf16.msra.mxu0 0
    %3295 = vmatprep.subr.bf16.mxu0 0
    %3296 = vmatpush1.bf16.msra.mxu0 0
    %3297 = vmatprep.subr.bf16.mxu0 0
    %3298 = vmatpush1.bf16.msra.mxu0 0
    %3299 = vmatprep.subr.bf16.mxu0 0
    %3300 = vmatpush1.bf16.msra.mxu0 0
    %3301 = vmatprep.subr.bf16.mxu0 0
    %3302 = vmatpush1.bf16.msra.mxu0 0
    %3303 = vmatprep.subr.bf16.mxu0 0
    %3304 = vmatpush1.bf16.msra.mxu0 0
    %3305 = vmatprep.subr.bf16.mxu0 0
    %3306 = vmatpush1.bf16.msra.mxu0 0
    %3307 = vmatprep.subr.bf16.mxu0 0
    %3308 = vmatpush1.bf16.msra.mxu0 0
    %3309 = vmatprep.subr.bf16.mxu0 0
    %3310 = vmatpush1.bf16.msra.mxu0 0
    %3311 = vmatprep.subr.bf16.mxu0 0
    %3312 = vmatpush1.bf16.msra.mxu0 0
    %3313 = vmatprep.subr.bf16.mxu0 0
    %3314 = vmatpush1.bf16.msra.mxu0 0
    %3315 = vmatprep.subr.bf16.mxu0 0
    %3316 = vmatpush1.bf16.msra.mxu0 0
    %3317 = vmatprep.subr.bf16.mxu0 0
    %3318 = vmatpush1.bf16.msra.mxu0 0
    %3319 = vmatprep.mubr.bf16.mxu0 0
    %3320 = vmatmul.mubr.bf16.gmra.mrb[0].mxu0 %v3285
    %v3321 = vpop.f32.mrb[0].mxu0
    %v3322 = vadd.f32 0.0, %v3321
    %v3323 = vpop.f32.mrb[0].mxu0
    %v3324 = vpop.f32.mrb[0].mxu0
    %v3325 = vpop.f32.mrb[0].mxu0
    %3326 = vdwg.mxu0
    %v3328 = vsel %vm1867, %v3235, 0
    %3330 = vmatprep.subr.bf16.mxu0 0
    %3331 = vmatpush1.bf16.msra.mxu0 %v3239
    %3332 = vmatprep.subr.bf16.mxu0 0
    %3333 = vmatpush1.bf16.msra.mxu0 0
    %3334 = vmatprep.subr.bf16.mxu0 0
    %3335 = vmatpush1.bf16.msra.mxu0 0
    %3336 = vmatprep.subr.bf16.mxu0 0
    %3337 = vmatpush1.bf16.msra.mxu0 0
    %3338 = vmatprep.subr.bf16.mxu0 0
    %3339 = vmatpush1.bf16.msra.mxu0 0
    %3340 = vmatprep.subr.bf16.mxu0 0
    %3341 = vmatpush1.bf16.msra.mxu0 0
    %3342 = vmatprep.subr.bf16.mxu0 0
    %3343 = vmatpush1.bf16.msra.mxu0 0
    %3344 = vmatprep.subr.bf16.mxu0 0
    %3345 = vmatpush1.bf16.msra.mxu0 0
    %3346 = vmatprep.subr.bf16.mxu0 0
    %3347 = vmatpush1.bf16.msra.mxu0 0
    %3348 = vmatprep.subr.bf16.mxu0 0
    %3349 = vmatpush1.bf16.msra.mxu0 0
    %3350 = vmatprep.subr.bf16.mxu0 0
    %3351 = vmatpush1.bf16.msra.mxu0 0
    %3352 = vmatprep.subr.bf16.mxu0 0
    %3353 = vmatpush1.bf16.msra.mxu0 0
    %3354 = vmatprep.subr.bf16.mxu0 0
    %3355 = vmatpush1.bf16.msra.mxu0 0
    %3356 = vmatprep.subr.bf16.mxu0 0
    %3357 = vmatpush1.bf16.msra.mxu0 0
    %3358 = vmatprep.subr.bf16.mxu0 0
    %3359 = vmatpush1.bf16.msra.mxu0 0
    %3360 = vmatprep.subr.bf16.mxu0 0
    %3361 = vmatpush1.bf16.msra.mxu0 0
    %3362 = vmatprep.mubr.bf16.mxu0 0
    %3363 = vmatmul.mubr.bf16.gmra.mrb[0].mxu0 %v3328
    %v3364 = vpop.f32.mrb[0].mxu0
    %v3365 = vadd.f32 0.0, %v3364
    %v3366 = vpop.f32.mrb[0].mxu0
    %v3367 = vpop.f32.mrb[0].mxu0
    %v3368 = vpop.f32.mrb[0].mxu0
    %3369 = vdwg.mxu0
    %v3371 = vsel %vm1867, %v3236, 0
    %3373 = vmatprep.subr.bf16.mxu0 0
    %3374 = vmatpush1.bf16.msra.mxu0 %v3240
    %3375 = vmatprep.subr.bf16.mxu0 0
    %3376 = vmatpush1.bf16.msra.mxu0 0
    %3377 = vmatprep.subr.bf16.mxu0 0
    %3378 = vmatpush1.bf16.msra.mxu0 0
    %3379 = vmatprep.subr.bf16.mxu0 0
    %3380 = vmatpush1.bf16.msra.mxu0 0
    %3381 = vmatprep.subr.bf16.mxu0 0
    %3382 = vmatpush1.bf16.msra.mxu0 0
    %3383 = vmatprep.subr.bf16.mxu0 0
    %3384 = vmatpush1.bf16.msra.mxu0 0
    %3385 = vmatprep.subr.bf16.mxu0 0
    %3386 = vmatpush1.bf16.msra.mxu0 0
    %3387 = vmatprep.subr.bf16.mxu0 0
    %3388 = vmatpush1.bf16.msra.mxu0 0
    %3389 = vmatprep.subr.bf16.mxu0 0
    %3390 = vmatpush1.bf16.msra.mxu0 0
    %3391 = vmatprep.subr.bf16.mxu0 0
    %3392 = vmatpush1.bf16.msra.mxu0 0
    %3393 = vmatprep.subr.bf16.mxu0 0
    %3394 = vmatpush1.bf16.msra.mxu0 0
    %3395 = vmatprep.subr.bf16.mxu0 0
    %3396 = vmatpush1.bf16.msra.mxu0 0
    %3397 = vmatprep.subr.bf16.mxu0 0
    %3398 = vmatpush1.bf16.msra.mxu0 0
    %3399 = vmatprep.subr.bf16.mxu0 0
    %3400 = vmatpush1.bf16.msra.mxu0 0
    %3401 = vmatprep.subr.bf16.mxu0 0
    %3402 = vmatpush1.bf16.msra.mxu0 0
    %3403 = vmatprep.subr.bf16.mxu0 0
    %3404 = vmatpush1.bf16.msra.mxu0 0
    %3405 = vmatprep.mubr.bf16.mxu0 0
    %3406 = vmatmul.mubr.bf16.gmra.mrb[0].mxu0 %v3371
    %v3407 = vpop.f32.mrb[0].mxu0
    %v3408 = vadd.f32 0.0, %v3407
    %v3409 = vpop.f32.mrb[0].mxu0
    %v3410 = vpop.f32.mrb[0].mxu0
    %v3411 = vpop.f32.mrb[0].mxu0
    %3412 = vdwg.mxu0
    %v3413 = vcombine.low %v3279, %v3365
    %v3414 = vcombine.high %v3279, %v3365
    %v3416 = vunpack.c.l.s4 1983009808
    %v3417 = vunpack.c.0.s8 %v3416
    %v3418 = vlaneseq
    %v3419 = vshrl.u32 %v3418, 7
    %v3420 = vsub.s32 %v3417, %v3419
    %v3421 = vrot.slane %v3413, %v3420
    %v3423 = vunpack.c.l.s4 1983009808
    %v3424 = vunpack.c.0.s8 %v3423
    %v3425 = vlaneseq
    %v3426 = vshrl.u32 %v3425, 7
    %v3427 = vsub.s32 %v3424, %v3426
    %v3428 = vrot.slane %v3414, %v3427
    %v3429 = vcombine.low %v3322, %v3408
    %v3430 = vcombine.high %v3322, %v3408
    %v3432 = vunpack.c.l.s4 1983009808
    %v3433 = vunpack.c.0.s8 %v3432
    %v3434 = vlaneseq
    %v3435 = vshrl.u32 %v3434, 7
    %v3436 = vsub.s32 %v3433, %v3435
    %v3437 = vrot.slane %v3429, %v3436
    %v3439 = vunpack.c.l.s4 1983009808
    %v3440 = vunpack.c.0.s8 %v3439
    %v3441 = vlaneseq
    %v3442 = vshrl.u32 %v3441, 7
    %v3443 = vsub.s32 %v3440, %v3442
    %v3444 = vrot.slane %v3430, %v3443
    %v3445 = vcombine.low %v3421, %v3437
    %v3446 = vcombine.high %v3421, %v3437
    %v3448 = vunpack.c.l.s4 1934713408
    %v3449 = vunpack.c.0.s8 %v3448
    %v3450 = vlaneseq
    %v3451 = vshrl.u32 %v3450, 7
    %v3452 = vsub.s32 %v3449, %v3451
    %v3453 = vrot.slane %v3445, %v3452
    %v3455 = vunpack.c.l.s4 1934713408
    %v3456 = vunpack.c.0.s8 %v3455
    %v3457 = vlaneseq
    %v3458 = vshrl.u32 %v3457, 7
    %v3459 = vsub.s32 %v3456, %v3458
    %v3460 = vrot.slane %v3446, %v3459
    %v3461 = vcombine.low %v3428, %v3444
    %v3462 = vcombine.high %v3428, %v3444
    %v3464 = vunpack.c.l.s4 1934713408
    %v3465 = vunpack.c.0.s8 %v3464
    %v3466 = vlaneseq
    %v3467 = vshrl.u32 %v3466, 7
    %v3468 = vsub.s32 %v3465, %v3467
    %v3469 = vrot.slane %v3461, %v3468
    %v3471 = vunpack.c.l.s4 1934713408
    %v3472 = vunpack.c.0.s8 %v3471
    %v3473 = vlaneseq
    %v3474 = vshrl.u32 %v3473, 7
    %v3475 = vsub.s32 %v3472, %v3474
    %v3476 = vrot.slane %v3462, %v3475
    %v3477 = vcombine.high %v3453, 0.0
    %v3478 = vcombine.high %v3460, 0.0
    %v3479 = vcombine.high %v3469, 0.0
    %v3480 = vcombine.high %v3476, 0.0
    %v3481 = vcombine.low %v3453, %v3460
    %v3483 = vunpack.c.l.s4 1983009808
    %v3484 = vunpack.c.0.s8 %v3483
    %v3485 = vlaneseq
    %v3486 = vshrl.u32 %v3485, 7
    %v3487 = vsub.s32 %v3484, %v3486
    %v3488 = vrot.slane %v3481, %v3487
    %v3489 = vcombine.low %v3477, %v3478
    %v3491 = vunpack.c.l.s4 1983009808
    %v3492 = vunpack.c.0.s8 %v3491
    %v3493 = vlaneseq
    %v3494 = vshrl.u32 %v3493, 7
    %v3495 = vsub.s32 %v3492, %v3494
    %v3496 = vrot.slane %v3489, %v3495
    %v3497 = vcombine.low %v3469, %v3476
    %v3499 = vunpack.c.l.s4 1983009808
    %v3500 = vunpack.c.0.s8 %v3499
    %v3501 = vlaneseq
    %v3502 = vshrl.u32 %v3501, 7
    %v3503 = vsub.s32 %v3500, %v3502
    %v3504 = vrot.slane %v3497, %v3503
    %v3505 = vcombine.low %v3479, %v3480
    %v3507 = vunpack.c.l.s4 1983009808
    %v3508 = vunpack.c.0.s8 %v3507
    %v3509 = vlaneseq
    %v3510 = vshrl.u32 %v3509, 7
    %v3511 = vsub.s32 %v3508, %v3510
    %v3512 = vrot.slane %v3505, %v3511
    %v3513 = vcombine.low %v3488, %v3496
    %v3514 = vcombine.high %v3488, %v3496
    %v3516 = vunpack.c.l.s4 1934713408
    %v3517 = vunpack.c.0.s8 %v3516
    %v3518 = vlaneseq
    %v3519 = vshrl.u32 %v3518, 7
    %v3520 = vsub.s32 %v3517, %v3519
    %v3521 = vrot.slane %v3513, %v3520
    %v3523 = vunpack.c.l.s4 1934713408
    %v3524 = vunpack.c.0.s8 %v3523
    %v3525 = vlaneseq
    %v3526 = vshrl.u32 %v3525, 7
    %v3527 = vsub.s32 %v3524, %v3526
    %v3528 = vrot.slane %v3514, %v3527
    %v3529 = vcombine.low %v3504, %v3512
    %v3530 = vcombine.high %v3504, %v3512
    %v3532 = vunpack.c.l.s4 1934713408
    %v3533 = vunpack.c.0.s8 %v3532
    %v3534 = vlaneseq
    %v3535 = vshrl.u32 %v3534, 7
    %v3536 = vsub.s32 %v3533, %v3535
    %v3537 = vrot.slane %v3529, %v3536
    %v3539 = vunpack.c.l.s4 1934713408
    %v3540 = vunpack.c.0.s8 %v3539
    %v3541 = vlaneseq
    %v3542 = vshrl.u32 %v3541, 7
    %v3543 = vsub.s32 %v3540, %v3542
    %v3544 = vrot.slane %v3530, %v3543
    %v3545 = vcombine.low %v3521, %v3537
    %v3546 = vcombine.high %v3521, %v3537
    %v3547 = vcombine.low %v3528, %v3544
    %v3548 = vcombine.high %v3528, %v3544
    %3550 = vrot.lane.b32.xlu0 %v3546, 8
    %v3551 = vpop.permute.xlu0 %3550
    %3554 = vrot.lane.b32.xlu0 %v3547, 16
    %v3555 = vpop.permute.xlu0 %3554
    %3558 = vrot.lane.b32.xlu0 %v3548, 24
    %v3559 = vpop.permute.xlu0 %3558
    %v3561 = vsel %vm1668, %v3545, %v3551
    %v3562 = vsel %vm1867, %v3561, %v3555
    %v3563 = vsel %vm2246, %v3562, %v3559
    %v3564 = vpack.c.bf16 %v3563, %v2247
    %v3565 = vld [vmem:[#allocation28] sm:$0xf]
    %v3566 = vld [vmem:[#allocation28 + $0x4] sm:$0xf]
    %v3567 = vld [vmem:[#allocation28 + $0x8] sm:$0xf]
    %v3568 = vld [vmem:[#allocation28 + $0xc] sm:$0xf]
    %v3569 = vld [vmem:[#allocation29] sm:$0x1]
    %v3571 = vlaneseq
    %v3572 = vshrl.u32 %v3571, 7
    %v3573 = vsub.s32 0, %v3572
    %v3574 = vrot.slane %v3569, %v3573
    %v3580 = vunpack.c.l.b16 %v3565
    %v3581 = vunpack.c.l.b16 %v3566
    %v3582 = vunpack.c.l.b16 %v3567
    %v3583 = vunpack.c.l.b16 %v3568
    %v3584 = vpack.c.b16 %v3581, %v3580
    %v3585 = vpack.c.b16 %v3583, %v3582
    %v3589 = vsel %vm436, %v3564, 0
    %3591 = vmatprep.subr.bf16.mxu0 0
    %3592 = vmatpush1.bf16.msra.mxu0 %v3584
    %3593 = vmatprep.subr.bf16.mxu0 0
    %3594 = vmatpush1.bf16.msra.mxu0 %v3585
    %3595 = vmatprep.subr.bf16.mxu0 0
    %3596 = vmatpush1.bf16.msra.mxu0 0
    %3597 = vmatprep.subr.bf16.mxu0 0
    %3598 = vmatpush1.bf16.msra.mxu0 0
    %3599 = vmatprep.subr.bf16.mxu0 0
    %3600 = vmatpush1.bf16.msra.mxu0 0
    %3601 = vmatprep.subr.bf16.mxu0 0
    %3602 = vmatpush1.bf16.msra.mxu0 0
    %3603 = vmatprep.subr.bf16.mxu0 0
    %3604 = vmatpush1.bf16.msra.mxu0 0
    %3605 = vmatprep.subr.bf16.mxu0 0
    %3606 = vmatpush1.bf16.msra.mxu0 0
    %3607 = vmatprep.subr.bf16.mxu0 0
    %3608 = vmatpush1.bf16.msra.mxu0 0
    %3609 = vmatprep.subr.bf16.mxu0 0
    %3610 = vmatpush1.bf16.msra.mxu0 0
    %3611 = vmatprep.subr.bf16.mxu0 0
    %3612 = vmatpush1.bf16.msra.mxu0 0
    %3613 = vmatprep.subr.bf16.mxu0 0
    %3614 = vmatpush1.bf16.msra.mxu0 0
    %3615 = vmatprep.subr.bf16.mxu0 0
    %3616 = vmatpush1.bf16.msra.mxu0 0
    %3617 = vmatprep.subr.bf16.mxu0 0
    %3618 = vmatpush1.bf16.msra.mxu0 0
    %3619 = vmatprep.subr.bf16.mxu0 0
    %3620 = vmatpush1.bf16.msra.mxu0 0
    %3621 = vmatprep.subr.bf16.mxu0 0
    %3622 = vmatpush1.bf16.msra.mxu0 0
    %3623 = vmatprep.mubr.bf16.mxu0 0
    %3624 = vmatmul.mubr.bf16.gmra.mrb[0].mxu0 %v3589
    %v3625 = vpop.f32.mrb[0].mxu0
    %v3626 = vadd.f32 %v3574, %v3625
    %v3627 = vpop.f32.mrb[0].mxu0
    %v3628 = vpop.f32.mrb[0].mxu0
    %v3629 = vadd.f32 %v3574, %v3628
    %v3630 = vpop.f32.mrb[0].mxu0
    %3631 = vdwg.mxu0
    %v3632 = vadd.f32 %v698, %v3626
    %v3633 = vadd.f32 %v699, %v3629
    %v3634 = vld [vmem:[#allocation31] sm:$0x1]
    %v3635 = vld [vmem:[#allocation32] sm:$0x1]
    %v3636 = vsel %vm436, %v3632, 0.0
    %3637 = vadd.xlane.f32.xlu0 %v3636
    %v3638 = vpop.xlane.xlu0 %3637
    %v3639 = vsel %vm436, %v3633, 0.0
    %3640 = vadd.xlane.f32.xlu0 %v3639
    %v3641 = vpop.xlane.xlu0 %3640
    %v3642 = vmul.f32 %v3638, %v657
    %v3643 = vmul.f32 %v3641, %v657
    %v3644 = vmul.f32 %v3632, %v3632
    %v3645 = vmul.f32 %v3633, %v3633
    %v3646 = vsel %vm436, %v3644, 0.0
    %3647 = vadd.xlane.f32.xlu0 %v3646
    %v3648 = vpop.xlane.xlu0 %3647
    %v3649 = vsel %vm436, %v3645, 0.0
    %3650 = vadd.xlane.f32.xlu0 %v3649
    %v3651 = vpop.xlane.xlu0 %3650
    %v3652 = vmul.f32 %v3648, %v657
    %v3653 = vmul.f32 %v3651, %v657
    %v3654 = vmul.f32 %v3642, %v3642
    %v3655 = vmul.f32 %v3643, %v3643
    %v3656 = vsub.f32 %v3652, %v3654
    %v3657 = vsub.f32 %v3653, %v3655
    %v3658 = vmax.f32 %v3656, 0.0
    %v3659 = vmax.f32 %v3657, 0.0
    %v3660 = vsub.f32 %v3632, %v3642
    %v3661 = vsub.f32 %v3633, %v3643
    %v3662 = vadd.f32 %v3658, 1e-05
    %v3663 = vadd.f32 %v3659, 1e-05
    %v3664 = vrsqrt.pop %v3662
    %v3665 = vrsqrt.pop %v3663
    %v3666 = vmul.f32 %v3660, %v3664
    %v3667 = vmul.f32 %v3661, %v3665
    %v3669 = vlaneseq
    %v3670 = vshrl.u32 %v3669, 7
    %v3671 = vsub.s32 0, %v3670
    %v3672 = vrot.slane %v3634, %v3671
    %v3674 = vmul.f32 %v3666, %v3672
    %v3675 = vmul.f32 %v3667, %v3672
    %v3677 = vlaneseq
    %v3678 = vshrl.u32 %v3677, 7
    %v3679 = vsub.s32 0, %v3678
    %v3680 = vrot.slane %v3635, %v3679
    %v3682 = vadd.f32 %v3674, %v3680
    %v3683 = vadd.f32 %v3675, %v3680
    %v3684 = vpack.c.bf16 %v3683, %v3682
    %v3685 = vld [vmem:[#allocation34] sm:$0xf]
    %v3686 = vld [vmem:[#allocation34 + $0x4] sm:$0xf]
    %v3687 = vld [vmem:[#allocation34 + $0x8] sm:$0xf]
    %v3688 = vld [vmem:[#allocation34 + $0xc] sm:$0xf]
    %v3689 = vld [vmem:[#allocation35] sm:$0x1]
    %v3691 = vlaneseq
    %v3692 = vshrl.u32 %v3691, 7
    %v3693 = vsub.s32 0, %v3692
    %v3694 = vrot.slane %v3689, %v3693
    %v3700 = vunpack.c.l.b16 %v3685
    %v3701 = vunpack.c.l.b16 %v3686
    %v3702 = vunpack.c.l.b16 %v3687
    %v3703 = vunpack.c.l.b16 %v3688
    %v3704 = vpack.c.b16 %v3701, %v3700
    %v3705 = vpack.c.b16 %v3703, %v3702
    %v3709 = vsel %vm436, %v3684, 0
    %3711 = vmatprep.subr.bf16.mxu0 0
    %3712 = vmatpush1.bf16.msra.mxu0 %v3704
    %3713 = vmatprep.subr.bf16.mxu0 0
    %3714 = vmatpush1.bf16.msra.mxu0 %v3705
    %3715 = vmatprep.subr.bf16.mxu0 0
    %3716 = vmatpush1.bf16.msra.mxu0 0
    %3717 = vmatprep.subr.bf16.mxu0 0
    %3718 = vmatpush1.bf16.msra.mxu0 0
    %3719 = vmatprep.subr.bf16.mxu0 0
    %3720 = vmatpush1.bf16.msra.mxu0 0
    %3721 = vmatprep.subr.bf16.mxu0 0
    %3722 = vmatpush1.bf16.msra.mxu0 0
    %3723 = vmatprep.subr.bf16.mxu0 0
    %3724 = vmatpush1.bf16.msra.mxu0 0
    %3725 = vmatprep.subr.bf16.mxu0 0
    %3726 = vmatpush1.bf16.msra.mxu0 0
    %3727 = vmatprep.subr.bf16.mxu0 0
    %3728 = vmatpush1.bf16.msra.mxu0 0
    %3729 = vmatprep.subr.bf16.mxu0 0
    %3730 = vmatpush1.bf16.msra.mxu0 0
    %3731 = vmatprep.subr.bf16.mxu0 0
    %3732 = vmatpush1.bf16.msra.mxu0 0
    %3733 = vmatprep.subr.bf16.mxu0 0
    %3734 = vmatpush1.bf16.msra.mxu0 0
    %3735 = vmatprep.subr.bf16.mxu0 0
    %3736 = vmatpush1.bf16.msra.mxu0 0
    %3737 = vmatprep.subr.bf16.mxu0 0
    %3738 = vmatpush1.bf16.msra.mxu0 0
    %3739 = vmatprep.subr.bf16.mxu0 0
    %3740 = vmatpush1.bf16.msra.mxu0 0
    %3741 = vmatprep.subr.bf16.mxu0 0
    %3742 = vmatpush1.bf16.msra.mxu0 0
    %3743 = vmatprep.mubr.bf16.mxu0 0
    %3744 = vmatmul.mubr.bf16.gmra.mrb[0].mxu0 %v3709
    %v3745 = vpop.f32.mrb[0].mxu0
    %v3746 = vadd.f32 %v3694, %v3745
    %v3747 = vpop.f32.mrb[0].mxu0
    %v3748 = vpop.f32.mrb[0].mxu0
    %v3749 = vadd.f32 %v3694, %v3748
    %v3750 = vpop.f32.mrb[0].mxu0
    %3751 = vdwg.mxu0
    %v3752 = vmax.f32 %v3746, 0.0
    %v3753 = vmax.f32 %v3749, 0.0
    %v3754 = vpack.c.bf16 %v3753, %v3752
    %v3755 = vld [vmem:[#allocation37] sm:$0xf]
    %v3756 = vld [vmem:[#allocation37 + $0x4] sm:$0xf]
    %v3757 = vld [vmem:[#allocation37 + $0x8] sm:$0xf]
    %v3758 = vld [vmem:[#allocation37 + $0xc] sm:$0xf]
    %v3759 = vld [vmem:[#allocation37 + $0x10] sm:$0xf]
    %v3760 = vld [vmem:[#allocation37 + $0x14] sm:$0xf]
    %v3761 = vld [vmem:[#allocation37 + $0x18] sm:$0xf]
    %v3762 = vld [vmem:[#allocation37 + $0x1c] sm:$0xf]
    %v3763 = vld [vmem:[#allocation38] sm:$0x1]
    %v3765 = vlaneseq
    %v3766 = vshrl.u32 %v3765, 7
    %v3767 = vsub.s32 0, %v3766
    %v3768 = vrot.slane %v3763, %v3767
    %v3778 = vunpack.c.l.b16 %v3755
    %v3779 = vunpack.c.l.b16 %v3756
    %v3780 = vunpack.c.l.b16 %v3757
    %v3781 = vunpack.c.l.b16 %v3758
    %v3782 = vunpack.c.l.b16 %v3759
    %v3783 = vunpack.c.l.b16 %v3760
    %v3784 = vunpack.c.l.b16 %v3761
    %v3785 = vunpack.c.l.b16 %v3762
    %v3786 = vpack.c.b16 %v3779, %v3778
    %v3787 = vpack.c.b16 %v3781, %v3780
    %v3788 = vpack.c.b16 %v3783, %v3782
    %v3789 = vpack.c.b16 %v3785, %v3784
    %vm3794 = vcmask 523264
    %v3796 = vsel %vm3794, %v3754, 0
    %3798 = vmatprep.subr.bf16.mxu0 0
    %3799 = vmatpush1.bf16.msra.mxu0 %v3786
    %3800 = vmatprep.subr.bf16.mxu0 0
    %3801 = vmatpush1.bf16.msra.mxu0 %v3787
    %3802 = vmatprep.subr.bf16.mxu0 0
    %3803 = vmatpush1.bf16.msra.mxu0 %v3788
    %3804 = vmatprep.subr.bf16.mxu0 0
    %3805 = vmatpush1.bf16.msra.mxu0 %v3789
    %3806 = vmatprep.subr.bf16.mxu0 0
    %3807 = vmatpush1.bf16.msra.mxu0 0
    %3808 = vmatprep.subr.bf16.mxu0 0
    %3809 = vmatpush1.bf16.msra.mxu0 0
    %3810 = vmatprep.subr.bf16.mxu0 0
    %3811 = vmatpush1.bf16.msra.mxu0 0
    %3812 = vmatprep.subr.bf16.mxu0 0
    %3813 = vmatpush1.bf16.msra.mxu0 0
    %3814 = vmatprep.subr.bf16.mxu0 0
    %3815 = vmatpush1.bf16.msra.mxu0 0
    %3816 = vmatprep.subr.bf16.mxu0 0
    %3817 = vmatpush1.bf16.msra.mxu0 0
    %3818 = vmatprep.subr.bf16.mxu0 0
    %3819 = vmatpush1.bf16.msra.mxu0 0
    %3820 = vmatprep.subr.bf16.mxu0 0
    %3821 = vmatpush1.bf16.msra.mxu0 0
    %3822 = vmatprep.subr.bf16.mxu0 0
    %3823 = vmatpush1.bf16.msra.mxu0 0
    %3824 = vmatprep.subr.bf16.mxu0 0
    %3825 = vmatpush1.bf16.msra.mxu0 0
    %3826 = vmatprep.subr.bf16.mxu0 0
    %3827 = vmatpush1.bf16.msra.mxu0 0
    %3828 = vmatprep.subr.bf16.mxu0 0
    %3829 = vmatpush1.bf16.msra.mxu0 0
    %3830 = vmatprep.mubr.bf16.mxu0 0
    %3831 = vmatmul.mubr.bf16.gmra.mrb[0].mxu0 %v3796
    %v3832 = vpop.f32.mrb[0].mxu0
    %v3833 = vadd.f32 %v3768, %v3832
    %v3834 = vpop.f32.mrb[0].mxu0
    %v3835 = vpop.f32.mrb[0].mxu0
    %v3836 = vadd.f32 %v3768, %v3835
    %v3837 = vpop.f32.mrb[0].mxu0
    %3838 = vdwg.mxu0
    %v3839 = vadd.f32 %v3682, %v3833
    %v3840 = vadd.f32 %v3683, %v3836
    %v3841 = vld [vmem:[#allocation40] sm:$0x1]
    %v3842 = vld [vmem:[#allocation41] sm:$0x1]
    %v3843 = vsel %vm436, %v3839, 0.0
    %3844 = vadd.xlane.f32.xlu0 %v3843
    %v3845 = vpop.xlane.xlu0 %3844
    %v3846 = vsel %vm436, %v3840, 0.0
    %3847 = vadd.xlane.f32.xlu0 %v3846
    %v3848 = vpop.xlane.xlu0 %3847
    %v3849 = vmul.f32 %v3845, %v657
    %v3850 = vmul.f32 %v3848, %v657
    %v3851 = vmul.f32 %v3839, %v3839
    %v3852 = vmul.f32 %v3840, %v3840
    %v3853 = vsel %vm436, %v3851, 0.0
    %3854 = vadd.xlane.f32.xlu0 %v3853
    %v3855 = vpop.xlane.xlu0 %3854
    %v3856 = vsel %vm436, %v3852, 0.0
    %3857 = vadd.xlane.f32.xlu0 %v3856
    %v3858 = vpop.xlane.xlu0 %3857
    %v3859 = vmul.f32 %v3855, %v657
    %v3860 = vmul.f32 %v3858, %v657
    %v3861 = vmul.f32 %v3849, %v3849
    %v3862 = vmul.f32 %v3850, %v3850
    %v3863 = vsub.f32 %v3859, %v3861
    %v3864 = vsub.f32 %v3860, %v3862
    %v3865 = vmax.f32 %v3863, 0.0
    %v3866 = vmax.f32 %v3864, 0.0
    %v3867 = vsub.f32 %v3839, %v3849
    %v3868 = vsub.f32 %v3840, %v3850
    %v3869 = vadd.f32 %v3865, 1e-05
    %v3870 = vadd.f32 %v3866, 1e-05
    %v3871 = vrsqrt.pop %v3869
    %v3872 = vrsqrt.pop %v3870
    %v3873 = vmul.f32 %v3867, %v3871
    %v3874 = vmul.f32 %v3868, %v3872
    %v3876 = vlaneseq
    %v3877 = vshrl.u32 %v3876, 7
    %v3878 = vsub.s32 0, %v3877
    %v3879 = vrot.slane %v3841, %v3878
    %v3881 = vmul.f32 %v3873, %v3879
    %v3882 = vmul.f32 %v3874, %v3879
    %v3884 = vlaneseq
    %v3885 = vshrl.u32 %v3884, 7
    %v3886 = vsub.s32 0, %v3885
    %v3887 = vrot.slane %v3842, %v3886
    %v3889 = vadd.f32 %v3881, %v3887
    %v3890 = vadd.f32 %v3882, %v3887
    %3891 = vst.msk [vmem:[#allocation43] sm:$0xff] %vm436, %v3889
    %3892 = vst.msk [vmem:[#allocation43 + $0x8] sm:$0xff] %vm436, %v3890
    // Predicated region
    $region210: #{tpu_custom_call.1} parent=1 // pred_check
      _
    $region211: #{tpu_custom_call.1} parent=1 // pred_check_branch
      %3894 = sbr.rel (0) target = $region213
    $region212: #{tpu_custom_call.1} parent=1 // pred_region
      %s3896 = ssub.s32 256, 256
      %3897 = vsyncadd [#allocation4], %s3896
      %s3898 = sshll.u32 [#allocation43], 4
      %s3899 = int_to_ptr.vmem [resolvable:$true] %s3898
      %3904 = dma.vmem_to_hbm [thread:$0]  %s3899, 256, %s26, [#allocation4], 128, 128, 8
    $region213: #{tpu_custom_call.1} parent=1 // pred_fallthru
      _
    // Predicated region
    $region214: #{tpu_custom_call.1} parent=1 // pred_check
      _
    $region215: #{tpu_custom_call.1} parent=1 // pred_check_branch
      %3906 = sbr.rel (0) target = $region217
    $region216: #{tpu_custom_call.1} parent=1 // pred_region
      %s3908 = ssub.s32 1024, 1024
      %3909 = vsyncadd [#allocation45], %s3908
      %s3910 = sshll.u32 [#allocation44], 4
      %s3911 = int_to_ptr.vmem [resolvable:$true] %s3910
      %3916 = dma.vmem_to_hbm [thread:$0]  %s3911, 1024, %s27, [#allocation45], 128, 128, 8
    $region217: #{tpu_custom_call.1} parent=1 // pred_fallthru
      _
    // Predicated region
    $region218: #{tpu_custom_call.1} parent=1 // pred_check
      _
    $region219: #{tpu_custom_call.1} parent=1 // pred_check_branch
      %3918 = sbr.rel (0) target = $region221
    $region220: #{tpu_custom_call.1} parent=1 // pred_region
      %3919 = dma.done [#allocation4], 256
    $region221: #{tpu_custom_call.1} parent=1 // pred_fallthru
      _
    // Predicated region
    $region222: #{tpu_custom_call.1} parent=1 // pred_check
      _
    $region223: #{tpu_custom_call.1} parent=1 // pred_check_branch
      %3921 = sbr.rel (0) target = $region225
    $region224: #{tpu_custom_call.1} parent=1 // pred_region
      %3922 = dma.done [#allocation45], 1024
    $region225: #{tpu_custom_call.1} parent=1 // pred_fallthru
      _
    %3923 = vsyncpa [#allocation3], 1
    %3924 = vsyncpa [#allocation6], 1
    %3925 = vsyncpa [#allocation9], 1
    %3926 = vsyncpa [#allocation12], 1
    %3927 = vsyncpa [#allocation15], 1
    %3928 = vsyncpa [#allocation18], 1
    %3929 = vsyncpa [#allocation21], 1
    %3930 = vsyncpa [#allocation24], 1
    %3931 = vsyncpa [#allocation27], 1
    %3932 = vsyncpa [#allocation30], 1
    %3933 = vsyncpa [#allocation33], 1
    %3934 = vsyncpa [#allocation36], 1
    %3935 = vsyncpa [#allocation39], 1
    %3936 = vsyncpa [#allocation42], 1
    %3937 = vsyncpa [#allocation4], 1
    %3938 = vsyncpa [#allocation45], 1

</llo_original>
